<compile_context>
chip_gen: v6e
topology: v6e:2x2x1
jax: 0.10.0
libtpu: 0.0.40
codegen_flags: <defaults>
</compile_context>

<pallas_src>
import functools

import jax
import jax.numpy as jnp
from jax import lax
from jax.experimental import pallas as pl
from jax.experimental.pallas import tpu as pltpu

EPS = 1e-5     # nn.BatchNorm2d default eps
LANE = 128     # TPU lane width: channel padding granularity


# --------------------------------------------------------------------------
# Small helpers
# --------------------------------------------------------------------------
def _round_up(v, m):
    return (v + m - 1) // m * m


def _choose_tm(m, cap=1024):
    """Largest row tile <= cap that divides m (multiple of 8), else whole m."""
    if m <= cap:
        return m
    for tm in range(cap - cap % 8, 7, -8):
        if m % tm == 0:
            return tm
    return m


def _mosaic_params(sem, block_bytes, scratch_bytes=0):
    # Explicit VMEM budget: double-buffered pipeline blocks + persistent
    # scratch, 2x headroom for accumulators/relayouts, capped at v7x physical.
    need = 2 * block_bytes + scratch_bytes
    limit = int(min(max(2 * need + (8 << 20), 32 << 20), 64 << 20))
    return pltpu.CompilerParams(dimension_semantics=sem, vmem_limit_bytes=limit)


# --------------------------------------------------------------------------
# Pallas kernels
# --------------------------------------------------------------------------
def _conv1_kernel(x_ref, w_ref, b_ref, y_ref, sum_ref, ssq_ref, col_ref,
                  *, stride, Ho, Wo):
    """3x3 conv (pad 1, given stride) over one parity-split padded image.

    x_ref:   (stride*stride, Hq, Wq, Cin_p) f32 parity planes of padded image
    w_ref:   (9*Cin_p, tn)  bf16 tap-major packed weights
    b_ref:   (1, tn)        f32
    y_ref:   (1, Ho*Wo, tn) bf16 raw conv output (pre-BN)
    sum_ref, ssq_ref: (1, 1, tn) f32 per-image BN statistics
    col_ref: (Ho*Wo, 9*Cin_p) bf16 VMEM im2col scratch (built once per image)
    """
    s = stride
    cin = x_ref.shape[-1]
    m = Ho * Wo

    # Build the in-VMEM im2col slab once per image (jc == 0). The scratch
    # persists across the cout-tile grid axis (marked "arbitrary").
    @pl.when(pl.program_id(1) == 0)
    def _():
        for i in range(3):
            for j in range(3):
                k = i * 3 + j
                plane = (i % s) * s + (j % s)
                tap = x_ref[plane, pl.ds(i // s, Ho), pl.ds(j // s, Wo), :]
                col_ref[:, k * cin:(k + 1) * cin] = (
                    tap.reshape(m, cin).astype(col_ref.dtype))

    # Single deep-K bf16 MXU matmul with f32 accumulation.
    y = jnp.dot(col_ref[...], w_ref[...],
                preferred_element_type=jnp.float32) + b_ref[...]
    # BN statistics via XLU cross-sublane reductions (overlaps the MXU).
    sum_ref[0] = jnp.sum(y, axis=0, keepdims=True)
    ssq_ref[0] = jnp.sum(y * y, axis=0, keepdims=True)
    y_ref[0] = y.astype(y_ref.dtype)


def _conv2_kernel(x_ref, scale_ref, shift_ref, w_ref, b_ref,
                  y_ref, sum_ref, ssq_ref, xpad_ref, col_ref, *, Ho, Wo):
    """conv2: BN1-apply + ReLU + halo pad + im2col fused into the input stage.

    x_ref:      (1, Ho, Wo, C) bf16 raw conv1 output for one image
    scale/shift:(1, C)         f32 folded BN1 scale / shift
    w_ref:      (9*C, tn) bf16; b_ref: (1, tn) f32
    y_ref:      (1, Ho*Wo, tn) bf16;  sum_ref, ssq_ref: (1, 1, tn) f32
    xpad_ref:   (Ho+2, Wpad, C) f32 VMEM scratch (activated, halo-padded image)
    col_ref:    (Ho*Wo, 9*C)    bf16 VMEM im2col scratch
    """
    c = x_ref.shape[-1]
    m = Ho * Wo

    # Activation + padding + im2col once per image (jc == 0 only).
    @pl.when(pl.program_id(1) == 0)
    def _():
        scale = scale_ref[...].reshape(1, 1, c)
        shift = shift_ref[...].reshape(1, 1, c)
        act = jnp.maximum(x_ref[0].astype(jnp.float32) * scale + shift, 0.0)
        xpad_ref[...] = jnp.zeros(xpad_ref.shape, xpad_ref.dtype)
        xpad_ref[pl.ds(1, Ho), pl.ds(1, Wo), :] = act
        for i in range(3):
            for j in range(3):
                k = i * 3 + j
                tap = xpad_ref[pl.ds(i, Ho), pl.ds(j, Wo), :]
                col_ref[:, k * c:(k + 1) * c] = (
                    tap.reshape(m, c).astype(col_ref.dtype))

    y = jnp.dot(col_ref[...], w_ref[...],
                preferred_element_type=jnp.float32) + b_ref[...]
    sum_ref[0] = jnp.sum(y, axis=0, keepdims=True)
    ssq_ref[0] = jnp.sum(y * y, axis=0, keepdims=True)
    y_ref[0] = y.astype(y_ref.dtype)


def _bn_add_relu_kernel(y_ref, xs_ref, scale_ref, shift_ref, o_ref):
    """BN2-apply + identity shortcut + ReLU for one (image, M-tile, cout-tile)."""
    yn = y_ref[0].astype(jnp.float32) * scale_ref[...] + shift_ref[...]
    o_ref[0] = jnp.maximum(yn + xs_ref[0].astype(jnp.float32), 0.0)


def _bn_proj_add_relu_kernel(y_ref, xs_ref, w3_ref, b3_ref,
                             scale_ref, shift_ref, o_ref):
    """BN2-apply + fused 1x1-conv shortcut projection + ReLU."""
    shortcut = jnp.dot(xs_ref[0], w3_ref[...],
                       preferred_element_type=jnp.float32) + b3_ref[...]
    yn = y_ref[0].astype(jnp.float32) * scale_ref[...] + shift_ref[...]
    o_ref[0] = jnp.maximum(yn + shortcut, 0.0)


# --------------------------------------------------------------------------
# pallas_call wrappers
# --------------------------------------------------------------------------
def _conv1_call(x_split, w_mat, b_row, *, stride, n_batch, Ho, Wo, tn):
    _, hq, wq, cin_p = x_split.shape
    ss = stride * stride
    cout_p = w_mat.shape[-1]
    jc_tiles = cout_p // tn
    m_img = Ho * Wo
    kernel = functools.partial(_conv1_kernel, stride=stride, Ho=Ho, Wo=Wo)
    block_bytes = (ss * hq * wq * cin_p * 4 + 9 * cin_p * tn * 2 + tn * 4
                   + m_img * tn * 2 + 2 * tn * 4)
    scratch_bytes = m_img * 9 * cin_p * 2 + m_img * tn * 4
    return pl.pallas_call(
        kernel,
        out_shape=(
            jax.ShapeDtypeStruct((n_batch, m_img, cout_p), jnp.bfloat16),
            jax.ShapeDtypeStruct((n_batch, 1, cout_p), jnp.float32),
            jax.ShapeDtypeStruct((n_batch, 1, cout_p), jnp.float32),
        ),
        grid=(n_batch, jc_tiles),
        in_specs=[
            pl.BlockSpec((ss, hq, wq, cin_p), lambda n, jc: (n, 0, 0, 0)),
            pl.BlockSpec((9 * cin_p, tn), lambda n, jc: (0, jc)),
            pl.BlockSpec((1, tn), lambda n, jc: (0, jc)),
        ],
        out_specs=[
            pl.BlockSpec((1, m_img, tn), lambda n, jc: (n, 0, jc)),
            pl.BlockSpec((1, 1, tn), lambda n, jc: (n, 0, jc)),
            pl.BlockSpec((1, 1, tn), lambda n, jc: (n, 0, jc)),
        ],
        scratch_shapes=[pltpu.VMEM((m_img, 9 * cin_p), jnp.bfloat16)],
        compiler_params=_mosaic_params(("parallel", "arbitrary"),
                                       block_bytes, scratch_bytes),
    )(x_split, w_mat, b_row)


def _conv2_call(y1_img, scale1, shift1, w_mat, b_row, *, tn):
    n_batch, ho, wo, c = y1_img.shape
    cout_p = w_mat.shape[-1]
    jc_tiles = cout_p // tn
    m_img = ho * wo
    wpad = _round_up(wo + 2, 8)
    kernel = functools.partial(_conv2_kernel, Ho=ho, Wo=wo)
    block_bytes = (ho * wo * c * 2 + 2 * c * 4 + 9 * c * tn * 2 + tn * 4
                   + m_img * tn * 2 + 2 * tn * 4)
    scratch_bytes = ((ho + 2) * wpad * c * 4 + m_img * 9 * c * 2
                     + m_img * tn * 4)
    return pl.pallas_call(
        kernel,
        out_shape=(
            jax.ShapeDtypeStruct((n_batch, m_img, cout_p), jnp.bfloat16),
            jax.ShapeDtypeStruct((n_batch, 1, cout_p), jnp.float32),
            jax.ShapeDtypeStruct((n_batch, 1, cout_p), jnp.float32),
        ),
        grid=(n_batch, jc_tiles),
        in_specs=[
            pl.BlockSpec((1, ho, wo, c), lambda n, jc: (n, 0, 0, 0)),
            pl.BlockSpec((1, c), lambda n, jc: (0, 0)),
            pl.BlockSpec((1, c), lambda n, jc: (0, 0)),
            pl.BlockSpec((9 * c, tn), lambda n, jc: (0, jc)),
            pl.BlockSpec((1, tn), lambda n, jc: (0, jc)),
        ],
        out_specs=[
            pl.BlockSpec((1, m_img, tn), lambda n, jc: (n, 0, jc)),
            pl.BlockSpec((1, 1, tn), lambda n, jc: (n, 0, jc)),
            pl.BlockSpec((1, 1, tn), lambda n, jc: (n, 0, jc)),
        ],
        scratch_shapes=[
            pltpu.VMEM((ho + 2, wpad, c), jnp.float32),
            pltpu.VMEM((m_img, 9 * c), jnp.bfloat16),
        ],
        compiler_params=_mosaic_params(("parallel", "arbitrary"),
                                       block_bytes, scratch_bytes),
    )(y1_img, scale1, shift1, w_mat, b_row)


def _epilogue_call(y2, xs, scale2, shift2, w3=None, b3=None, *, tn):
    n_batch, m_img, cout_p = y2.shape
    cin_p = xs.shape[-1]
    jc_tiles = cout_p // tn
    tm = _choose_tm(m_img)
    jm_tiles = m_img // tm
    out_shape = jax.ShapeDtypeStruct((n_batch, m_img, cout_p), jnp.float32)
    slab = pl.BlockSpec((1, tm, tn), lambda n, jm, jc: (n, jm, jc))
    vec = pl.BlockSpec((1, tn), lambda n, jm, jc: (0, jc))
    sem = ("parallel", "parallel", "parallel")
    if w3 is None:
        block_bytes = 2 * tm * tn * 2 + 2 * tn * 4 + tm * tn * 4
        return pl.pallas_call(
            _bn_add_relu_kernel,
            out_shape=out_shape,
            grid=(n_batch, jm_tiles, jc_tiles),
            in_specs=[slab, slab, vec, vec],
            out_specs=slab,
            compiler_params=_mosaic_params(sem, block_bytes),
        )(y2, xs, scale2, shift2)
    block_bytes = (tm * tn * 2 + tm * cin_p * 2 + cin_p * tn * 2
                   + 3 * tn * 4 + tm * tn * 4)
    return pl.pallas_call(
        _bn_proj_add_relu_kernel,
        out_shape=out_shape,
        grid=(n_batch, jm_tiles, jc_tiles),
        in_specs=[slab,
                  pl.BlockSpec((1, tm, cin_p), lambda n, jm, jc: (n, jm, 0)),
                  pl.BlockSpec((cin_p, tn), lambda n, jm, jc: (0, jc)),
                  vec, vec, vec],
        out_specs=slab,
        compiler_params=_mosaic_params(sem, block_bytes),
    )(y2, xs, w3, b3, scale2, shift2)


# --------------------------------------------------------------------------
# Layout helpers (pure JAX reshuffling / tiny per-channel math)
# --------------------------------------------------------------------------
def _pad_channels(x, cp):
    return jnp.pad(x, ((0, 0),) * (x.ndim - 1) + ((0, cp - x.shape[-1]),))


def _pad_vec(v, cp):
    return jnp.pad(v, (0, cp - v.shape[0]))


def _pack_w3x3(w_oihw, cin_p, cout_p):
    """(Cout,Cin,3,3) -> (9*Cin_p, Cout_p) bf16; row index = (i*3+j)*Cin_p + c."""
    cout, cin = w_oihw.shape[0], w_oihw.shape[1]
    w = jnp.transpose(w_oihw, (2, 3, 1, 0))                # (3, 3, Cin, Cout)
    w = jnp.pad(w, ((0, 0), (0, 0), (0, cin_p - cin), (0, cout_p - cout)))
    return w.reshape(9 * cin_p, cout_p).astype(jnp.bfloat16)


def _split_pad_input(x_nhwc, stride):
    """Zero-pad spatially by 1 and split into stride x stride parity planes.

    Returns (N*stride*stride, Hq, Wq, C). Plane a*stride+b holds padded rows
    congruent to a and padded cols congruent to b (mod stride), so every 3x3
    tap is a contiguous (Ho, Wo) slice of a single plane inside the kernel.
    """
    n, h, w, c = x_nhwc.shape
    s = stride
    hq = -(-(h + 2) // s)
    wq = -(-(w + 2) // s)
    xp = jnp.pad(x_nhwc,
                 ((0, 0), (1, hq * s - h - 1), (1, wq * s - w - 1), (0, 0)))
    xp = xp.reshape(n, hq, s, wq, s, c).transpose(0, 2, 4, 1, 3, 5)
    return xp.reshape(n * s * s, hq, wq, c)


def _fold_bn(sum_nc, ssq_nc, gamma, beta, count):
    # Training-mode (biased) batch statistics folded into scale/shift (f32).
    total = jnp.sum(sum_nc, axis=(0, 1))
    total_sq = jnp.sum(ssq_nc, axis=(0, 1))
    mean = total / count
    var = jnp.maximum(total_sq / count - mean * mean, 0.0)
    scale = gamma * lax.rsqrt(var + EPS)
    shift = beta - mean * scale
    cp = scale.shape[0]
    return scale.reshape(1, cp), shift.reshape(1, cp)


# --------------------------------------------------------------------------
# BaseResidual forward (Pallas path)
# --------------------------------------------------------------------------
@functools.partial(jax.jit, static_argnames=("stride", "use_1x1conv"))
def base_residual_forward(x_nchw, params, *, stride, use_1x1conv):
    x = jnp.transpose(x_nchw, (0, 2, 3, 1)).astype(jnp.float32)   # NHWC
    n, h, w, cin = x.shape
    cout = params["w1"].shape[0]
    tn = 2 * LANE if cout > LANE else LANE      # 256-wide tiles for big layers
    cin_p = _round_up(cin, LANE)
    cout_p = _round_up(cout, tn)
    ho = (h - 1) // stride + 1
    wo = (w - 1) // stride + 1
    m_total = n * ho * wo

    x_p = _pad_channels(x, cin_p)

    # conv1 (3x3, pad 1, stride) + BN1 batch statistics, one fused kernel.
    y1, s1, q1 = _conv1_call(
        _split_pad_input(x_p, stride),
        _pack_w3x3(params["w1"], cin_p, cout_p),
        _pad_vec(params["b1"], cout_p).reshape(1, cout_p),
        stride=stride, n_batch=n, Ho=ho, Wo=wo, tn=tn)
    scale1, shift1 = _fold_bn(s1, q1, _pad_vec(params["g1"], cout_p),
                              _pad_vec(params["be1"], cout_p), m_total)

    # conv2 (3x3, pad 1, stride 1): BN1-apply + ReLU + pad + im2col fused into
    # its input stage; emits BN2 batch statistics.
    y2, s2, q2 = _conv2_call(
        y1.reshape(n, ho, wo, cout_p), scale1, shift1,
        _pack_w3x3(params["w2"], cout_p, cout_p),
        _pad_vec(params["b2"], cout_p).reshape(1, cout_p), tn=tn)
    scale2, shift2 = _fold_bn(s2, q2, _pad_vec(params["g2"], cout_p),
                              _pad_vec(params["be2"], cout_p), m_total)

    # Epilogue: BN2-apply + shortcut (identity or fused 1x1 conv) + ReLU.
    if use_1x1conv:
        xs = x_p[:, ::stride, ::stride, :].reshape(n, ho * wo, cin_p)
        xs = xs.astype(jnp.bfloat16)
        w3 = jnp.transpose(params["w3"], (2, 3, 1, 0)).reshape(cin, cout)
        w3 = jnp.pad(w3, ((0, cin_p - cin), (0, cout_p - cout)))
        w3 = w3.astype(jnp.bfloat16)
        b3 = _pad_vec(params["b3"], cout_p).reshape(1, cout_p)
        out = _epilogue_call(y2, xs, scale2, shift2, w3=w3, b3=b3, tn=tn)
    else:
        assert stride == 1 and cin == cout
        xs = _pad_channels(x, cout_p).reshape(n, h * w, cout_p)
        out = _epilogue_call(y2, xs.astype(jnp.bfloat16), scale2, shift2, tn=tn)

    out = out.reshape(n, ho, wo, cout_p)[..., :cout]
    return jnp.transpose(out, (0, 3, 1, 2))   # back to NCHW


# --------------------------------------------------------------------------
# Pure-JAX f32 reference (for correctness check only)
# --------------------------------------------------------------------------
def _conv_ref(x_nhwc, w_oihw, b, stride, pad):
    w = jnp.transpose(w_oihw, (2, 3, 1, 0))  # HWIO
    out = lax.conv_general_dilated(
        x_nhwc, w, window_strides=(stride, stride),
        padding=((pad, pad), (pad, pad)),
        dimension_numbers=("NHWC", "HWIO", "NHWC"))
    return out + b


def _bn_ref(y, g, b):
    mean = jnp.mean(y, axis=(0, 1, 2), keepdims=True)
    var = jnp.mean(jnp.square(y - mean), axis=(0, 1, 2), keepdims=True)
    return (y - mean) * lax.rsqrt(var + EPS) * g + b


def base_residual_ref(x_nchw, params, *, stride, use_1x1conv):
    x = jnp.transpose(x_nchw, (0, 2, 3, 1)).astype(jnp.float32)
    y = _conv_ref(x, params["w1"], params["b1"], stride, 1)
    y = jnp.maximum(_bn_ref(y, params["g1"], params["be1"]), 0.0)
    y = _conv_ref(y, params["w2"], params["b2"], 1, 1)
    y = _bn_ref(y, params["g2"], params["be2"])
    if use_1x1conv:
        xs = _conv_ref(x, params["w3"], params["b3"], stride, 0)
    else:
        xs = x
    out = jnp.maximum(y + xs, 0.0)
    return jnp.transpose(out, (0, 3, 1, 2))


# --------------------------------------------------------------------------
def make_params(key, cin, cout, use_1x1conv):
    ks = jax.random.split(key, 8)
    p = {
        "w1": 0.1 * jax.random.normal(ks[0], (cout, cin, 3, 3), jnp.float32),
        "b1": 0.1 * jax.random.normal(ks[1], (cout,), jnp.float32),
        "w2": 0.1 * jax.random.normal(ks[2], (cout, cout, 3, 3), jnp.float32),
        "b2": 0.1 * jax.random.normal(ks[3], (cout,), jnp.float32),
        "g1": 1.0 + 0.1 * jax.random.normal(ks[4], (cout,), jnp.float32),
        "be1": 0.1 * jax.random.normal(ks[5], (cout,), jnp.float32),
        "g2": 1.0 + 0.05 * jax.random.normal(ks[6], (cout,), jnp.float32),
        "be2": 0.05 * jax.random.normal(ks[7], (cout,), jnp.float32),
    }
    if use_1x1conv:
        k1, k2 = jax.random.split(ks[0])
        p["w3"] = 0.1 * jax.random.normal(k1, (cout, cin, 1, 1), jnp.float32)
        p["b3"] = 0.1 * jax.random.normal(k2, (cout,), jnp.float32)
    return p


if __name__ == "__main__":
    key = jax.random.PRNGKey(0)
    kx, kp1, kp2 = jax.random.split(key, 3)

    # Config A: downsampling block (use_1x1conv=True, stride=2), Cin=4 -> Cout=8
    x = jax.random.uniform(kx, (2, 4, 16, 16), jnp.float32)  # NCHW like PyTorch
    params_a = make_params(kp1, 4, 8, use_1x1conv=True)
    out_a = base_residual_forward(x, params_a, stride=2, use_1x1conv=True)
    out_a = jax.block_until_ready(out_a)
    ref_a = base_residual_ref(x, params_a, stride=2, use_1x1conv=True)
    assert out_a.shape == (2, 8, 8, 8), out_a.shape
    # bf16 matmul operands / activation slabs -> bf16-level tolerance vs f32 ref
    assert jnp.allclose(out_a, ref_a, atol=6e-2, rtol=6e-2), float(
        jnp.max(jnp.abs(out_a - ref_a)))

    # Config B: identity-shortcut block (use_1x1conv=False, stride=1), Cin=Cout=4
    params_b = make_params(kp2, 4, 4, use_1x1conv=False)
    out_b = base_residual_forward(x, params_b, stride=1, use_1x1conv=False)
    out_b = jax.block_until_ready(out_b)
    ref_b = base_residual_ref(x, params_b, stride=1, use_1x1conv=False)
    assert out_b.shape == (2, 4, 16, 16), out_b.shape
    assert jnp.allclose(out_b, ref_b, atol=6e-2, rtol=6e-2), float(
        jnp.max(jnp.abs(out_b - ref_b)))

    print("KERNEL_OK")
</pallas_src>

<mosaic_0001>
module attributes {stable_mosaic.version = 11 : i64} {
  func.func @_conv1_kernel(%arg0: i32, %arg1: i32, %arg2: memref<4x9x9x128xf32, #tpu.memory_space<vmem>>, %arg3: memref<1152x128xbf16, #tpu.memory_space<vmem>>, %arg4: memref<1x128xf32, #tpu.memory_space<vmem>>, %arg5: memref<1x64x128xbf16, #tpu.memory_space<vmem>>, %arg6: memref<1x1x128xf32, #tpu.memory_space<vmem>>, %arg7: memref<1x1x128xf32, #tpu.memory_space<vmem>>, %arg8: memref<64x1152xbf16, #tpu.memory_space<vmem>>) attributes {dimension_semantics = [#tpu.dimension_semantics<parallel>, #tpu.dimension_semantics<arbitrary>], iteration_bounds = array<i64: 2, 1>, scalar_prefetch = 0 : i64, scratch_operands = 1 : i64, tpu.core_type = #tpu.core_type<tc>, window_params = [{transform_indices = @transform_0, window_bounds = array<i64: 4, 9, 9, 128>}, {transform_indices = @transform_1, window_bounds = array<i64: 1152, 128>}, {transform_indices = @transform_2, window_bounds = array<i64: 1, 128>}, {transform_indices = @transform_3, window_bounds = array<i64: 1, 64, 128>}, {transform_indices = @transform_4, window_bounds = array<i64: 1, 1, 128>}, {transform_indices = @transform_5, window_bounds = array<i64: 1, 1, 128>}]} {
    %c0_i32 = arith.constant 0 : i32
    %0 = arith.cmpi eq, %arg1, %c0_i32 : i32
    %1 = arith.extui %0 : i1 to i32
    %c0_i32_0 = arith.constant 0 : i32
    %2 = arith.cmpi ne, %1, %c0_i32_0 : i32
    scf.if %2 {
      %c0_17 = arith.constant 0 : index
      %c0_18 = arith.constant 0 : index
      %c0_19 = arith.constant 0 : index
      %c0_20 = arith.constant 0 : index
      %24 = vector.load %arg2[%c0_17, %c0_18, %c0_19, %c0_20] : memref<4x9x9x128xf32, #tpu.memory_space<vmem>>, vector<1x8x8x128xf32>
      %25 = vector.shape_cast %24 : vector<1x8x8x128xf32> to vector<8x8x128xf32>
      %26 = vector.shape_cast %25 : vector<8x8x128xf32> to vector<64x128xf32>
      %27 = arith.truncf %26 : vector<64x128xf32> to vector<64x128xbf16>
      %c0_21 = arith.constant 0 : index
      %c0_22 = arith.constant 0 : index
      %28 = vector.load %arg8[%c0_21, %c0_22] : memref<64x1152xbf16, #tpu.memory_space<vmem>>, vector<64x128xbf16>
      tpu.vector_store %arg8[%c0_21, %c0_22], %27 {strides = array<i32>} : memref<64x1152xbf16, #tpu.memory_space<vmem>>, vector<64x128xbf16>,
      %c1 = arith.constant 1 : index
      %c0_23 = arith.constant 0 : index
      %c0_24 = arith.constant 0 : index
      %c0_25 = arith.constant 0 : index
      %29 = vector.load %arg2[%c1, %c0_23, %c0_24, %c0_25] : memref<4x9x9x128xf32, #tpu.memory_space<vmem>>, vector<1x8x8x128xf32>
      %30 = vector.shape_cast %29 : vector<1x8x8x128xf32> to vector<8x8x128xf32>
      %31 = vector.shape_cast %30 : vector<8x8x128xf32> to vector<64x128xf32>
      %32 = arith.truncf %31 : vector<64x128xf32> to vector<64x128xbf16>
      %c0_26 = arith.constant 0 : index
      %c128 = arith.constant 128 : index
      %33 = vector.load %arg8[%c0_26, %c128] : memref<64x1152xbf16, #tpu.memory_space<vmem>>, vector<64x128xbf16>
      tpu.vector_store %arg8[%c0_26, %c128], %32 {strides = array<i32>} : memref<64x1152xbf16, #tpu.memory_space<vmem>>, vector<64x128xbf16>,
      %c0_27 = arith.constant 0 : index
      %c0_28 = arith.constant 0 : index
      %c1_29 = arith.constant 1 : index
      %c0_30 = arith.constant 0 : index
      %34 = vector.load %arg2[%c0_27, %c0_28, %c1_29, %c0_30] : memref<4x9x9x128xf32, #tpu.memory_space<vmem>>, vector<1x8x8x128xf32>
      %35 = vector.shape_cast %34 : vector<1x8x8x128xf32> to vector<8x8x128xf32>
      %36 = vector.shape_cast %35 : vector<8x8x128xf32> to vector<64x128xf32>
      %37 = arith.truncf %36 : vector<64x128xf32> to vector<64x128xbf16>
      %c0_31 = arith.constant 0 : index
      %c256 = arith.constant 256 : index
      %38 = vector.load %arg8[%c0_31, %c256] : memref<64x1152xbf16, #tpu.memory_space<vmem>>, vector<64x128xbf16>
      tpu.vector_store %arg8[%c0_31, %c256], %37 {strides = array<i32>} : memref<64x1152xbf16, #tpu.memory_space<vmem>>, vector<64x128xbf16>,
      %c2 = arith.constant 2 : index
      %c0_32 = arith.constant 0 : index
      %c0_33 = arith.constant 0 : index
      %c0_34 = arith.constant 0 : index
      %39 = vector.load %arg2[%c2, %c0_32, %c0_33, %c0_34] : memref<4x9x9x128xf32, #tpu.memory_space<vmem>>, vector<1x8x8x128xf32>
      %40 = vector.shape_cast %39 : vector<1x8x8x128xf32> to vector<8x8x128xf32>
      %41 = vector.shape_cast %40 : vector<8x8x128xf32> to vector<64x128xf32>
      %42 = arith.truncf %41 : vector<64x128xf32> to vector<64x128xbf16>
      %c0_35 = arith.constant 0 : index
      %c384 = arith.constant 384 : index
      %43 = vector.load %arg8[%c0_35, %c384] : memref<64x1152xbf16, #tpu.memory_space<vmem>>, vector<64x128xbf16>
      tpu.vector_store %arg8[%c0_35, %c384], %42 {strides = array<i32>} : memref<64x1152xbf16, #tpu.memory_space<vmem>>, vector<64x128xbf16>,
      %c3 = arith.constant 3 : index
      %c0_36 = arith.constant 0 : index
      %c0_37 = arith.constant 0 : index
      %c0_38 = arith.constant 0 : index
      %44 = vector.load %arg2[%c3, %c0_36, %c0_37, %c0_38] : memref<4x9x9x128xf32, #tpu.memory_space<vmem>>, vector<1x8x8x128xf32>
      %45 = vector.shape_cast %44 : vector<1x8x8x128xf32> to vector<8x8x128xf32>
      %46 = vector.shape_cast %45 : vector<8x8x128xf32> to vector<64x128xf32>
      %47 = arith.truncf %46 : vector<64x128xf32> to vector<64x128xbf16>
      %c0_39 = arith.constant 0 : index
      %c512 = arith.constant 512 : index
      %48 = vector.load %arg8[%c0_39, %c512] : memref<64x1152xbf16, #tpu.memory_space<vmem>>, vector<64x128xbf16>
      tpu.vector_store %arg8[%c0_39, %c512], %47 {strides = array<i32>} : memref<64x1152xbf16, #tpu.memory_space<vmem>>, vector<64x128xbf16>,
      %c2_40 = arith.constant 2 : index
      %c0_41 = arith.constant 0 : index
      %c1_42 = arith.constant 1 : index
      %c0_43 = arith.constant 0 : index
      %49 = vector.load %arg2[%c2_40, %c0_41, %c1_42, %c0_43] : memref<4x9x9x128xf32, #tpu.memory_space<vmem>>, vector<1x8x8x128xf32>
      %50 = vector.shape_cast %49 : vector<1x8x8x128xf32> to vector<8x8x128xf32>
      %51 = vector.shape_cast %50 : vector<8x8x128xf32> to vector<64x128xf32>
      %52 = arith.truncf %51 : vector<64x128xf32> to vector<64x128xbf16>
      %c0_44 = arith.constant 0 : index
      %c640 = arith.constant 640 : index
      %53 = vector.load %arg8[%c0_44, %c640] : memref<64x1152xbf16, #tpu.memory_space<vmem>>, vector<64x128xbf16>
      tpu.vector_store %arg8[%c0_44, %c640], %52 {strides = array<i32>} : memref<64x1152xbf16, #tpu.memory_space<vmem>>, vector<64x128xbf16>,
      %c0_45 = arith.constant 0 : index
      %c1_46 = arith.constant 1 : index
      %c0_47 = arith.constant 0 : index
      %c0_48 = arith.constant 0 : index
      %54 = vector.load %arg2[%c0_45, %c1_46, %c0_47, %c0_48] : memref<4x9x9x128xf32, #tpu.memory_space<vmem>>, vector<1x8x8x128xf32>
      %55 = vector.shape_cast %54 : vector<1x8x8x128xf32> to vector<8x8x128xf32>
      %56 = vector.shape_cast %55 : vector<8x8x128xf32> to vector<64x128xf32>
      %57 = arith.truncf %56 : vector<64x128xf32> to vector<64x128xbf16>
      %c0_49 = arith.constant 0 : index
      %c768 = arith.constant 768 : index
      %58 = vector.load %arg8[%c0_49, %c768] : memref<64x1152xbf16, #tpu.memory_space<vmem>>, vector<64x128xbf16>
      tpu.vector_store %arg8[%c0_49, %c768], %57 {strides = array<i32>} : memref<64x1152xbf16, #tpu.memory_space<vmem>>, vector<64x128xbf16>,
      %c1_50 = arith.constant 1 : index
      %c1_51 = arith.constant 1 : index
      %c0_52 = arith.constant 0 : index
      %c0_53 = arith.constant 0 : index
      %59 = vector.load %arg2[%c1_50, %c1_51, %c0_52, %c0_53] : memref<4x9x9x128xf32, #tpu.memory_space<vmem>>, vector<1x8x8x128xf32>
      %60 = vector.shape_cast %59 : vector<1x8x8x128xf32> to vector<8x8x128xf32>
      %61 = vector.shape_cast %60 : vector<8x8x128xf32> to vector<64x128xf32>
      %62 = arith.truncf %61 : vector<64x128xf32> to vector<64x128xbf16>
      %c0_54 = arith.constant 0 : index
      %c896 = arith.constant 896 : index
      %63 = vector.load %arg8[%c0_54, %c896] : memref<64x1152xbf16, #tpu.memory_space<vmem>>, vector<64x128xbf16>
      tpu.vector_store %arg8[%c0_54, %c896], %62 {strides = array<i32>} : memref<64x1152xbf16, #tpu.memory_space<vmem>>, vector<64x128xbf16>,
      %c0_55 = arith.constant 0 : index
      %c1_56 = arith.constant 1 : index
      %c1_57 = arith.constant 1 : index
      %c0_58 = arith.constant 0 : index
      %64 = vector.load %arg2[%c0_55, %c1_56, %c1_57, %c0_58] : memref<4x9x9x128xf32, #tpu.memory_space<vmem>>, vector<1x8x8x128xf32>
      %65 = vector.shape_cast %64 : vector<1x8x8x128xf32> to vector<8x8x128xf32>
      %66 = vector.shape_cast %65 : vector<8x8x128xf32> to vector<64x128xf32>
      %67 = arith.truncf %66 : vector<64x128xf32> to vector<64x128xbf16>
      %c0_59 = arith.constant 0 : index
      %c1024 = arith.constant 1024 : index
      %68 = vector.load %arg8[%c0_59, %c1024] : memref<64x1152xbf16, #tpu.memory_space<vmem>>, vector<64x128xbf16>
      tpu.vector_store %arg8[%c0_59, %c1024], %67 {strides = array<i32>} : memref<64x1152xbf16, #tpu.memory_space<vmem>>, vector<64x128xbf16>,
    } else {
    }
    %c0 = arith.constant 0 : index
    %c0_1 = arith.constant 0 : index
    %3 = vector.load %arg8[%c0, %c0_1] : memref<64x1152xbf16, #tpu.memory_space<vmem>>, vector<64x1152xbf16>
    %c0_2 = arith.constant 0 : index
    %c0_3 = arith.constant 0 : index
    %4 = vector.load %arg3[%c0_2, %c0_3] : memref<1152x128xbf16, #tpu.memory_space<vmem>>, vector<1152x128xbf16>
    %cst = arith.constant dense<0.000000e+00> : vector<64x128xf32>
    %5 = tpu.matmul %3, %4, %cst {dimension_numbers = #tpu.dot_dimension_numbers<[1], [0], [0], [1], [0, 0, 1, 1], [], []>} : vector<64x1152xbf16>, vector<1152x128xbf16>, vector<64x128xf32> -> vector<64x128xf32>
    %c0_4 = arith.constant 0 : index
    %c0_5 = arith.constant 0 : index
    %6 = vector.load %arg4[%c0_4, %c0_5] : memref<1x128xf32, #tpu.memory_space<vmem>>, vector<1x128xf32>
    %7 = vector.broadcast %6 : vector<1x128xf32> to vector<64x128xf32>
    %8 = arith.addf %5, %7 : vector<64x128xf32>
    %cst_6 = arith.constant dense<0.000000e+00> : vector<128xf32>
    %9 = vector.multi_reduction <add>, %8, %cst_6 [0] : vector<64x128xf32> to vector<128xf32>
    %10 = vector.shape_cast %9 : vector<128xf32> to vector<1x128xf32>
    %c0_7 = arith.constant 0 : index
    %c0_8 = arith.constant 0 : index
    %c0_9 = arith.constant 0 : index
    %11 = vector.load %arg6[%c0_7, %c0_8, %c0_9] : memref<1x1x128xf32, #tpu.memory_space<vmem>>, vector<1x1x128xf32>
    %12 = vector.shape_cast %11 : vector<1x1x128xf32> to vector<1x128xf32>
    %13 = vector.shape_cast %10 : vector<1x128xf32> to vector<1x1x128xf32>
    tpu.vector_store %arg6[%c0_7, %c0_8, %c0_9], %13 {strides = array<i32>} : memref<1x1x128xf32, #tpu.memory_space<vmem>>, vector<1x1x128xf32>,
    %14 = arith.mulf %8, %8 : vector<64x128xf32>
    %cst_10 = arith.constant dense<0.000000e+00> : vector<128xf32>
    %15 = vector.multi_reduction <add>, %14, %cst_10 [0] : vector<64x128xf32> to vector<128xf32>
    %16 = vector.shape_cast %15 : vector<128xf32> to vector<1x128xf32>
    %c0_11 = arith.constant 0 : index
    %c0_12 = arith.constant 0 : index
    %c0_13 = arith.constant 0 : index
    %17 = vector.load %arg7[%c0_11, %c0_12, %c0_13] : memref<1x1x128xf32, #tpu.memory_space<vmem>>, vector<1x1x128xf32>
    %18 = vector.shape_cast %17 : vector<1x1x128xf32> to vector<1x128xf32>
    %19 = vector.shape_cast %16 : vector<1x128xf32> to vector<1x1x128xf32>
    tpu.vector_store %arg7[%c0_11, %c0_12, %c0_13], %19 {strides = array<i32>} : memref<1x1x128xf32, #tpu.memory_space<vmem>>, vector<1x1x128xf32>,
    %20 = arith.truncf %8 : vector<64x128xf32> to vector<64x128xbf16>
    %c0_14 = arith.constant 0 : index
    %c0_15 = arith.constant 0 : index
    %c0_16 = arith.constant 0 : index
    %21 = vector.load %arg5[%c0_14, %c0_15, %c0_16] : memref<1x64x128xbf16, #tpu.memory_space<vmem>>, vector<1x64x128xbf16>
    %22 = vector.shape_cast %21 : vector<1x64x128xbf16> to vector<64x128xbf16>
    %23 = vector.shape_cast %20 : vector<64x128xbf16> to vector<1x64x128xbf16>
    tpu.vector_store %arg5[%c0_14, %c0_15, %c0_16], %23 {strides = array<i32>} : memref<1x64x128xbf16, #tpu.memory_space<vmem>>, vector<1x64x128xbf16>,
    return
  }
  func.func @transform_0(%arg0: i32, %arg1: i32) -> (i32, i32, i32, i32) {
    %c0_i32 = arith.constant 0 : i32
    %c0_i32_0 = arith.constant 0 : i32
    %c0_i32_1 = arith.constant 0 : i32
    %c0_i32_2 = arith.constant 0 : i32
    return %arg0, %c0_i32, %c0_i32_0, %c0_i32_1 : i32, i32, i32, i32
  }
  func.func @transform_1(%arg0: i32, %arg1: i32) -> (i32, i32) {
    %c0_i32 = arith.constant 0 : i32
    %c0_i32_0 = arith.constant 0 : i32
    return %c0_i32, %arg1 : i32, i32
  }
  func.func @transform_2(%arg0: i32, %arg1: i32) -> (i32, i32) {
    %c0_i32 = arith.constant 0 : i32
    %c0_i32_0 = arith.constant 0 : i32
    return %c0_i32, %arg1 : i32, i32
  }
  func.func @transform_3(%arg0: i32, %arg1: i32) -> (i32, i32, i32) {
    %c0_i32 = arith.constant 0 : i32
    %c0_i32_0 = arith.constant 0 : i32
    return %arg0, %c0_i32, %arg1 : i32, i32, i32
  }
  func.func @transform_4(%arg0: i32, %arg1: i32) -> (i32, i32, i32) {
    %c0_i32 = arith.constant 0 : i32
    %c0_i32_0 = arith.constant 0 : i32
    return %arg0, %c0_i32, %arg1 : i32, i32, i32
  }
  func.func @transform_5(%arg0: i32, %arg1: i32) -> (i32, i32, i32) {
    %c0_i32 = arith.constant 0 : i32
    %c0_i32_0 = arith.constant 0 : i32
    return %arg0, %c0_i32, %arg1 : i32, i32, i32
  }
}

module attributes {stable_mosaic.version = 11 : i64} {
  func.func @_conv2_kernel(%arg0: i32, %arg1: i32, %arg2: memref<1x8x8x128xbf16, #tpu.memory_space<vmem>>, %arg3: memref<1x128xf32, #tpu.memory_space<vmem>>, %arg4: memref<1x128xf32, #tpu.memory_space<vmem>>, %arg5: memref<1152x128xbf16, #tpu.memory_space<vmem>>, %arg6: memref<1x128xf32, #tpu.memory_space<vmem>>, %arg7: memref<1x64x128xbf16, #tpu.memory_space<vmem>>, %arg8: memref<1x1x128xf32, #tpu.memory_space<vmem>>, %arg9: memref<1x1x128xf32, #tpu.memory_space<vmem>>, %arg10: memref<10x16x128xf32, #tpu.memory_space<vmem>>, %arg11: memref<64x1152xbf16, #tpu.memory_space<vmem>>) attributes {dimension_semantics = [#tpu.dimension_semantics<parallel>, #tpu.dimension_semantics<arbitrary>], iteration_bounds = array<i64: 2, 1>, scalar_prefetch = 0 : i64, scratch_operands = 2 : i64, tpu.core_type = #tpu.core_type<tc>, window_params = [{transform_indices = @transform_0, window_bounds = array<i64: 1, 8, 8, 128>}, {pipeline_mode = #tpu.pipeline_mode<synchronous>, transform_indices = @transform_1, window_bounds = array<i64: 1, 128>}, {pipeline_mode = #tpu.pipeline_mode<synchronous>, transform_indices = @transform_2, window_bounds = array<i64: 1, 128>}, {transform_indices = @transform_3, window_bounds = array<i64: 1152, 128>}, {transform_indices = @transform_4, window_bounds = array<i64: 1, 128>}, {transform_indices = @transform_5, window_bounds = array<i64: 1, 64, 128>}, {transform_indices = @transform_6, window_bounds = array<i64: 1, 1, 128>}, {transform_indices = @transform_7, window_bounds = array<i64: 1, 1, 128>}]} {
    %c0_i32 = arith.constant 0 : i32
    %0 = arith.cmpi eq, %arg1, %c0_i32 : i32
    %1 = arith.extui %0 : i1 to i32
    %c0_i32_0 = arith.constant 0 : i32
    %2 = arith.cmpi ne, %1, %c0_i32_0 : i32
    scf.if %2 {
      %c0_17 = arith.constant 0 : index
      %c0_18 = arith.constant 0 : index
      %24 = vector.load %arg3[%c0_17, %c0_18] : memref<1x128xf32, #tpu.memory_space<vmem>>, vector<1x128xf32>
      %25 = vector.shape_cast %24 : vector<1x128xf32> to vector<1x1x128xf32>
      %c0_19 = arith.constant 0 : index
      %c0_20 = arith.constant 0 : index
      %26 = vector.load %arg4[%c0_19, %c0_20] : memref<1x128xf32, #tpu.memory_space<vmem>>, vector<1x128xf32>
      %27 = vector.shape_cast %26 : vector<1x128xf32> to vector<1x1x128xf32>
      %c0_21 = arith.constant 0 : index
      %c0_22 = arith.constant 0 : index
      %c0_23 = arith.constant 0 : index
      %c0_24 = arith.constant 0 : index
      %28 = vector.load %arg2[%c0_21, %c0_22, %c0_23, %c0_24] : memref<1x8x8x128xbf16, #tpu.memory_space<vmem>>, vector<1x8x8x128xbf16>
      %29 = vector.shape_cast %28 : vector<1x8x8x128xbf16> to vector<8x8x128xbf16>
      %30 = arith.extf %29 : vector<8x8x128xbf16> to vector<8x8x128xf32>
      %31 = vector.broadcast %25 : vector<1x1x128xf32> to vector<8x8x128xf32>
      %32 = arith.mulf %30, %31 : vector<8x8x128xf32>
      %33 = vector.broadcast %27 : vector<1x1x128xf32> to vector<8x8x128xf32>
      %34 = arith.addf %32, %33 : vector<8x8x128xf32>
      %cst_25 = arith.constant 0.000000e+00 : f32
      %35 = vector.broadcast %cst_25 : f32 to vector<8x8x128xf32>
      %36 = arith.maximumf %34, %35 : vector<8x8x128xf32>
      %cst_26 = arith.constant 0.000000e+00 : f32
      %37 = vector.broadcast %cst_26 : f32 to vector<10x16x128xf32>
      %c0_27 = arith.constant 0 : index
      %c0_28 = arith.constant 0 : index
      %c0_29 = arith.constant 0 : index
      %38 = vector.load %arg10[%c0_27, %c0_28, %c0_29] : memref<10x16x128xf32, #tpu.memory_space<vmem>>, vector<10x16x128xf32>
      tpu.vector_store %arg10[%c0_27, %c0_28, %c0_29], %37 {strides = array<i32>} : memref<10x16x128xf32, #tpu.memory_space<vmem>>, vector<10x16x128xf32>,
      %c1 = arith.constant 1 : index
      %c1_30 = arith.constant 1 : index
      %c0_31 = arith.constant 0 : index
      %39 = vector.load %arg10[%c1, %c1_30, %c0_31] : memref<10x16x128xf32, #tpu.memory_space<vmem>>, vector<8x8x128xf32>
      tpu.vector_store %arg10[%c1, %c1_30, %c0_31], %36 {strides = array<i32>} : memref<10x16x128xf32, #tpu.memory_space<vmem>>, vector<8x8x128xf32>,
      %c0_32 = arith.constant 0 : index
      %c0_33 = arith.constant 0 : index
      %c0_34 = arith.constant 0 : index
      %40 = vector.load %arg10[%c0_32, %c0_33, %c0_34] : memref<10x16x128xf32, #tpu.memory_space<vmem>>, vector<8x8x128xf32>
      %41 = vector.shape_cast %40 : vector<8x8x128xf32> to vector<64x128xf32>
      %42 = arith.truncf %41 : vector<64x128xf32> to vector<64x128xbf16>
      %c0_35 = arith.constant 0 : index
      %c0_36 = arith.constant 0 : index
      %43 = vector.load %arg11[%c0_35, %c0_36] : memref<64x1152xbf16, #tpu.memory_space<vmem>>, vector<64x128xbf16>
      tpu.vector_store %arg11[%c0_35, %c0_36], %42 {strides = array<i32>} : memref<64x1152xbf16, #tpu.memory_space<vmem>>, vector<64x128xbf16>,
      %c0_37 = arith.constant 0 : index
      %c1_38 = arith.constant 1 : index
      %c0_39 = arith.constant 0 : index
      %44 = vector.load %arg10[%c0_37, %c1_38, %c0_39] : memref<10x16x128xf32, #tpu.memory_space<vmem>>, vector<8x8x128xf32>
      %45 = vector.shape_cast %44 : vector<8x8x128xf32> to vector<64x128xf32>
      %46 = arith.truncf %45 : vector<64x128xf32> to vector<64x128xbf16>
      %c0_40 = arith.constant 0 : index
      %c128 = arith.constant 128 : index
      %47 = vector.load %arg11[%c0_40, %c128] : memref<64x1152xbf16, #tpu.memory_space<vmem>>, vector<64x128xbf16>
      tpu.vector_store %arg11[%c0_40, %c128], %46 {strides = array<i32>} : memref<64x1152xbf16, #tpu.memory_space<vmem>>, vector<64x128xbf16>,
      %c0_41 = arith.constant 0 : index
      %c2 = arith.constant 2 : index
      %c0_42 = arith.constant 0 : index
      %48 = vector.load %arg10[%c0_41, %c2, %c0_42] : memref<10x16x128xf32, #tpu.memory_space<vmem>>, vector<8x8x128xf32>
      %49 = vector.shape_cast %48 : vector<8x8x128xf32> to vector<64x128xf32>
      %50 = arith.truncf %49 : vector<64x128xf32> to vector<64x128xbf16>
      %c0_43 = arith.constant 0 : index
      %c256 = arith.constant 256 : index
      %51 = vector.load %arg11[%c0_43, %c256] : memref<64x1152xbf16, #tpu.memory_space<vmem>>, vector<64x128xbf16>
      tpu.vector_store %arg11[%c0_43, %c256], %50 {strides = array<i32>} : memref<64x1152xbf16, #tpu.memory_space<vmem>>, vector<64x128xbf16>,
      %c1_44 = arith.constant 1 : index
      %c0_45 = arith.constant 0 : index
      %c0_46 = arith.constant 0 : index
      %52 = vector.load %arg10[%c1_44, %c0_45, %c0_46] : memref<10x16x128xf32, #tpu.memory_space<vmem>>, vector<8x8x128xf32>
      %53 = vector.shape_cast %52 : vector<8x8x128xf32> to vector<64x128xf32>
      %54 = arith.truncf %53 : vector<64x128xf32> to vector<64x128xbf16>
      %c0_47 = arith.constant 0 : index
      %c384 = arith.constant 384 : index
      %55 = vector.load %arg11[%c0_47, %c384] : memref<64x1152xbf16, #tpu.memory_space<vmem>>, vector<64x128xbf16>
      tpu.vector_store %arg11[%c0_47, %c384], %54 {strides = array<i32>} : memref<64x1152xbf16, #tpu.memory_space<vmem>>, vector<64x128xbf16>,
      %c1_48 = arith.constant 1 : index
      %c1_49 = arith.constant 1 : index
      %c0_50 = arith.constant 0 : index
      %56 = vector.load %arg10[%c1_48, %c1_49, %c0_50] : memref<10x16x128xf32, #tpu.memory_space<vmem>>, vector<8x8x128xf32>
      %57 = vector.shape_cast %56 : vector<8x8x128xf32> to vector<64x128xf32>
      %58 = arith.truncf %57 : vector<64x128xf32> to vector<64x128xbf16>
      %c0_51 = arith.constant 0 : index
      %c512 = arith.constant 512 : index
      %59 = vector.load %arg11[%c0_51, %c512] : memref<64x1152xbf16, #tpu.memory_space<vmem>>, vector<64x128xbf16>
      tpu.vector_store %arg11[%c0_51, %c512], %58 {strides = array<i32>} : memref<64x1152xbf16, #tpu.memory_space<vmem>>, vector<64x128xbf16>,
      %c1_52 = arith.constant 1 : index
      %c2_53 = arith.constant 2 : index
      %c0_54 = arith.constant 0 : index
      %60 = vector.load %arg10[%c1_52, %c2_53, %c0_54] : memref<10x16x128xf32, #tpu.memory_space<vmem>>, vector<8x8x128xf32>
      %61 = vector.shape_cast %60 : vector<8x8x128xf32> to vector<64x128xf32>
      %62 = arith.truncf %61 : vector<64x128xf32> to vector<64x128xbf16>
      %c0_55 = arith.constant 0 : index
      %c640 = arith.constant 640 : index
      %63 = vector.load %arg11[%c0_55, %c640] : memref<64x1152xbf16, #tpu.memory_space<vmem>>, vector<64x128xbf16>
      tpu.vector_store %arg11[%c0_55, %c640], %62 {strides = array<i32>} : memref<64x1152xbf16, #tpu.memory_space<vmem>>, vector<64x128xbf16>,
      %c2_56 = arith.constant 2 : index
      %c0_57 = arith.constant 0 : index
      %c0_58 = arith.constant 0 : index
      %64 = vector.load %arg10[%c2_56, %c0_57, %c0_58] : memref<10x16x128xf32, #tpu.memory_space<vmem>>, vector<8x8x128xf32>
      %65 = vector.shape_cast %64 : vector<8x8x128xf32> to vector<64x128xf32>
      %66 = arith.truncf %65 : vector<64x128xf32> to vector<64x128xbf16>
      %c0_59 = arith.constant 0 : index
      %c768 = arith.constant 768 : index
      %67 = vector.load %arg11[%c0_59, %c768] : memref<64x1152xbf16, #tpu.memory_space<vmem>>, vector<64x128xbf16>
      tpu.vector_store %arg11[%c0_59, %c768], %66 {strides = array<i32>} : memref<64x1152xbf16, #tpu.memory_space<vmem>>, vector<64x128xbf16>,
      %c2_60 = arith.constant 2 : index
      %c1_61 = arith.constant 1 : index
      %c0_62 = arith.constant 0 : index
      %68 = vector.load %arg10[%c2_60, %c1_61, %c0_62] : memref<10x16x128xf32, #tpu.memory_space<vmem>>, vector<8x8x128xf32>
      %69 = vector.shape_cast %68 : vector<8x8x128xf32> to vector<64x128xf32>
      %70 = arith.truncf %69 : vector<64x128xf32> to vector<64x128xbf16>
      %c0_63 = arith.constant 0 : index
      %c896 = arith.constant 896 : index
      %71 = vector.load %arg11[%c0_63, %c896] : memref<64x1152xbf16, #tpu.memory_space<vmem>>, vector<64x128xbf16>
      tpu.vector_store %arg11[%c0_63, %c896], %70 {strides = array<i32>} : memref<64x1152xbf16, #tpu.memory_space<vmem>>, vector<64x128xbf16>,
      %c2_64 = arith.constant 2 : index
      %c2_65 = arith.constant 2 : index
      %c0_66 = arith.constant 0 : index
      %72 = vector.load %arg10[%c2_64, %c2_65, %c0_66] : memref<10x16x128xf32, #tpu.memory_space<vmem>>, vector<8x8x128xf32>
      %73 = vector.shape_cast %72 : vector<8x8x128xf32> to vector<64x128xf32>
      %74 = arith.truncf %73 : vector<64x128xf32> to vector<64x128xbf16>
      %c0_67 = arith.constant 0 : index
      %c1024 = arith.constant 1024 : index
      %75 = vector.load %arg11[%c0_67, %c1024] : memref<64x1152xbf16, #tpu.memory_space<vmem>>, vector<64x128xbf16>
      tpu.vector_store %arg11[%c0_67, %c1024], %74 {strides = array<i32>} : memref<64x1152xbf16, #tpu.memory_space<vmem>>, vector<64x128xbf16>,
    } else {
    }
    %c0 = arith.constant 0 : index
    %c0_1 = arith.constant 0 : index
    %3 = vector.load %arg11[%c0, %c0_1] : memref<64x1152xbf16, #tpu.memory_space<vmem>>, vector<64x1152xbf16>
    %c0_2 = arith.constant 0 : index
    %c0_3 = arith.constant 0 : index
    %4 = vector.load %arg5[%c0_2, %c0_3] : memref<1152x128xbf16, #tpu.memory_space<vmem>>, vector<1152x128xbf16>
    %cst = arith.constant dense<0.000000e+00> : vector<64x128xf32>
    %5 = tpu.matmul %3, %4, %cst {dimension_numbers = #tpu.dot_dimension_numbers<[1], [0], [0], [1], [0, 0, 1, 1], [], []>} : vector<64x1152xbf16>, vector<1152x128xbf16>, vector<64x128xf32> -> vector<64x128xf32>
    %c0_4 = arith.constant 0 : index
    %c0_5 = arith.constant 0 : index
    %6 = vector.load %arg6[%c0_4, %c0_5] : memref<1x128xf32, #tpu.memory_space<vmem>>, vector<1x128xf32>
    %7 = vector.broadcast %6 : vector<1x128xf32> to vector<64x128xf32>
    %8 = arith.addf %5, %7 : vector<64x128xf32>
    %cst_6 = arith.constant dense<0.000000e+00> : vector<128xf32>
    %9 = vector.multi_reduction <add>, %8, %cst_6 [0] : vector<64x128xf32> to vector<128xf32>
    %10 = vector.shape_cast %9 : vector<128xf32> to vector<1x128xf32>
    %c0_7 = arith.constant 0 : index
    %c0_8 = arith.constant 0 : index
    %c0_9 = arith.constant 0 : index
    %11 = vector.load %arg8[%c0_7, %c0_8, %c0_9] : memref<1x1x128xf32, #tpu.memory_space<vmem>>, vector<1x1x128xf32>
    %12 = vector.shape_cast %11 : vector<1x1x128xf32> to vector<1x128xf32>
    %13 = vector.shape_cast %10 : vector<1x128xf32> to vector<1x1x128xf32>
    tpu.vector_store %arg8[%c0_7, %c0_8, %c0_9], %13 {strides = array<i32>} : memref<1x1x128xf32, #tpu.memory_space<vmem>>, vector<1x1x128xf32>,
    %14 = arith.mulf %8, %8 : vector<64x128xf32>
    %cst_10 = arith.constant dense<0.000000e+00> : vector<128xf32>
    %15 = vector.multi_reduction <add>, %14, %cst_10 [0] : vector<64x128xf32> to vector<128xf32>
    %16 = vector.shape_cast %15 : vector<128xf32> to vector<1x128xf32>
    %c0_11 = arith.constant 0 : index
    %c0_12 = arith.constant 0 : index
    %c0_13 = arith.constant 0 : index
    %17 = vector.load %arg9[%c0_11, %c0_12, %c0_13] : memref<1x1x128xf32, #tpu.memory_space<vmem>>, vector<1x1x128xf32>
    %18 = vector.shape_cast %17 : vector<1x1x128xf32> to vector<1x128xf32>
    %19 = vector.shape_cast %16 : vector<1x128xf32> to vector<1x1x128xf32>
    tpu.vector_store %arg9[%c0_11, %c0_12, %c0_13], %19 {strides = array<i32>} : memref<1x1x128xf32, #tpu.memory_space<vmem>>, vector<1x1x128xf32>,
    %20 = arith.truncf %8 : vector<64x128xf32> to vector<64x128xbf16>
    %c0_14 = arith.constant 0 : index
    %c0_15 = arith.constant 0 : index
    %c0_16 = arith.constant 0 : index
    %21 = vector.load %arg7[%c0_14, %c0_15, %c0_16] : memref<1x64x128xbf16, #tpu.memory_space<vmem>>, vector<1x64x128xbf16>
    %22 = vector.shape_cast %21 : vector<1x64x128xbf16> to vector<64x128xbf16>
    %23 = vector.shape_cast %20 : vector<64x128xbf16> to vector<1x64x128xbf16>
    tpu.vector_store %arg7[%c0_14, %c0_15, %c0_16], %23 {strides = array<i32>} : memref<1x64x128xbf16, #tpu.memory_space<vmem>>, vector<1x64x128xbf16>,
    return
  }
  func.func @transform_0(%arg0: i32, %arg1: i32) -> (i32, i32, i32, i32) {
    %c0_i32 = arith.constant 0 : i32
    %c0_i32_0 = arith.constant 0 : i32
    %c0_i32_1 = arith.constant 0 : i32
    %c0_i32_2 = arith.constant 0 : i32
    return %arg0, %c0_i32, %c0_i32_0, %c0_i32_1 : i32, i32, i32, i32
  }
  func.func @transform_1(%arg0: i32, %arg1: i32) -> (i32, i32) {
    %c0_i32 = arith.constant 0 : i32
    %c0_i32_0 = arith.constant 0 : i32
    %c0_i32_1 = arith.constant 0 : i32
    return %c0_i32, %c0_i32_0 : i32, i32
  }
  func.func @transform_2(%arg0: i32, %arg1: i32) -> (i32, i32) {
    %c0_i32 = arith.constant 0 : i32
    %c0_i32_0 = arith.constant 0 : i32
    %c0_i32_1 = arith.constant 0 : i32
    return %c0_i32, %c0_i32_0 : i32, i32
  }
  func.func @transform_3(%arg0: i32, %arg1: i32) -> (i32, i32) {
    %c0_i32 = arith.constant 0 : i32
    %c0_i32_0 = arith.constant 0 : i32
    return %c0_i32, %arg1 : i32, i32
  }
  func.func @transform_4(%arg0: i32, %arg1: i32) -> (i32, i32) {
    %c0_i32 = arith.constant 0 : i32
    %c0_i32_0 = arith.constant 0 : i32
    return %c0_i32, %arg1 : i32, i32
  }
  func.func @transform_5(%arg0: i32, %arg1: i32) -> (i32, i32, i32) {
    %c0_i32 = arith.constant 0 : i32
    %c0_i32_0 = arith.constant 0 : i32
    return %arg0, %c0_i32, %arg1 : i32, i32, i32
  }
  func.func @transform_6(%arg0: i32, %arg1: i32) -> (i32, i32, i32) {
    %c0_i32 = arith.constant 0 : i32
    %c0_i32_0 = arith.constant 0 : i32
    return %arg0, %c0_i32, %arg1 : i32, i32, i32
  }
  func.func @transform_7(%arg0: i32, %arg1: i32) -> (i32, i32, i32) {
    %c0_i32 = arith.constant 0 : i32
    %c0_i32_0 = arith.constant 0 : i32
    return %arg0, %c0_i32, %arg1 : i32, i32, i32
  }
}

module attributes {stable_mosaic.version = 11 : i64} {
  func.func @_bn_proj_add_relu_kernel(%arg0: i32, %arg1: i32, %arg2: i32, %arg3: memref<1x64x128xbf16, #tpu.memory_space<vmem>>, %arg4: memref<1x64x128xbf16, #tpu.memory_space<vmem>>, %arg5: memref<128x128xbf16, #tpu.memory_space<vmem>>, %arg6: memref<1x128xf32, #tpu.memory_space<vmem>>, %arg7: memref<1x128xf32, #tpu.memory_space<vmem>>, %arg8: memref<1x128xf32, #tpu.memory_space<vmem>>, %arg9: memref<1x64x128xf32, #tpu.memory_space<vmem>>) attributes {dimension_semantics = [#tpu.dimension_semantics<parallel>, #tpu.dimension_semantics<parallel>, #tpu.dimension_semantics<parallel>], iteration_bounds = array<i64: 2, 1, 1>, scalar_prefetch = 0 : i64, scratch_operands = 0 : i64, tpu.core_type = #tpu.core_type<tc>, window_params = [{transform_indices = @transform_0, window_bounds = array<i64: 1, 64, 128>}, {transform_indices = @transform_1, window_bounds = array<i64: 1, 64, 128>}, {transform_indices = @transform_2, window_bounds = array<i64: 128, 128>}, {transform_indices = @transform_3, window_bounds = array<i64: 1, 128>}, {transform_indices = @transform_4, window_bounds = array<i64: 1, 128>}, {transform_indices = @transform_5, window_bounds = array<i64: 1, 128>}, {transform_indices = @transform_6, window_bounds = array<i64: 1, 64, 128>}]} {
    %c0 = arith.constant 0 : index
    %c0_0 = arith.constant 0 : index
    %c0_1 = arith.constant 0 : index
    %0 = vector.load %arg4[%c0, %c0_0, %c0_1] : memref<1x64x128xbf16, #tpu.memory_space<vmem>>, vector<1x64x128xbf16>
    %1 = vector.shape_cast %0 : vector<1x64x128xbf16> to vector<64x128xbf16>
    %c0_2 = arith.constant 0 : index
    %c0_3 = arith.constant 0 : index
    %2 = vector.load %arg5[%c0_2, %c0_3] : memref<128x128xbf16, #tpu.memory_space<vmem>>, vector<128x128xbf16>
    %cst = arith.constant dense<0.000000e+00> : vector<64x128xf32>
    %3 = tpu.matmul %1, %2, %cst {dimension_numbers = #tpu.dot_dimension_numbers<[1], [0], [0], [1], [0, 0, 1, 1], [], []>} : vector<64x128xbf16>, vector<128x128xbf16>, vector<64x128xf32> -> vector<64x128xf32>
    %c0_4 = arith.constant 0 : index
    %c0_5 = arith.constant 0 : index
    %4 = vector.load %arg6[%c0_4, %c0_5] : memref<1x128xf32, #tpu.memory_space<vmem>>, vector<1x128xf32>
    %5 = vector.broadcast %4 : vector<1x128xf32> to vector<64x128xf32>
    %6 = arith.addf %3, %5 : vector<64x128xf32>
    %c0_6 = arith.constant 0 : index
    %c0_7 = arith.constant 0 : index
    %c0_8 = arith.constant 0 : index
    %7 = vector.load %arg3[%c0_6, %c0_7, %c0_8] : memref<1x64x128xbf16, #tpu.memory_space<vmem>>, vector<1x64x128xbf16>
    %8 = vector.shape_cast %7 : vector<1x64x128xbf16> to vector<64x128xbf16>
    %9 = arith.extf %8 : vector<64x128xbf16> to vector<64x128xf32>
    %c0_9 = arith.constant 0 : index
    %c0_10 = arith.constant 0 : index
    %10 = vector.load %arg7[%c0_9, %c0_10] : memref<1x128xf32, #tpu.memory_space<vmem>>, vector<1x128xf32>
    %11 = vector.broadcast %10 : vector<1x128xf32> to vector<64x128xf32>
    %12 = arith.mulf %9, %11 : vector<64x128xf32>
    %c0_11 = arith.constant 0 : index
    %c0_12 = arith.constant 0 : index
    %13 = vector.load %arg8[%c0_11, %c0_12] : memref<1x128xf32, #tpu.memory_space<vmem>>, vector<1x128xf32>
    %14 = vector.broadcast %13 : vector<1x128xf32> to vector<64x128xf32>
    %15 = arith.addf %12, %14 : vector<64x128xf32>
    %16 = arith.addf %15, %6 : vector<64x128xf32>
    %cst_13 = arith.constant 0.000000e+00 : f32
    %17 = vector.broadcast %cst_13 : f32 to vector<64x128xf32>
    %18 = arith.maximumf %16, %17 : vector<64x128xf32>
    %c0_14 = arith.constant 0 : index
    %c0_15 = arith.constant 0 : index
    %c0_16 = arith.constant 0 : index
    %19 = vector.load %arg9[%c0_14, %c0_15, %c0_16] : memref<1x64x128xf32, #tpu.memory_space<vmem>>, vector<1x64x128xf32>
    %20 = vector.shape_cast %19 : vector<1x64x128xf32> to vector<64x128xf32>
    %21 = vector.shape_cast %18 : vector<64x128xf32> to vector<1x64x128xf32>
    tpu.vector_store %arg9[%c0_14, %c0_15, %c0_16], %21 {strides = array<i32>} : memref<1x64x128xf32, #tpu.memory_space<vmem>>, vector<1x64x128xf32>,
    return
  }
  func.func @transform_0(%arg0: i32, %arg1: i32, %arg2: i32) -> (i32, i32, i32) {
    %c0_i32 = arith.constant 0 : i32
    return %arg0, %arg1, %arg2 : i32, i32, i32
  }
  func.func @transform_1(%arg0: i32, %arg1: i32, %arg2: i32) -> (i32, i32, i32) {
    %c0_i32 = arith.constant 0 : i32
    %c0_i32_0 = arith.constant 0 : i32
    return %arg0, %arg1, %c0_i32 : i32, i32, i32
  }
  func.func @transform_2(%arg0: i32, %arg1: i32, %arg2: i32) -> (i32, i32) {
    %c0_i32 = arith.constant 0 : i32
    %c0_i32_0 = arith.constant 0 : i32
    return %c0_i32, %arg2 : i32, i32
  }
  func.func @transform_3(%arg0: i32, %arg1: i32, %arg2: i32) -> (i32, i32) {
    %c0_i32 = arith.constant 0 : i32
    %c0_i32_0 = arith.constant 0 : i32
    return %c0_i32, %arg2 : i32, i32
  }
  func.func @transform_4(%arg0: i32, %arg1: i32, %arg2: i32) -> (i32, i32) {
    %c0_i32 = arith.constant 0 : i32
    %c0_i32_0 = arith.constant 0 : i32
    return %c0_i32, %arg2 : i32, i32
  }
  func.func @transform_5(%arg0: i32, %arg1: i32, %arg2: i32) -> (i32, i32) {
    %c0_i32 = arith.constant 0 : i32
    %c0_i32_0 = arith.constant 0 : i32
    return %c0_i32, %arg2 : i32, i32
  }
  func.func @transform_6(%arg0: i32, %arg1: i32, %arg2: i32) -> (i32, i32, i32) {
    %c0_i32 = arith.constant 0 : i32
    return %arg0, %arg1, %arg2 : i32, i32, i32
  }
}

</mosaic_0001>

<llo_original>
// kernel: base_residual_forward.3
$region0: #{base_residual_forward.3}
  #allocation0 [shape = 'u32[]', space=smem, size = 0x4, offset = 0x4, fixed_abs, tag = 'smem constant byte address 0x4 - core index']
  #allocation1 [shape = 'u32[144,128]{1,0:T(1,128)}', space=vmem, size = 0x12000, scoped, tag = 'internal scratch']
  #allocation2 [shape = 'bf16[64,1152]{1,0:T(8,128)(2,1)}', space=vmem, size = 0x24000, scoped, tag = 'scratch operand']
  %s0 = inlined_call_operand.vmem [shape: f32[8,9,9,128], index: 0, kind: input, shape index: {}]
  %s1 = inlined_call_operand.vmem [shape: bf16[1152,128], index: 1, kind: input, shape index: {}]
  %s2 = inlined_call_operand.vmem [shape: f32[1,128], index: 2, kind: input, shape index: {}]
  %s3 = inlined_call_operand.vmem [shape: bf16[2,64,128], index: 3, kind: output, shape index: {0}]
  %s4 = inlined_call_operand.vmem [shape: f32[2,1,128], index: 4, kind: output, shape index: {1}]
  %s5 = inlined_call_operand.vmem [shape: f32[2,1,128], index: 5, kind: output, shape index: {2}]
  %6 = xla_tuple %s3, %s4, %s5
  %s7 = sld [smem:[#allocation0]]
  $region65: #{base_residual_forward.3} parent=0
    _
  %s9 = ssub.s32 1, %s7
  %s10 = scalar_select 0, %s9, %s7
  loop: start=0, step=1, limit=4
  $region2: #{base_residual_forward.3} parent=0 // loop_pre_header
    _
  $region3: #{base_residual_forward.3} parent=0 // loop_header
    %s12 = sphi 0, %s16
    %p13 = scmp.ge.s32.totalorder %s12, 4
    %s19 = sphi 0, %s31
    %s20 = sphi 0, %s27
    %s21 = sphi 0, %s19
    %s22 = sphi 0, %s20
    %s23 = sphi 0, %s21
    %s24 = sphi 0, %s22
    %s34 = sphi 0, %s36
    %s37 = sphi 0, %s34
    %s38 = sphi 0, %s37
    %s54 = sphi 0, %s38
    %s60 = sphi 0, %s62
    %s63 = sphi 0, %s60
    %s64 = sphi 0, %s63
    %s80 = sphi 0, %s64
    %s86 = sphi 0, %s88
    %s89 = sphi 0, %s86
    %s90 = sphi 0, %s89
    %s106 = sphi 0, %s90
    %s114 = sphi 0, %s116
    %s117 = sphi 0, %s114
    %s118 = sphi 0, %s117
    %s134 = sphi 0, %s118
    %s142 = sphi 0, %s144
    %s145 = sphi 0, %s142
    %s146 = sphi 0, %s145
    %s162 = sphi 0, %s146
    %s170 = sphi 0, %s172
    %s173 = sphi 0, %s170
    %s174 = sphi 0, %s173
    %s190 = sphi 0, %s174
  $region4: #{base_residual_forward.3} parent=0 // loop_header_branch
    %15 = sbr.rel (%p13) target = $region8
  $region5: #{base_residual_forward.3} parent=0 // loop_body
    %s17 = ssub.s32 %s12, 1
    %s18 = ssub.s32 %s12, 2
    %s25 = sadd.s32 1, %s20
    %p26 = scmp.ge.s32.totalorder %s25, 1
    %s27 = scalar_select %p26, 0, %s25
    %s28 = sadd.s32 1, %s19
    %s29 = scalar_select %p26, %s28, %s19
    %p30 = scmp.ge.s32.totalorder %s29, 2
    %s31 = scalar_select %p30, 0, %s29
    %s32 = ssub.s32 %s19, %s31
    %p33 = scmp.eq.s32.totalorder %s32, 0
    %s35 = sadd.s32 %s34, 1
    %s36 = scalar_select %p33, %s34, %s35
    %p39 = pneg %p33
    %p40 = scmp.eq.s32.totalorder %s12, 1
    %p41 = por %p39, %p40
    %p42 = scmp.ne.s32.totalorder %s34, %s37
    %p43 = scmp.eq.s32.totalorder %s12, 0
    %p44 = por %p42, %p43
    %p45 = scmp.ne.s32.totalorder %s34, %s37
    %p46 = scmp.eq.s32.totalorder %s17, 1
    %p47 = por %p45, %p46
    %p48 = scmp.ne.s32.totalorder %s37, %s38
    %p49 = scmp.eq.s32.totalorder %s17, 0
    %p50 = por %p48, %p49
    %p51 = scmp.ne.s32.totalorder %s37, %s38
    %p52 = scmp.eq.s32.totalorder %s18, 1
    %p53 = por %p51, %p52
    %p55 = scmp.ne.s32.totalorder %s38, %s54
    %p56 = scmp.eq.s32.totalorder %s18, 0
    %p57 = por %p55, %p56
    %s58 = ssub.s32 %s20, %s27
    %p59 = scmp.eq.s32.totalorder %s58, 0
    %s61 = sadd.s32 %s60, 1
    %s62 = scalar_select %p59, %s60, %s61
    %p65 = pneg %p59
    %p66 = scmp.eq.s32.totalorder %s12, 1
    %p67 = por %p65, %p66
    %p68 = scmp.ne.s32.totalorder %s60, %s63
    %p69 = scmp.eq.s32.totalorder %s12, 0
    %p70 = por %p68, %p69
    %p71 = scmp.ne.s32.totalorder %s60, %s63
    %p72 = scmp.eq.s32.totalorder %s17, 1
    %p73 = por %p71, %p72
    %p74 = scmp.ne.s32.totalorder %s63, %s64
    %p75 = scmp.eq.s32.totalorder %s17, 0
    %p76 = por %p74, %p75
    %p77 = scmp.ne.s32.totalorder %s63, %s64
    %p78 = scmp.eq.s32.totalorder %s18, 1
    %p79 = por %p77, %p78
    %p81 = scmp.ne.s32.totalorder %s64, %s80
    %p82 = scmp.eq.s32.totalorder %s18, 0
    %p83 = por %p81, %p82
    %s84 = ssub.s32 %s20, %s27
    %p85 = scmp.eq.s32.totalorder %s84, 0
    %s87 = sadd.s32 %s86, 1
    %s88 = scalar_select %p85, %s86, %s87
    %p91 = pneg %p85
    %p92 = scmp.eq.s32.totalorder %s12, 1
    %p93 = por %p91, %p92
    %p94 = scmp.ne.s32.totalorder %s86, %s89
    %p95 = scmp.eq.s32.totalorder %s12, 0
    %p96 = por %p94, %p95
    %p97 = scmp.ne.s32.totalorder %s86, %s89
    %p98 = scmp.eq.s32.totalorder %s17, 1
    %p99 = por %p97, %p98
    %p100 = scmp.ne.s32.totalorder %s89, %s90
    %p101 = scmp.eq.s32.totalorder %s17, 0
    %p102 = por %p100, %p101
    %p103 = scmp.ne.s32.totalorder %s89, %s90
    %p104 = scmp.eq.s32.totalorder %s18, 1
    %p105 = por %p103, %p104
    %p107 = scmp.ne.s32.totalorder %s90, %s106
    %p108 = scmp.eq.s32.totalorder %s18, 0
    %p109 = por %p107, %p108
    %s110 = ssub.s32 %s19, %s31
    %s111 = ssub.s32 %s20, %s27
    %s112 = sor.u32 %s110, %s111
    %p113 = scmp.eq.s32.totalorder %s112, 0
    %s115 = sadd.s32 %s114, 1
    %s116 = scalar_select %p113, %s114, %s115
    %p119 = pneg %p113
    %p120 = scmp.eq.s32.totalorder %s12, 1
    %p121 = por %p119, %p120
    %p122 = scmp.ne.s32.totalorder %s114, %s117
    %p123 = scmp.eq.s32.totalorder %s12, 0
    %p124 = por %p122, %p123
    %p125 = scmp.ne.s32.totalorder %s114, %s117
    %p126 = scmp.eq.s32.totalorder %s17, 1
    %p127 = por %p125, %p126
    %p128 = scmp.ne.s32.totalorder %s117, %s118
    %p129 = scmp.eq.s32.totalorder %s17, 0
    %p130 = por %p128, %p129
    %p131 = scmp.ne.s32.totalorder %s117, %s118
    %p132 = scmp.eq.s32.totalorder %s18, 1
    %p133 = por %p131, %p132
    %p135 = scmp.ne.s32.totalorder %s118, %s134
    %p136 = scmp.eq.s32.totalorder %s18, 0
    %p137 = por %p135, %p136
    %s138 = ssub.s32 %s19, %s31
    %s139 = ssub.s32 %s20, %s27
    %s140 = sor.u32 %s138, %s139
    %p141 = scmp.eq.s32.totalorder %s140, 0
    %s143 = sadd.s32 %s142, 1
    %s144 = scalar_select %p141, %s142, %s143
    %p147 = pneg %p141
    %p148 = scmp.eq.s32.totalorder %s12, 1
    %p149 = por %p147, %p148
    %p150 = scmp.ne.s32.totalorder %s142, %s145
    %p151 = scmp.eq.s32.totalorder %s12, 0
    %p152 = por %p150, %p151
    %p153 = scmp.ne.s32.totalorder %s142, %s145
    %p154 = scmp.eq.s32.totalorder %s17, 1
    %p155 = por %p153, %p154
    %p156 = scmp.ne.s32.totalorder %s145, %s146
    %p157 = scmp.eq.s32.totalorder %s17, 0
    %p158 = por %p156, %p157
    %p159 = scmp.ne.s32.totalorder %s145, %s146
    %p160 = scmp.eq.s32.totalorder %s18, 1
    %p161 = por %p159, %p160
    %p163 = scmp.ne.s32.totalorder %s146, %s162
    %p164 = scmp.eq.s32.totalorder %s18, 0
    %p165 = por %p163, %p164
    %s166 = ssub.s32 %s19, %s31
    %s167 = ssub.s32 %s20, %s27
    %s168 = sor.u32 %s166, %s167
    %p169 = scmp.eq.s32.totalorder %s168, 0
    %s171 = sadd.s32 %s170, 1
    %s172 = scalar_select %p169, %s170, %s171
    %p175 = pneg %p169
    %p176 = scmp.eq.s32.totalorder %s12, 1
    %p177 = por %p175, %p176
    %p178 = scmp.ne.s32.totalorder %s170, %s173
    %p179 = scmp.eq.s32.totalorder %s12, 0
    %p180 = por %p178, %p179
    %p181 = scmp.ne.s32.totalorder %s170, %s173
    %p182 = scmp.eq.s32.totalorder %s17, 1
    %p183 = por %p181, %p182
    %p184 = scmp.ne.s32.totalorder %s173, %s174
    %p185 = scmp.eq.s32.totalorder %s17, 0
    %p186 = por %p184, %p185
    %p187 = scmp.ne.s32.totalorder %s173, %s174
    %p188 = scmp.eq.s32.totalorder %s18, 1
    %p189 = por %p187, %p188
    %p191 = scmp.ne.s32.totalorder %s174, %s190
    %p192 = scmp.eq.s32.totalorder %s18, 0
    %p193 = por %p191, %p192
    %p194 = scmp.le.s32.totalorder 1, %s12
    %p195 = scmp.lt.s32.totalorder %s12, 3
    %p196 = pnand %p194, %p195
    %p197 = pneg %p196
    // Predicated region
    $region9: #{base_residual_forward.3} parent=5 // pred_check
      _
    $region10: #{base_residual_forward.3} parent=5 // pred_check_branch
      %199 = sbr.rel (%p196) target = $region12
    $region11: #{base_residual_forward.3} parent=5 // pred_region
      %s200 = ssub.s32 %s12, 1
      // Predicated region
      $region13: #{base_residual_forward.3} parent=11 // pred_check
        %p201 = pneg %p76
      $region14: #{base_residual_forward.3} parent=11 // pred_check_branch
        %203 = sbr.rel (%p201) target = $region16
      $region15: #{base_residual_forward.3} parent=11 // pred_region
        %p204 = scmp.lt.s32.totalorder %s22, 0
        %s205 = scalar_select %p204, %s22, 0
        %s206 = smul.addr %s205, 4
        %s207 = scalar_lea.vmem %s1, %s206
      $region16: #{base_residual_forward.3} parent=11 // pred_fallthru
        _
      // Predicated region
      $region17: #{base_residual_forward.3} parent=11 // pred_check
        %p208 = pneg %p102
      $region18: #{base_residual_forward.3} parent=11 // pred_check_branch
        %210 = sbr.rel (%p208) target = $region20
      $region19: #{base_residual_forward.3} parent=11 // pred_region
        %p211 = scmp.lt.s32.totalorder %s22, 0
        %s212 = scalar_select %p211, %s22, 0
        %s213 = scalar_lea.vmem %s2, %s212
      $region20: #{base_residual_forward.3} parent=11 // pred_fallthru
        _
    $region12: #{base_residual_forward.3} parent=5 // pred_fallthru
      _
    %p214 = scmp.lt.s32.totalorder %s12, 2
    // Predicated region
    $region21: #{base_residual_forward.3} parent=5 // pred_check
      %p215 = pneg %p214
    $region22: #{base_residual_forward.3} parent=5 // pred_check_branch
      %217 = sbr.rel (%p215) target = $region24
    $region23: #{base_residual_forward.3} parent=5 // pred_region
      // Predicated region
      $region25: #{base_residual_forward.3} parent=23 // pred_check
        %p218 = pneg %p44
      $region26: #{base_residual_forward.3} parent=23 // pred_check_branch
        %220 = sbr.rel (%p218) target = $region28
      $region27: #{base_residual_forward.3} parent=23 // pred_region
        %s221 = smul.u32 4, %s19
        %p222 = scmp.lt.s32.totalorder %s221, 7
        %s223 = scalar_select %p222, %s221, 7
        %s224 = smul.addr %s223, 18
        %s225 = smul.addr %s224, 8
        %s226 = scalar_lea.vmem %s0, %s225
        %s227 = smul.u32 4, %s19
      $region28: #{base_residual_forward.3} parent=23 // pred_fallthru
        _
    $region24: #{base_residual_forward.3} parent=5 // pred_fallthru
      _
    %p228 = scmp.le.s32.totalorder 1, %s12
    %p229 = scmp.lt.s32.totalorder %s12, 3
    %p230 = pnand %p228, %p229
    %p231 = pneg %p230
    // Predicated region
    $region29: #{base_residual_forward.3} parent=5 // pred_check
      _
    $region30: #{base_residual_forward.3} parent=5 // pred_check_branch
      %233 = sbr.rel (%p230) target = $region32
    $region31: #{base_residual_forward.3} parent=5 // pred_region
      %s234 = ssub.s32 %s12, 1
      %s235 = smul.u32 4, %s21
      %p236 = scmp.lt.s32.totalorder %s235, 7
      %s237 = scalar_select %p236, %s235, 7
      %s238 = smul.addr %s237, 18
      %s239 = smul.addr %s238, 8
      %s240 = scalar_lea.vmem %s0, %s239
      %p241 = pneg %p50
      %p242 = pneg %p47
      %p243 = scmp.lt.s32.totalorder %s22, 0
      %s244 = scalar_select %p243, %s22, 0
      %s245 = smul.addr %s244, 4
      %s246 = scalar_lea.vmem %s1, %s245
      %p247 = pneg %p76
      %p248 = pneg %p73
      %p249 = scmp.lt.s32.totalorder %s22, 0
      %s250 = scalar_select %p249, %s22, 0
      %s251 = scalar_lea.vmem %s2, %s250
      %p252 = pneg %p102
      %p253 = pneg %p99
      %p254 = pneg %p130
      %p255 = pneg %p127
      %p256 = scmp.lt.s32.totalorder %s21, 1
      %s257 = scalar_select %p256, %s21, 1
      %p258 = scmp.lt.s32.totalorder %s22, 0
      %s259 = scalar_select %p258, %s22, 0
      %s260 = smul.addr %s257, 8
      %s261 = sadd.s32 %s259, %s260
      %s262 = smul.addr %s261, 4
      %s263 = scalar_lea.vmem %s3, %s262
      %p264 = pneg %p158
      %p265 = pneg %p155
      %p266 = scmp.lt.s32.totalorder %s21, 1
      %s267 = scalar_select %p266, %s21, 1
      %p268 = scmp.lt.s32.totalorder %s22, 0
      %s269 = scalar_select %p268, %s22, 0
      %s270 = sadd.s32 %s269, %s267
      %s271 = scalar_lea.vmem %s4, %s270
      %p272 = pneg %p186
      %p273 = pneg %p183
      %p274 = scmp.lt.s32.totalorder %s21, 1
      %s275 = scalar_select %p274, %s21, 1
      %p276 = scmp.lt.s32.totalorder %s22, 0
      %s277 = scalar_select %p276, %s22, 0
      %s278 = sadd.s32 %s277, %s275
      %s279 = scalar_lea.vmem %s5, %s278
      %s280 = smul.u32 4, %s21
      %p281 = scmp.lt.s32.totalorder %s280, 7
      %s282 = scalar_select %p281, %s280, 7
      %s283 = smul.addr %s282, 18
      %s284 = smul.addr %s283, 8
      %s285 = scalar_lea.vmem %s0, %s284
      %s286 = smul.u32 4, %s21
      %p287 = scmp.lt.s32.totalorder %s22, 0
      %s288 = scalar_select %p287, %s22, 0
      %s289 = smul.addr %s288, 4
      %s290 = scalar_lea.vmem %s1, %s289
      %p291 = scmp.lt.s32.totalorder %s22, 0
      %s292 = scalar_select %p291, %s22, 0
      %s293 = scalar_lea.vmem %s2, %s292
      %p294 = scmp.lt.s32.totalorder %s21, 1
      %s295 = scalar_select %p294, %s21, 1
      %p296 = scmp.lt.s32.totalorder %s22, 0
      %s297 = scalar_select %p296, %s22, 0
      %s298 = smul.addr %s295, 8
      %s299 = sadd.s32 %s297, %s298
      %s300 = smul.addr %s299, 4
      %s301 = scalar_lea.vmem %s3, %s300
      %p302 = scmp.lt.s32.totalorder %s21, 1
      %s303 = scalar_select %p302, %s21, 1
      %p304 = scmp.lt.s32.totalorder %s22, 0
      %s305 = scalar_select %p304, %s22, 0
      %s306 = sadd.s32 %s305, %s303
      %s307 = scalar_lea.vmem %s4, %s306
      %p308 = scmp.lt.s32.totalorder %s21, 1
      %s309 = scalar_select %p308, %s21, 1
      %p310 = scmp.lt.s32.totalorder %s22, 0
      %s311 = scalar_select %p310, %s22, 0
      %s312 = sadd.s32 %s311, %s309
      %s313 = scalar_lea.vmem %s5, %s312
      %p315 = scmp.eq.s32.totalorder %s22, 0
      // Predicated region
      $region33: #{base_residual_forward.3} parent=31 // pred_check
        %p316 = pneg %p315
      $region34: #{base_residual_forward.3} parent=31 // pred_check_branch
        %318 = sbr.rel (%p316) target = $region36
      $region35: #{base_residual_forward.3} parent=31 // pred_region
        %v319 = vld [vmem:[%s285] sm:$0xff]
        %v320 = vld [vmem:[%s285 + $0x10] sm:$0xff]
        %v321 = vld [vmem:[%s285 + $0x20] sm:$0xff]
        %v322 = vld [vmem:[%s285 + $0x30] sm:$0xff]
        %v323 = vld [vmem:[%s285 + $0x40] sm:$0xff]
        %v324 = vld [vmem:[%s285 + $0x50] sm:$0xff]
        %v325 = vld [vmem:[%s285 + $0x60] sm:$0xff]
        %v326 = vld [vmem:[%s285 + $0x70] sm:$0xff]
        %v327 = vpack.c.bf16 %v320, %v319
        %v328 = vpack.c.bf16 %v322, %v321
        %v329 = vpack.c.bf16 %v324, %v323
        %v330 = vpack.c.bf16 %v326, %v325
        %v335 = vunpack.c.l.b16 %v327
        %v336 = vunpack.c.h.b16 %v327
        %v337 = vunpack.c.l.b16 %v328
        %v338 = vunpack.c.h.b16 %v328
        %v339 = vunpack.c.l.b16 %v329
        %v340 = vunpack.c.h.b16 %v329
        %v341 = vunpack.c.l.b16 %v330
        %v342 = vunpack.c.h.b16 %v330
        %v343 = vpack.c.b16 %v335, %v335
        %v344 = vpack.c.b16 %v336, %v336
        %v345 = vpack.c.b16 %v337, %v337
        %v346 = vpack.c.b16 %v338, %v338
        %v347 = vpack.c.b16 %v339, %v339
        %v348 = vpack.c.b16 %v340, %v340
        %v349 = vpack.c.b16 %v341, %v341
        %v350 = vpack.c.b16 %v342, %v342
        %359 = vst [vmem:[#allocation2] sm:$0xf] %v343
        %360 = vst [vmem:[#allocation2 + $0x24] sm:$0xf] %v344
        %361 = vst [vmem:[#allocation2 + $0x48] sm:$0xf] %v345
        %362 = vst [vmem:[#allocation2 + $0x6c] sm:$0xf] %v346
        %363 = vst [vmem:[#allocation2 + $0x90] sm:$0xf] %v347
        %364 = vst [vmem:[#allocation2 + $0xb4] sm:$0xf] %v348
        %365 = vst [vmem:[#allocation2 + $0xd8] sm:$0xf] %v349
        %366 = vst [vmem:[#allocation2 + $0xfc] sm:$0xf] %v350
        %s367 = scalar_lea.vmem %s285, 144
        %v368 = vld [vmem:[%s367] sm:$0xff]
        %v369 = vld [vmem:[%s367 + $0x10] sm:$0xff]
        %v370 = vld [vmem:[%s367 + $0x20] sm:$0xff]
        %v371 = vld [vmem:[%s367 + $0x30] sm:$0xff]
        %v372 = vld [vmem:[%s367 + $0x40] sm:$0xff]
        %v373 = vld [vmem:[%s367 + $0x50] sm:$0xff]
        %v374 = vld [vmem:[%s367 + $0x60] sm:$0xff]
        %v375 = vld [vmem:[%s367 + $0x70] sm:$0xff]
        %v376 = vpack.c.bf16 %v369, %v368
        %v377 = vpack.c.bf16 %v371, %v370
        %v378 = vpack.c.bf16 %v373, %v372
        %v379 = vpack.c.bf16 %v375, %v374
        %v384 = vunpack.c.l.b16 %v376
        %v385 = vunpack.c.h.b16 %v376
        %v386 = vunpack.c.l.b16 %v377
        %v387 = vunpack.c.h.b16 %v377
        %v388 = vunpack.c.l.b16 %v378
        %v389 = vunpack.c.h.b16 %v378
        %v390 = vunpack.c.l.b16 %v379
        %v391 = vunpack.c.h.b16 %v379
        %v392 = vpack.c.b16 %v384, %v384
        %v393 = vpack.c.b16 %v385, %v385
        %v394 = vpack.c.b16 %v386, %v386
        %v395 = vpack.c.b16 %v387, %v387
        %v396 = vpack.c.b16 %v388, %v388
        %v397 = vpack.c.b16 %v389, %v389
        %v398 = vpack.c.b16 %v390, %v390
        %v399 = vpack.c.b16 %v391, %v391
        %408 = vst [vmem:[#allocation2 + $0x4] sm:$0xf] %v392
        %409 = vst [vmem:[#allocation2 + $0x28] sm:$0xf] %v393
        %410 = vst [vmem:[#allocation2 + $0x4c] sm:$0xf] %v394
        %411 = vst [vmem:[#allocation2 + $0x70] sm:$0xf] %v395
        %412 = vst [vmem:[#allocation2 + $0x94] sm:$0xf] %v396
        %413 = vst [vmem:[#allocation2 + $0xb8] sm:$0xf] %v397
        %414 = vst [vmem:[#allocation2 + $0xdc] sm:$0xf] %v398
        %415 = vst [vmem:[#allocation2 + $0x100] sm:$0xf] %v399
        %v416 = vld [vmem:[%s285 + $0x1] sm:$0xff]
        %v417 = vld [vmem:[%s285 + $0x11] sm:$0xff]
        %v418 = vld [vmem:[%s285 + $0x21] sm:$0xff]
        %v419 = vld [vmem:[%s285 + $0x31] sm:$0xff]
        %v420 = vld [vmem:[%s285 + $0x41] sm:$0xff]
        %v421 = vld [vmem:[%s285 + $0x51] sm:$0xff]
        %v422 = vld [vmem:[%s285 + $0x61] sm:$0xff]
        %v423 = vld [vmem:[%s285 + $0x71] sm:$0xff]
        %v424 = vpack.c.bf16 %v417, %v416
        %v425 = vpack.c.bf16 %v419, %v418
        %v426 = vpack.c.bf16 %v421, %v420
        %v427 = vpack.c.bf16 %v423, %v422
        %v432 = vunpack.c.l.b16 %v424
        %v433 = vunpack.c.h.b16 %v424
        %v434 = vunpack.c.l.b16 %v425
        %v435 = vunpack.c.h.b16 %v425
        %v436 = vunpack.c.l.b16 %v426
        %v437 = vunpack.c.h.b16 %v426
        %v438 = vunpack.c.l.b16 %v427
        %v439 = vunpack.c.h.b16 %v427
        %v440 = vpack.c.b16 %v432, %v432
        %v441 = vpack.c.b16 %v433, %v433
        %v442 = vpack.c.b16 %v434, %v434
        %v443 = vpack.c.b16 %v435, %v435
        %v444 = vpack.c.b16 %v436, %v436
        %v445 = vpack.c.b16 %v437, %v437
        %v446 = vpack.c.b16 %v438, %v438
        %v447 = vpack.c.b16 %v439, %v439
        %456 = vst [vmem:[#allocation2 + $0x8] sm:$0xf] %v440
        %457 = vst [vmem:[#allocation2 + $0x2c] sm:$0xf] %v441
        %458 = vst [vmem:[#allocation2 + $0x50] sm:$0xf] %v442
        %459 = vst [vmem:[#allocation2 + $0x74] sm:$0xf] %v443
        %460 = vst [vmem:[#allocation2 + $0x98] sm:$0xf] %v444
        %461 = vst [vmem:[#allocation2 + $0xbc] sm:$0xf] %v445
        %462 = vst [vmem:[#allocation2 + $0xe0] sm:$0xf] %v446
        %463 = vst [vmem:[#allocation2 + $0x104] sm:$0xf] %v447
        %s464 = scalar_lea.vmem %s285, 288
        %v465 = vld [vmem:[%s464] sm:$0xff]
        %v466 = vld [vmem:[%s464 + $0x10] sm:$0xff]
        %v467 = vld [vmem:[%s464 + $0x20] sm:$0xff]
        %v468 = vld [vmem:[%s464 + $0x30] sm:$0xff]
        %v469 = vld [vmem:[%s464 + $0x40] sm:$0xff]
        %v470 = vld [vmem:[%s464 + $0x50] sm:$0xff]
        %v471 = vld [vmem:[%s464 + $0x60] sm:$0xff]
        %v472 = vld [vmem:[%s464 + $0x70] sm:$0xff]
        %v473 = vpack.c.bf16 %v466, %v465
        %v474 = vpack.c.bf16 %v468, %v467
        %v475 = vpack.c.bf16 %v470, %v469
        %v476 = vpack.c.bf16 %v472, %v471
        %v481 = vunpack.c.l.b16 %v473
        %v482 = vunpack.c.h.b16 %v473
        %v483 = vunpack.c.l.b16 %v474
        %v484 = vunpack.c.h.b16 %v474
        %v485 = vunpack.c.l.b16 %v475
        %v486 = vunpack.c.h.b16 %v475
        %v487 = vunpack.c.l.b16 %v476
        %v488 = vunpack.c.h.b16 %v476
        %v489 = vpack.c.b16 %v481, %v481
        %v490 = vpack.c.b16 %v482, %v482
        %v491 = vpack.c.b16 %v483, %v483
        %v492 = vpack.c.b16 %v484, %v484
        %v493 = vpack.c.b16 %v485, %v485
        %v494 = vpack.c.b16 %v486, %v486
        %v495 = vpack.c.b16 %v487, %v487
        %v496 = vpack.c.b16 %v488, %v488
        %505 = vst [vmem:[#allocation2 + $0xc] sm:$0xf] %v489
        %506 = vst [vmem:[#allocation2 + $0x30] sm:$0xf] %v490
        %507 = vst [vmem:[#allocation2 + $0x54] sm:$0xf] %v491
        %508 = vst [vmem:[#allocation2 + $0x78] sm:$0xf] %v492
        %509 = vst [vmem:[#allocation2 + $0x9c] sm:$0xf] %v493
        %510 = vst [vmem:[#allocation2 + $0xc0] sm:$0xf] %v494
        %511 = vst [vmem:[#allocation2 + $0xe4] sm:$0xf] %v495
        %512 = vst [vmem:[#allocation2 + $0x108] sm:$0xf] %v496
        %s513 = scalar_lea.vmem %s285, 432
        %v514 = vld [vmem:[%s513] sm:$0xff]
        %v515 = vld [vmem:[%s513 + $0x10] sm:$0xff]
        %v516 = vld [vmem:[%s513 + $0x20] sm:$0xff]
        %v517 = vld [vmem:[%s513 + $0x30] sm:$0xff]
        %v518 = vld [vmem:[%s513 + $0x40] sm:$0xff]
        %v519 = vld [vmem:[%s513 + $0x50] sm:$0xff]
        %v520 = vld [vmem:[%s513 + $0x60] sm:$0xff]
        %v521 = vld [vmem:[%s513 + $0x70] sm:$0xff]
        %v522 = vpack.c.bf16 %v515, %v514
        %v523 = vpack.c.bf16 %v517, %v516
        %v524 = vpack.c.bf16 %v519, %v518
        %v525 = vpack.c.bf16 %v521, %v520
        %v530 = vunpack.c.l.b16 %v522
        %v531 = vunpack.c.h.b16 %v522
        %v532 = vunpack.c.l.b16 %v523
        %v533 = vunpack.c.h.b16 %v523
        %v534 = vunpack.c.l.b16 %v524
        %v535 = vunpack.c.h.b16 %v524
        %v536 = vunpack.c.l.b16 %v525
        %v537 = vunpack.c.h.b16 %v525
        %v538 = vpack.c.b16 %v530, %v530
        %v539 = vpack.c.b16 %v531, %v531
        %v540 = vpack.c.b16 %v532, %v532
        %v541 = vpack.c.b16 %v533, %v533
        %v542 = vpack.c.b16 %v534, %v534
        %v543 = vpack.c.b16 %v535, %v535
        %v544 = vpack.c.b16 %v536, %v536
        %v545 = vpack.c.b16 %v537, %v537
        %554 = vst [vmem:[#allocation2 + $0x10] sm:$0xf] %v538
        %555 = vst [vmem:[#allocation2 + $0x34] sm:$0xf] %v539
        %556 = vst [vmem:[#allocation2 + $0x58] sm:$0xf] %v540
        %557 = vst [vmem:[#allocation2 + $0x7c] sm:$0xf] %v541
        %558 = vst [vmem:[#allocation2 + $0xa0] sm:$0xf] %v542
        %559 = vst [vmem:[#allocation2 + $0xc4] sm:$0xf] %v543
        %560 = vst [vmem:[#allocation2 + $0xe8] sm:$0xf] %v544
        %561 = vst [vmem:[#allocation2 + $0x10c] sm:$0xf] %v545
        %v562 = vld [vmem:[%s464 + $0x1] sm:$0xff]
        %v563 = vld [vmem:[%s464 + $0x11] sm:$0xff]
        %v564 = vld [vmem:[%s464 + $0x21] sm:$0xff]
        %v565 = vld [vmem:[%s464 + $0x31] sm:$0xff]
        %v566 = vld [vmem:[%s464 + $0x41] sm:$0xff]
        %v567 = vld [vmem:[%s464 + $0x51] sm:$0xff]
        %v568 = vld [vmem:[%s464 + $0x61] sm:$0xff]
        %v569 = vld [vmem:[%s464 + $0x71] sm:$0xff]
        %v570 = vpack.c.bf16 %v563, %v562
        %v571 = vpack.c.bf16 %v565, %v564
        %v572 = vpack.c.bf16 %v567, %v566
        %v573 = vpack.c.bf16 %v569, %v568
        %v578 = vunpack.c.l.b16 %v570
        %v579 = vunpack.c.h.b16 %v570
        %v580 = vunpack.c.l.b16 %v571
        %v581 = vunpack.c.h.b16 %v571
        %v582 = vunpack.c.l.b16 %v572
        %v583 = vunpack.c.h.b16 %v572
        %v584 = vunpack.c.l.b16 %v573
        %v585 = vunpack.c.h.b16 %v573
        %v586 = vpack.c.b16 %v578, %v578
        %v587 = vpack.c.b16 %v579, %v579
        %v588 = vpack.c.b16 %v580, %v580
        %v589 = vpack.c.b16 %v581, %v581
        %v590 = vpack.c.b16 %v582, %v582
        %v591 = vpack.c.b16 %v583, %v583
        %v592 = vpack.c.b16 %v584, %v584
        %v593 = vpack.c.b16 %v585, %v585
        %602 = vst [vmem:[#allocation2 + $0x14] sm:$0xf] %v586
        %603 = vst [vmem:[#allocation2 + $0x38] sm:$0xf] %v587
        %604 = vst [vmem:[#allocation2 + $0x5c] sm:$0xf] %v588
        %605 = vst [vmem:[#allocation2 + $0x80] sm:$0xf] %v589
        %606 = vst [vmem:[#allocation2 + $0xa4] sm:$0xf] %v590
        %607 = vst [vmem:[#allocation2 + $0xc8] sm:$0xf] %v591
        %608 = vst [vmem:[#allocation2 + $0xec] sm:$0xf] %v592
        %609 = vst [vmem:[#allocation2 + $0x110] sm:$0xf] %v593
        %s610 = scalar_lea.vmem %s285, 16
        %v611 = vld [vmem:[%s610] sm:$0xff]
        %v612 = vld [vmem:[%s610 + $0x10] sm:$0xff]
        %v613 = vld [vmem:[%s610 + $0x20] sm:$0xff]
        %v614 = vld [vmem:[%s610 + $0x30] sm:$0xff]
        %v615 = vld [vmem:[%s610 + $0x40] sm:$0xff]
        %v616 = vld [vmem:[%s610 + $0x50] sm:$0xff]
        %v617 = vld [vmem:[%s610 + $0x60] sm:$0xff]
        %v618 = vld [vmem:[%s610 + $0x70] sm:$0xff]
        %v619 = vpack.c.bf16 %v612, %v611
        %v620 = vpack.c.bf16 %v614, %v613
        %v621 = vpack.c.bf16 %v616, %v615
        %v622 = vpack.c.bf16 %v618, %v617
        %v627 = vunpack.c.l.b16 %v619
        %v628 = vunpack.c.h.b16 %v619
        %v629 = vunpack.c.l.b16 %v620
        %v630 = vunpack.c.h.b16 %v620
        %v631 = vunpack.c.l.b16 %v621
        %v632 = vunpack.c.h.b16 %v621
        %v633 = vunpack.c.l.b16 %v622
        %v634 = vunpack.c.h.b16 %v622
        %v635 = vpack.c.b16 %v627, %v627
        %v636 = vpack.c.b16 %v628, %v628
        %v637 = vpack.c.b16 %v629, %v629
        %v638 = vpack.c.b16 %v630, %v630
        %v639 = vpack.c.b16 %v631, %v631
        %v640 = vpack.c.b16 %v632, %v632
        %v641 = vpack.c.b16 %v633, %v633
        %v642 = vpack.c.b16 %v634, %v634
        %651 = vst [vmem:[#allocation2 + $0x18] sm:$0xf] %v635
        %652 = vst [vmem:[#allocation2 + $0x3c] sm:$0xf] %v636
        %653 = vst [vmem:[#allocation2 + $0x60] sm:$0xf] %v637
        %654 = vst [vmem:[#allocation2 + $0x84] sm:$0xf] %v638
        %655 = vst [vmem:[#allocation2 + $0xa8] sm:$0xf] %v639
        %656 = vst [vmem:[#allocation2 + $0xcc] sm:$0xf] %v640
        %657 = vst [vmem:[#allocation2 + $0xf0] sm:$0xf] %v641
        %658 = vst [vmem:[#allocation2 + $0x114] sm:$0xf] %v642
        %s659 = scalar_lea.vmem %s285, 160
        %v660 = vld [vmem:[%s659] sm:$0xff]
        %v661 = vld [vmem:[%s659 + $0x10] sm:$0xff]
        %v662 = vld [vmem:[%s659 + $0x20] sm:$0xff]
        %v663 = vld [vmem:[%s659 + $0x30] sm:$0xff]
        %v664 = vld [vmem:[%s659 + $0x40] sm:$0xff]
        %v665 = vld [vmem:[%s659 + $0x50] sm:$0xff]
        %v666 = vld [vmem:[%s659 + $0x60] sm:$0xff]
        %v667 = vld [vmem:[%s659 + $0x70] sm:$0xff]
        %v668 = vpack.c.bf16 %v661, %v660
        %v669 = vpack.c.bf16 %v663, %v662
        %v670 = vpack.c.bf16 %v665, %v664
        %v671 = vpack.c.bf16 %v667, %v666
        %v676 = vunpack.c.l.b16 %v668
        %v677 = vunpack.c.h.b16 %v668
        %v678 = vunpack.c.l.b16 %v669
        %v679 = vunpack.c.h.b16 %v669
        %v680 = vunpack.c.l.b16 %v670
        %v681 = vunpack.c.h.b16 %v670
        %v682 = vunpack.c.l.b16 %v671
        %v683 = vunpack.c.h.b16 %v671
        %v684 = vpack.c.b16 %v676, %v676
        %v685 = vpack.c.b16 %v677, %v677
        %v686 = vpack.c.b16 %v678, %v678
        %v687 = vpack.c.b16 %v679, %v679
        %v688 = vpack.c.b16 %v680, %v680
        %v689 = vpack.c.b16 %v681, %v681
        %v690 = vpack.c.b16 %v682, %v682
        %v691 = vpack.c.b16 %v683, %v683
        %700 = vst [vmem:[#allocation2 + $0x1c] sm:$0xf] %v684
        %701 = vst [vmem:[#allocation2 + $0x40] sm:$0xf] %v685
        %702 = vst [vmem:[#allocation2 + $0x64] sm:$0xf] %v686
        %703 = vst [vmem:[#allocation2 + $0x88] sm:$0xf] %v687
        %704 = vst [vmem:[#allocation2 + $0xac] sm:$0xf] %v688
        %705 = vst [vmem:[#allocation2 + $0xd0] sm:$0xf] %v689
        %706 = vst [vmem:[#allocation2 + $0xf4] sm:$0xf] %v690
        %707 = vst [vmem:[#allocation2 + $0x118] sm:$0xf] %v691
        %v708 = vld [vmem:[%s610 + $0x1] sm:$0xff]
        %v709 = vld [vmem:[%s610 + $0x11] sm:$0xff]
        %v710 = vld [vmem:[%s610 + $0x21] sm:$0xff]
        %v711 = vld [vmem:[%s610 + $0x31] sm:$0xff]
        %v712 = vld [vmem:[%s610 + $0x41] sm:$0xff]
        %v713 = vld [vmem:[%s610 + $0x51] sm:$0xff]
        %v714 = vld [vmem:[%s610 + $0x61] sm:$0xff]
        %v715 = vld [vmem:[%s610 + $0x71] sm:$0xff]
        %v716 = vpack.c.bf16 %v709, %v708
        %v717 = vpack.c.bf16 %v711, %v710
        %v718 = vpack.c.bf16 %v713, %v712
        %v719 = vpack.c.bf16 %v715, %v714
        %v724 = vunpack.c.l.b16 %v716
        %v725 = vunpack.c.h.b16 %v716
        %v726 = vunpack.c.l.b16 %v717
        %v727 = vunpack.c.h.b16 %v717
        %v728 = vunpack.c.l.b16 %v718
        %v729 = vunpack.c.h.b16 %v718
        %v730 = vunpack.c.l.b16 %v719
        %v731 = vunpack.c.h.b16 %v719
        %v732 = vpack.c.b16 %v724, %v724
        %v733 = vpack.c.b16 %v725, %v725
        %v734 = vpack.c.b16 %v726, %v726
        %v735 = vpack.c.b16 %v727, %v727
        %v736 = vpack.c.b16 %v728, %v728
        %v737 = vpack.c.b16 %v729, %v729
        %v738 = vpack.c.b16 %v730, %v730
        %v739 = vpack.c.b16 %v731, %v731
        %748 = vst [vmem:[#allocation2 + $0x20] sm:$0xf] %v732
        %749 = vst [vmem:[#allocation2 + $0x44] sm:$0xf] %v733
        %750 = vst [vmem:[#allocation2 + $0x68] sm:$0xf] %v734
        %751 = vst [vmem:[#allocation2 + $0x8c] sm:$0xf] %v735
        %752 = vst [vmem:[#allocation2 + $0xb0] sm:$0xf] %v736
        %753 = vst [vmem:[#allocation2 + $0xd4] sm:$0xf] %v737
        %754 = vst [vmem:[#allocation2 + $0xf8] sm:$0xf] %v738
        %755 = vst [vmem:[#allocation2 + $0x11c] sm:$0xf] %v739
      $region36: #{base_residual_forward.3} parent=31 // pred_fallthru
        _
      %v756 = vld [vmem:[#allocation2] sm:$0xff]
      %v757 = vld [vmem:[#allocation2 + $0x8] sm:$0xff]
      %v758 = vld [vmem:[#allocation2 + $0x10] sm:$0xff]
      %v759 = vld [vmem:[#allocation2 + $0x18] sm:$0xff]
      %v760 = vld [vmem:[#allocation2 + $0x20] sm:$0xf]
      %v761 = vld [vmem:[#allocation2 + $0x24] sm:$0xff]
      %v762 = vld [vmem:[#allocation2 + $0x2c] sm:$0xff]
      %v763 = vld [vmem:[#allocation2 + $0x34] sm:$0xff]
      %v764 = vld [vmem:[#allocation2 + $0x3c] sm:$0xff]
      %v765 = vld [vmem:[#allocation2 + $0x44] sm:$0xf]
      %v766 = vld [vmem:[#allocation2 + $0x48] sm:$0xff]
      %v767 = vld [vmem:[#allocation2 + $0x50] sm:$0xff]
      %v768 = vld [vmem:[#allocation2 + $0x58] sm:$0xff]
      %v769 = vld [vmem:[#allocation2 + $0x60] sm:$0xff]
      %v770 = vld [vmem:[#allocation2 + $0x68] sm:$0xf]
      %v771 = vld [vmem:[#allocation2 + $0x6c] sm:$0xff]
      %v772 = vld [vmem:[#allocation2 + $0x74] sm:$0xff]
      %v773 = vld [vmem:[#allocation2 + $0x7c] sm:$0xff]
      %v774 = vld [vmem:[#allocation2 + $0x84] sm:$0xff]
      %v775 = vld [vmem:[#allocation2 + $0x8c] sm:$0xf]
      %v776 = vld [vmem:[#allocation2 + $0x90] sm:$0xff]
      %v777 = vld [vmem:[#allocation2 + $0x98] sm:$0xff]
      %v778 = vld [vmem:[#allocation2 + $0xa0] sm:$0xff]
      %v779 = vld [vmem:[#allocation2 + $0xa8] sm:$0xff]
      %v780 = vld [vmem:[#allocation2 + $0xb0] sm:$0xf]
      %v781 = vld [vmem:[#allocation2 + $0xb4] sm:$0xff]
      %v782 = vld [vmem:[#allocation2 + $0xbc] sm:$0xff]
      %v783 = vld [vmem:[#allocation2 + $0xc4] sm:$0xff]
      %v784 = vld [vmem:[#allocation2 + $0xcc] sm:$0xff]
      %v785 = vld [vmem:[#allocation2 + $0xd4] sm:$0xf]
      %v786 = vld [vmem:[#allocation2 + $0xd8] sm:$0xff]
      %v787 = vld [vmem:[#allocation2 + $0xe0] sm:$0xff]
      %v788 = vld [vmem:[#allocation2 + $0xe8] sm:$0xff]
      %v789 = vld [vmem:[#allocation2 + $0xf0] sm:$0xff]
      %v790 = vld [vmem:[#allocation2 + $0xf8] sm:$0xf]
      %v791 = vld [vmem:[#allocation2 + $0xfc] sm:$0xff]
      %v792 = vld [vmem:[#allocation2 + $0x104] sm:$0xff]
      %v793 = vld [vmem:[#allocation2 + $0x10c] sm:$0xff]
      %v794 = vld [vmem:[#allocation2 + $0x114] sm:$0xff]
      %v795 = vld [vmem:[#allocation2 + $0x11c] sm:$0xf]
      %v796 = vld [vmem:[%s290] sm:$0xf]
      %v797 = vld [vmem:[%s290 + $0x4] sm:$0xf]
      %v798 = vld [vmem:[%s290 + $0x8] sm:$0xf]
      %v799 = vld [vmem:[%s290 + $0xc] sm:$0xf]
      %v800 = vld [vmem:[%s290 + $0x10] sm:$0xf]
      %v801 = vld [vmem:[%s290 + $0x14] sm:$0xf]
      %v802 = vld [vmem:[%s290 + $0x18] sm:$0xf]
      %v803 = vld [vmem:[%s290 + $0x1c] sm:$0xf]
      %v804 = vld [vmem:[%s290 + $0x20] sm:$0xf]
      %v805 = vld [vmem:[%s290 + $0x24] sm:$0xf]
      %v806 = vld [vmem:[%s290 + $0x28] sm:$0xf]
      %v807 = vld [vmem:[%s290 + $0x2c] sm:$0xf]
      %v808 = vld [vmem:[%s290 + $0x30] sm:$0xf]
      %v809 = vld [vmem:[%s290 + $0x34] sm:$0xf]
      %v810 = vld [vmem:[%s290 + $0x38] sm:$0xf]
      %v811 = vld [vmem:[%s290 + $0x3c] sm:$0xf]
      %v812 = vld [vmem:[%s290 + $0x40] sm:$0xf]
      %v813 = vld [vmem:[%s290 + $0x44] sm:$0xf]
      %v814 = vld [vmem:[%s290 + $0x48] sm:$0xf]
      %v815 = vld [vmem:[%s290 + $0x4c] sm:$0xf]
      %v816 = vld [vmem:[%s290 + $0x50] sm:$0xf]
      %v817 = vld [vmem:[%s290 + $0x54] sm:$0xf]
      %v818 = vld [vmem:[%s290 + $0x58] sm:$0xf]
      %v819 = vld [vmem:[%s290 + $0x5c] sm:$0xf]
      %v820 = vld [vmem:[%s290 + $0x60] sm:$0xf]
      %v821 = vld [vmem:[%s290 + $0x64] sm:$0xf]
      %v822 = vld [vmem:[%s290 + $0x68] sm:$0xf]
      %v823 = vld [vmem:[%s290 + $0x6c] sm:$0xf]
      %v824 = vld [vmem:[%s290 + $0x70] sm:$0xf]
      %v825 = vld [vmem:[%s290 + $0x74] sm:$0xf]
      %v826 = vld [vmem:[%s290 + $0x78] sm:$0xf]
      %v827 = vld [vmem:[%s290 + $0x7c] sm:$0xf]
      %v828 = vld [vmem:[%s290 + $0x80] sm:$0xf]
      %v829 = vld [vmem:[%s290 + $0x84] sm:$0xf]
      %v830 = vld [vmem:[%s290 + $0x88] sm:$0xf]
      %v831 = vld [vmem:[%s290 + $0x8c] sm:$0xf]
      %v832 = vld [vmem:[%s290 + $0x90] sm:$0xf]
      %v833 = vld [vmem:[%s290 + $0x94] sm:$0xf]
      %v834 = vld [vmem:[%s290 + $0x98] sm:$0xf]
      %v835 = vld [vmem:[%s290 + $0x9c] sm:$0xf]
      %v836 = vld [vmem:[%s290 + $0xa0] sm:$0xf]
      %v837 = vld [vmem:[%s290 + $0xa4] sm:$0xf]
      %v838 = vld [vmem:[%s290 + $0xa8] sm:$0xf]
      %v839 = vld [vmem:[%s290 + $0xac] sm:$0xf]
      %v840 = vld [vmem:[%s290 + $0xb0] sm:$0xf]
      %v841 = vld [vmem:[%s290 + $0xb4] sm:$0xf]
      %v842 = vld [vmem:[%s290 + $0xb8] sm:$0xf]
      %v843 = vld [vmem:[%s290 + $0xbc] sm:$0xf]
      %v844 = vld [vmem:[%s290 + $0xc0] sm:$0xf]
      %v845 = vld [vmem:[%s290 + $0xc4] sm:$0xf]
      %v846 = vld [vmem:[%s290 + $0xc8] sm:$0xf]
      %v847 = vld [vmem:[%s290 + $0xcc] sm:$0xf]
      %v848 = vld [vmem:[%s290 + $0xd0] sm:$0xf]
      %v849 = vld [vmem:[%s290 + $0xd4] sm:$0xf]
      %v850 = vld [vmem:[%s290 + $0xd8] sm:$0xf]
      %v851 = vld [vmem:[%s290 + $0xdc] sm:$0xf]
      %v852 = vld [vmem:[%s290 + $0xe0] sm:$0xf]
      %v853 = vld [vmem:[%s290 + $0xe4] sm:$0xf]
      %v854 = vld [vmem:[%s290 + $0xe8] sm:$0xf]
      %v855 = vld [vmem:[%s290 + $0xec] sm:$0xf]
      %v856 = vld [vmem:[%s290 + $0xf0] sm:$0xf]
      %v857 = vld [vmem:[%s290 + $0xf4] sm:$0xf]
      %v858 = vld [vmem:[%s290 + $0xf8] sm:$0xf]
      %v859 = vld [vmem:[%s290 + $0xfc] sm:$0xf]
      %v860 = vld [vmem:[%s290 + $0x100] sm:$0xf]
      %v861 = vld [vmem:[%s290 + $0x104] sm:$0xf]
      %v862 = vld [vmem:[%s290 + $0x108] sm:$0xf]
      %v863 = vld [vmem:[%s290 + $0x10c] sm:$0xf]
      %v864 = vld [vmem:[%s290 + $0x110] sm:$0xf]
      %v865 = vld [vmem:[%s290 + $0x114] sm:$0xf]
      %v866 = vld [vmem:[%s290 + $0x118] sm:$0xf]
      %v867 = vld [vmem:[%s290 + $0x11c] sm:$0xf]
      %v868 = vld [vmem:[%s290 + $0x120] sm:$0xf]
      %v869 = vld [vmem:[%s290 + $0x124] sm:$0xf]
      %v870 = vld [vmem:[%s290 + $0x128] sm:$0xf]
      %v871 = vld [vmem:[%s290 + $0x12c] sm:$0xf]
      %v872 = vld [vmem:[%s290 + $0x130] sm:$0xf]
      %v873 = vld [vmem:[%s290 + $0x134] sm:$0xf]
      %v874 = vld [vmem:[%s290 + $0x138] sm:$0xf]
      %v875 = vld [vmem:[%s290 + $0x13c] sm:$0xf]
      %v876 = vld [vmem:[%s290 + $0x140] sm:$0xf]
      %v877 = vld [vmem:[%s290 + $0x144] sm:$0xf]
      %v878 = vld [vmem:[%s290 + $0x148] sm:$0xf]
      %v879 = vld [vmem:[%s290 + $0x14c] sm:$0xf]
      %v880 = vld [vmem:[%s290 + $0x150] sm:$0xf]
      %v881 = vld [vmem:[%s290 + $0x154] sm:$0xf]
      %v882 = vld [vmem:[%s290 + $0x158] sm:$0xf]
      %v883 = vld [vmem:[%s290 + $0x15c] sm:$0xf]
      %v884 = vld [vmem:[%s290 + $0x160] sm:$0xf]
      %v885 = vld [vmem:[%s290 + $0x164] sm:$0xf]
      %v886 = vld [vmem:[%s290 + $0x168] sm:$0xf]
      %v887 = vld [vmem:[%s290 + $0x16c] sm:$0xf]
      %v888 = vld [vmem:[%s290 + $0x170] sm:$0xf]
      %v889 = vld [vmem:[%s290 + $0x174] sm:$0xf]
      %v890 = vld [vmem:[%s290 + $0x178] sm:$0xf]
      %v891 = vld [vmem:[%s290 + $0x17c] sm:$0xf]
      %v892 = vld [vmem:[%s290 + $0x180] sm:$0xf]
      %v893 = vld [vmem:[%s290 + $0x184] sm:$0xf]
      %v894 = vld [vmem:[%s290 + $0x188] sm:$0xf]
      %v895 = vld [vmem:[%s290 + $0x18c] sm:$0xf]
      %v896 = vld [vmem:[%s290 + $0x190] sm:$0xf]
      %v897 = vld [vmem:[%s290 + $0x194] sm:$0xf]
      %v898 = vld [vmem:[%s290 + $0x198] sm:$0xf]
      %v899 = vld [vmem:[%s290 + $0x19c] sm:$0xf]
      %v900 = vld [vmem:[%s290 + $0x1a0] sm:$0xf]
      %v901 = vld [vmem:[%s290 + $0x1a4] sm:$0xf]
      %v902 = vld [vmem:[%s290 + $0x1a8] sm:$0xf]
      %v903 = vld [vmem:[%s290 + $0x1ac] sm:$0xf]
      %v904 = vld [vmem:[%s290 + $0x1b0] sm:$0xf]
      %v905 = vld [vmem:[%s290 + $0x1b4] sm:$0xf]
      %v906 = vld [vmem:[%s290 + $0x1b8] sm:$0xf]
      %v907 = vld [vmem:[%s290 + $0x1bc] sm:$0xf]
      %v908 = vld [vmem:[%s290 + $0x1c0] sm:$0xf]
      %v909 = vld [vmem:[%s290 + $0x1c4] sm:$0xf]
      %v910 = vld [vmem:[%s290 + $0x1c8] sm:$0xf]
      %v911 = vld [vmem:[%s290 + $0x1cc] sm:$0xf]
      %v912 = vld [vmem:[%s290 + $0x1d0] sm:$0xf]
      %v913 = vld [vmem:[%s290 + $0x1d4] sm:$0xf]
      %v914 = vld [vmem:[%s290 + $0x1d8] sm:$0xf]
      %v915 = vld [vmem:[%s290 + $0x1dc] sm:$0xf]
      %v916 = vld [vmem:[%s290 + $0x1e0] sm:$0xf]
      %v917 = vld [vmem:[%s290 + $0x1e4] sm:$0xf]
      %v918 = vld [vmem:[%s290 + $0x1e8] sm:$0xf]
      %v919 = vld [vmem:[%s290 + $0x1ec] sm:$0xf]
      %v920 = vld [vmem:[%s290 + $0x1f0] sm:$0xf]
      %v921 = vld [vmem:[%s290 + $0x1f4] sm:$0xf]
      %v922 = vld [vmem:[%s290 + $0x1f8] sm:$0xf]
      %v923 = vld [vmem:[%s290 + $0x1fc] sm:$0xf]
      %v924 = vld [vmem:[%s290 + $0x200] sm:$0xf]
      %v925 = vld [vmem:[%s290 + $0x204] sm:$0xf]
      %v926 = vld [vmem:[%s290 + $0x208] sm:$0xf]
      %v927 = vld [vmem:[%s290 + $0x20c] sm:$0xf]
      %v928 = vld [vmem:[%s290 + $0x210] sm:$0xf]
      %v929 = vld [vmem:[%s290 + $0x214] sm:$0xf]
      %v930 = vld [vmem:[%s290 + $0x218] sm:$0xf]
      %v931 = vld [vmem:[%s290 + $0x21c] sm:$0xf]
      %v932 = vld [vmem:[%s290 + $0x220] sm:$0xf]
      %v933 = vld [vmem:[%s290 + $0x224] sm:$0xf]
      %v934 = vld [vmem:[%s290 + $0x228] sm:$0xf]
      %v935 = vld [vmem:[%s290 + $0x22c] sm:$0xf]
      %v936 = vld [vmem:[%s290 + $0x230] sm:$0xf]
      %v937 = vld [vmem:[%s290 + $0x234] sm:$0xf]
      %v938 = vld [vmem:[%s290 + $0x238] sm:$0xf]
      %v939 = vld [vmem:[%s290 + $0x23c] sm:$0xf]
      %v940 = vld [vmem:[%s293] sm:$0x1]
      %v942 = vlaneseq
      %v943 = vshrl.u32 %v942, 7
      %v944 = vsub.s32 0, %v943
      %v945 = vrot.slane %v940, %v944
      %v987 = vunpack.c.l.b16 %v756
      %v988 = vunpack.c.h.b16 %v756
      %v989 = vunpack.c.l.b16 %v757
      %v990 = vunpack.c.h.b16 %v757
      %v991 = vunpack.c.l.b16 %v758
      %v992 = vunpack.c.h.b16 %v758
      %v993 = vunpack.c.l.b16 %v759
      %v994 = vunpack.c.h.b16 %v759
      %v995 = vunpack.c.l.b16 %v760
      %v996 = vunpack.c.l.b16 %v761
      %v997 = vunpack.c.h.b16 %v761
      %v998 = vunpack.c.l.b16 %v762
      %v999 = vunpack.c.h.b16 %v762
      %v1000 = vunpack.c.l.b16 %v763
      %v1001 = vunpack.c.h.b16 %v763
      %v1002 = vunpack.c.l.b16 %v764
      %v1003 = vunpack.c.h.b16 %v764
      %v1004 = vunpack.c.l.b16 %v765
      %v1005 = vunpack.c.l.b16 %v766
      %v1006 = vunpack.c.h.b16 %v766
      %v1007 = vunpack.c.l.b16 %v767
      %v1008 = vunpack.c.h.b16 %v767
      %v1009 = vunpack.c.l.b16 %v768
      %v1010 = vunpack.c.h.b16 %v768
      %v1011 = vunpack.c.l.b16 %v769
      %v1012 = vunpack.c.h.b16 %v769
      %v1013 = vunpack.c.l.b16 %v770
      %v1014 = vunpack.c.l.b16 %v771
      %v1015 = vunpack.c.h.b16 %v771
      %v1016 = vunpack.c.l.b16 %v772
      %v1017 = vunpack.c.h.b16 %v772
      %v1018 = vunpack.c.l.b16 %v773
      %v1019 = vunpack.c.h.b16 %v773
      %v1020 = vunpack.c.l.b16 %v774
      %v1021 = vunpack.c.h.b16 %v774
      %v1022 = vunpack.c.l.b16 %v775
      %v1023 = vunpack.c.l.b16 %v776
      %v1024 = vunpack.c.h.b16 %v776
      %v1025 = vunpack.c.l.b16 %v777
      %v1026 = vunpack.c.h.b16 %v777
      %v1027 = vunpack.c.l.b16 %v778
      %v1028 = vunpack.c.h.b16 %v778
      %v1029 = vunpack.c.l.b16 %v779
      %v1030 = vunpack.c.h.b16 %v779
      %v1031 = vunpack.c.l.b16 %v780
      %v1032 = vunpack.c.l.b16 %v781
      %v1033 = vunpack.c.h.b16 %v781
      %v1034 = vunpack.c.l.b16 %v782
      %v1035 = vunpack.c.h.b16 %v782
      %v1036 = vunpack.c.l.b16 %v783
      %v1037 = vunpack.c.h.b16 %v783
      %v1038 = vunpack.c.l.b16 %v784
      %v1039 = vunpack.c.h.b16 %v784
      %v1040 = vunpack.c.l.b16 %v785
      %v1041 = vunpack.c.l.b16 %v786
      %v1042 = vunpack.c.h.b16 %v786
      %v1043 = vunpack.c.l.b16 %v787
      %v1044 = vunpack.c.h.b16 %v787
      %v1045 = vunpack.c.l.b16 %v788
      %v1046 = vunpack.c.h.b16 %v788
      %v1047 = vunpack.c.l.b16 %v789
      %v1048 = vunpack.c.h.b16 %v789
      %v1049 = vunpack.c.l.b16 %v790
      %v1050 = vunpack.c.l.b16 %v791
      %v1051 = vunpack.c.h.b16 %v791
      %v1052 = vunpack.c.l.b16 %v792
      %v1053 = vunpack.c.h.b16 %v792
      %v1054 = vunpack.c.l.b16 %v793
      %v1055 = vunpack.c.h.b16 %v793
      %v1056 = vunpack.c.l.b16 %v794
      %v1057 = vunpack.c.h.b16 %v794
      %v1058 = vunpack.c.l.b16 %v795
      %v1059 = vpack.c.b16 %v996, %v987
      %v1060 = vpack.c.b16 %v997, %v988
      %v1061 = vpack.c.b16 %v998, %v989
      %v1062 = vpack.c.b16 %v999, %v990
      %v1063 = vpack.c.b16 %v1000, %v991
      %v1064 = vpack.c.b16 %v1001, %v992
      %v1065 = vpack.c.b16 %v1002, %v993
      %v1066 = vpack.c.b16 %v1003, %v994
      %v1067 = vpack.c.b16 %v1004, %v995
      %v1068 = vpack.c.b16 %v1014, %v1005
      %v1069 = vpack.c.b16 %v1015, %v1006
      %v1070 = vpack.c.b16 %v1016, %v1007
      %v1071 = vpack.c.b16 %v1017, %v1008
      %v1072 = vpack.c.b16 %v1018, %v1009
      %v1073 = vpack.c.b16 %v1019, %v1010
      %v1074 = vpack.c.b16 %v1020, %v1011
      %v1075 = vpack.c.b16 %v1021, %v1012
      %v1076 = vpack.c.b16 %v1022, %v1013
      %v1077 = vpack.c.b16 %v1032, %v1023
      %v1078 = vpack.c.b16 %v1033, %v1024
      %v1079 = vpack.c.b16 %v1034, %v1025
      %v1080 = vpack.c.b16 %v1035, %v1026
      %v1081 = vpack.c.b16 %v1036, %v1027
      %v1082 = vpack.c.b16 %v1037, %v1028
      %v1083 = vpack.c.b16 %v1038, %v1029
      %v1084 = vpack.c.b16 %v1039, %v1030
      %v1085 = vpack.c.b16 %v1040, %v1031
      %v1086 = vpack.c.b16 %v1050, %v1041
      %v1087 = vpack.c.b16 %v1051, %v1042
      %v1088 = vpack.c.b16 %v1052, %v1043
      %v1089 = vpack.c.b16 %v1053, %v1044
      %v1090 = vpack.c.b16 %v1054, %v1045
      %v1091 = vpack.c.b16 %v1055, %v1046
      %v1092 = vpack.c.b16 %v1056, %v1047
      %v1093 = vpack.c.b16 %v1057, %v1048
      %v1094 = vpack.c.b16 %v1058, %v1049
      %v1275 = vunpack.c.l.b16 %v796
      %v1276 = vunpack.c.l.b16 %v797
      %v1277 = vunpack.c.l.b16 %v798
      %v1278 = vunpack.c.l.b16 %v799
      %v1279 = vunpack.c.l.b16 %v800
      %v1280 = vunpack.c.l.b16 %v801
      %v1281 = vunpack.c.l.b16 %v802
      %v1282 = vunpack.c.l.b16 %v803
      %v1283 = vunpack.c.l.b16 %v804
      %v1284 = vunpack.c.l.b16 %v805
      %v1285 = vunpack.c.l.b16 %v806
      %v1286 = vunpack.c.l.b16 %v807
      %v1287 = vunpack.c.l.b16 %v808
      %v1288 = vunpack.c.l.b16 %v809
      %v1289 = vunpack.c.l.b16 %v810
      %v1290 = vunpack.c.l.b16 %v811
      %v1291 = vunpack.c.l.b16 %v812
      %v1292 = vunpack.c.l.b16 %v813
      %v1293 = vunpack.c.l.b16 %v814
      %v1294 = vunpack.c.l.b16 %v815
      %v1295 = vunpack.c.l.b16 %v816
      %v1296 = vunpack.c.l.b16 %v817
      %v1297 = vunpack.c.l.b16 %v818
      %v1298 = vunpack.c.l.b16 %v819
      %v1299 = vunpack.c.l.b16 %v820
      %v1300 = vunpack.c.l.b16 %v821
      %v1301 = vunpack.c.l.b16 %v822
      %v1302 = vunpack.c.l.b16 %v823
      %v1303 = vunpack.c.l.b16 %v824
      %v1304 = vunpack.c.l.b16 %v825
      %v1305 = vunpack.c.l.b16 %v826
      %v1306 = vunpack.c.l.b16 %v827
      %v1307 = vunpack.c.l.b16 %v828
      %v1308 = vunpack.c.l.b16 %v829
      %v1309 = vunpack.c.l.b16 %v830
      %v1310 = vunpack.c.l.b16 %v831
      %v1311 = vunpack.c.l.b16 %v832
      %v1312 = vunpack.c.l.b16 %v833
      %v1313 = vunpack.c.l.b16 %v834
      %v1314 = vunpack.c.l.b16 %v835
      %v1315 = vunpack.c.l.b16 %v836
      %v1316 = vunpack.c.l.b16 %v837
      %v1317 = vunpack.c.l.b16 %v838
      %v1318 = vunpack.c.l.b16 %v839
      %v1319 = vunpack.c.l.b16 %v840
      %v1320 = vunpack.c.l.b16 %v841
      %v1321 = vunpack.c.l.b16 %v842
      %v1322 = vunpack.c.l.b16 %v843
      %v1323 = vunpack.c.l.b16 %v844
      %v1324 = vunpack.c.l.b16 %v845
      %v1325 = vunpack.c.l.b16 %v846
      %v1326 = vunpack.c.l.b16 %v847
      %v1327 = vunpack.c.l.b16 %v848
      %v1328 = vunpack.c.l.b16 %v849
      %v1329 = vunpack.c.l.b16 %v850
      %v1330 = vunpack.c.l.b16 %v851
      %v1331 = vunpack.c.l.b16 %v852
      %v1332 = vunpack.c.l.b16 %v853
      %v1333 = vunpack.c.l.b16 %v854
      %v1334 = vunpack.c.l.b16 %v855
      %v1335 = vunpack.c.l.b16 %v856
      %v1336 = vunpack.c.l.b16 %v857
      %v1337 = vunpack.c.l.b16 %v858
      %v1338 = vunpack.c.l.b16 %v859
      %v1339 = vunpack.c.l.b16 %v860
      %v1340 = vunpack.c.l.b16 %v861
      %v1341 = vunpack.c.l.b16 %v862
      %v1342 = vunpack.c.l.b16 %v863
      %v1343 = vunpack.c.l.b16 %v864
      %v1344 = vunpack.c.l.b16 %v865
      %v1345 = vunpack.c.l.b16 %v866
      %v1346 = vunpack.c.l.b16 %v867
      %v1347 = vunpack.c.l.b16 %v868
      %v1348 = vunpack.c.l.b16 %v869
      %v1349 = vunpack.c.l.b16 %v870
      %v1350 = vunpack.c.l.b16 %v871
      %v1351 = vunpack.c.l.b16 %v872
      %v1352 = vunpack.c.l.b16 %v873
      %v1353 = vunpack.c.l.b16 %v874
      %v1354 = vunpack.c.l.b16 %v875
      %v1355 = vunpack.c.l.b16 %v876
      %v1356 = vunpack.c.l.b16 %v877
      %v1357 = vunpack.c.l.b16 %v878
      %v1358 = vunpack.c.l.b16 %v879
      %v1359 = vunpack.c.l.b16 %v880
      %v1360 = vunpack.c.l.b16 %v881
      %v1361 = vunpack.c.l.b16 %v882
      %v1362 = vunpack.c.l.b16 %v883
      %v1363 = vunpack.c.l.b16 %v884
      %v1364 = vunpack.c.l.b16 %v885
      %v1365 = vunpack.c.l.b16 %v886
      %v1366 = vunpack.c.l.b16 %v887
      %v1367 = vunpack.c.l.b16 %v888
      %v1368 = vunpack.c.l.b16 %v889
      %v1369 = vunpack.c.l.b16 %v890
      %v1370 = vunpack.c.l.b16 %v891
      %v1371 = vunpack.c.l.b16 %v892
      %v1372 = vunpack.c.l.b16 %v893
      %v1373 = vunpack.c.l.b16 %v894
      %v1374 = vunpack.c.l.b16 %v895
      %v1375 = vunpack.c.l.b16 %v896
      %v1376 = vunpack.c.l.b16 %v897
      %v1377 = vunpack.c.l.b16 %v898
      %v1378 = vunpack.c.l.b16 %v899
      %v1379 = vunpack.c.l.b16 %v900
      %v1380 = vunpack.c.l.b16 %v901
      %v1381 = vunpack.c.l.b16 %v902
      %v1382 = vunpack.c.l.b16 %v903
      %v1383 = vunpack.c.l.b16 %v904
      %v1384 = vunpack.c.l.b16 %v905
      %v1385 = vunpack.c.l.b16 %v906
      %v1386 = vunpack.c.l.b16 %v907
      %v1387 = vunpack.c.l.b16 %v908
      %v1388 = vunpack.c.l.b16 %v909
      %v1389 = vunpack.c.l.b16 %v910
      %v1390 = vunpack.c.l.b16 %v911
      %v1391 = vunpack.c.l.b16 %v912
      %v1392 = vunpack.c.l.b16 %v913
      %v1393 = vunpack.c.l.b16 %v914
      %v1394 = vunpack.c.l.b16 %v915
      %v1395 = vunpack.c.l.b16 %v916
      %v1396 = vunpack.c.l.b16 %v917
      %v1397 = vunpack.c.l.b16 %v918
      %v1398 = vunpack.c.l.b16 %v919
      %v1399 = vunpack.c.l.b16 %v920
      %v1400 = vunpack.c.l.b16 %v921
      %v1401 = vunpack.c.l.b16 %v922
      %v1402 = vunpack.c.l.b16 %v923
      %v1403 = vunpack.c.l.b16 %v924
      %v1404 = vunpack.c.l.b16 %v925
      %v1405 = vunpack.c.l.b16 %v926
      %v1406 = vunpack.c.l.b16 %v927
      %v1407 = vunpack.c.l.b16 %v928
      %v1408 = vunpack.c.l.b16 %v929
      %v1409 = vunpack.c.l.b16 %v930
      %v1410 = vunpack.c.l.b16 %v931
      %v1411 = vunpack.c.l.b16 %v932
      %v1412 = vunpack.c.l.b16 %v933
      %v1413 = vunpack.c.l.b16 %v934
      %v1414 = vunpack.c.l.b16 %v935
      %v1415 = vunpack.c.l.b16 %v936
      %v1416 = vunpack.c.l.b16 %v937
      %v1417 = vunpack.c.l.b16 %v938
      %v1418 = vunpack.c.l.b16 %v939
      %v1419 = vpack.c.b16 %v1276, %v1275
      %v1420 = vpack.c.b16 %v1278, %v1277
      %v1421 = vpack.c.b16 %v1280, %v1279
      %v1422 = vpack.c.b16 %v1282, %v1281
      %v1423 = vpack.c.b16 %v1284, %v1283
      %v1424 = vpack.c.b16 %v1286, %v1285
      %v1425 = vpack.c.b16 %v1288, %v1287
      %v1426 = vpack.c.b16 %v1290, %v1289
      %v1427 = vpack.c.b16 %v1292, %v1291
      %v1428 = vpack.c.b16 %v1294, %v1293
      %v1429 = vpack.c.b16 %v1296, %v1295
      %v1430 = vpack.c.b16 %v1298, %v1297
      %v1431 = vpack.c.b16 %v1300, %v1299
      %v1432 = vpack.c.b16 %v1302, %v1301
      %v1433 = vpack.c.b16 %v1304, %v1303
      %v1434 = vpack.c.b16 %v1306, %v1305
      %v1435 = vpack.c.b16 %v1308, %v1307
      %v1436 = vpack.c.b16 %v1310, %v1309
      %v1437 = vpack.c.b16 %v1312, %v1311
      %v1438 = vpack.c.b16 %v1314, %v1313
      %v1439 = vpack.c.b16 %v1316, %v1315
      %v1440 = vpack.c.b16 %v1318, %v1317
      %v1441 = vpack.c.b16 %v1320, %v1319
      %v1442 = vpack.c.b16 %v1322, %v1321
      %v1443 = vpack.c.b16 %v1324, %v1323
      %v1444 = vpack.c.b16 %v1326, %v1325
      %v1445 = vpack.c.b16 %v1328, %v1327
      %v1446 = vpack.c.b16 %v1330, %v1329
      %v1447 = vpack.c.b16 %v1332, %v1331
      %v1448 = vpack.c.b16 %v1334, %v1333
      %v1449 = vpack.c.b16 %v1336, %v1335
      %v1450 = vpack.c.b16 %v1338, %v1337
      %v1451 = vpack.c.b16 %v1340, %v1339
      %v1452 = vpack.c.b16 %v1342, %v1341
      %v1453 = vpack.c.b16 %v1344, %v1343
      %v1454 = vpack.c.b16 %v1346, %v1345
      %v1455 = vpack.c.b16 %v1348, %v1347
      %v1456 = vpack.c.b16 %v1350, %v1349
      %v1457 = vpack.c.b16 %v1352, %v1351
      %v1458 = vpack.c.b16 %v1354, %v1353
      %v1459 = vpack.c.b16 %v1356, %v1355
      %v1460 = vpack.c.b16 %v1358, %v1357
      %v1461 = vpack.c.b16 %v1360, %v1359
      %v1462 = vpack.c.b16 %v1362, %v1361
      %v1463 = vpack.c.b16 %v1364, %v1363
      %v1464 = vpack.c.b16 %v1366, %v1365
      %v1465 = vpack.c.b16 %v1368, %v1367
      %v1466 = vpack.c.b16 %v1370, %v1369
      %v1467 = vpack.c.b16 %v1372, %v1371
      %v1468 = vpack.c.b16 %v1374, %v1373
      %v1469 = vpack.c.b16 %v1376, %v1375
      %v1470 = vpack.c.b16 %v1378, %v1377
      %v1471 = vpack.c.b16 %v1380, %v1379
      %v1472 = vpack.c.b16 %v1382, %v1381
      %v1473 = vpack.c.b16 %v1384, %v1383
      %v1474 = vpack.c.b16 %v1386, %v1385
      %v1475 = vpack.c.b16 %v1388, %v1387
      %v1476 = vpack.c.b16 %v1390, %v1389
      %v1477 = vpack.c.b16 %v1392, %v1391
      %v1478 = vpack.c.b16 %v1394, %v1393
      %v1479 = vpack.c.b16 %v1396, %v1395
      %v1480 = vpack.c.b16 %v1398, %v1397
      %v1481 = vpack.c.b16 %v1400, %v1399
      %v1482 = vpack.c.b16 %v1402, %v1401
      %v1483 = vpack.c.b16 %v1404, %v1403
      %v1484 = vpack.c.b16 %v1406, %v1405
      %v1485 = vpack.c.b16 %v1408, %v1407
      %v1486 = vpack.c.b16 %v1410, %v1409
      %v1487 = vpack.c.b16 %v1412, %v1411
      %v1488 = vpack.c.b16 %v1414, %v1413
      %v1489 = vpack.c.b16 %v1416, %v1415
      %v1490 = vpack.c.b16 %v1418, %v1417
      %1563 = vmatprep.subr.bf16.mxu0 0
      %1564 = vmatpush1.bf16.msra.mxu0 %v1426
      %1565 = vmatprep.subr.bf16.mxu0 0
      %1566 = vmatpush1.bf16.msra.mxu0 %v1425
      %1567 = vmatprep.subr.bf16.mxu0 0
      %1568 = vmatpush1.bf16.msra.mxu0 %v1424
      %1569 = vmatprep.subr.bf16.mxu0 0
      %1570 = vmatpush1.bf16.msra.mxu0 %v1423
      %1571 = vmatprep.subr.bf16.mxu0 0
      %1572 = vmatpush1.bf16.msra.mxu0 %v1422
      %1573 = vmatprep.subr.bf16.mxu0 0
      %1574 = vmatpush1.bf16.msra.mxu0 %v1421
      %1575 = vmatprep.subr.bf16.mxu0 0
      %1576 = vmatpush1.bf16.msra.mxu0 %v1420
      %1577 = vmatprep.subr.bf16.mxu0 0
      %1578 = vmatpush1.bf16.msra.mxu0 %v1419
      %1579 = vmatprep.subr.bf16.mxu0 0
      %1580 = vmatpush2.bf16.msra.mxu0 %v1434
      %1581 = vmatprep.subr.bf16.mxu0 0
      %1582 = vmatpush2.bf16.msra.mxu0 %v1433
      %1583 = vmatprep.subr.bf16.mxu0 0
      %1584 = vmatpush2.bf16.msra.mxu0 %v1432
      %1585 = vmatprep.subr.bf16.mxu0 0
      %1586 = vmatpush2.bf16.msra.mxu0 %v1431
      %1587 = vmatprep.subr.bf16.mxu0 0
      %1588 = vmatpush2.bf16.msra.mxu0 %v1430
      %1589 = vmatprep.subr.bf16.mxu0 0
      %1590 = vmatpush2.bf16.msra.mxu0 %v1429
      %1591 = vmatprep.subr.bf16.mxu0 0
      %1592 = vmatpush2.bf16.msra.mxu0 %v1428
      %1593 = vmatprep.subr.bf16.mxu0 0
      %1594 = vmatpush2.bf16.msra.mxu0 %v1427
      %1595 = vmatprep.mubr.bf16.mxu0 %v1060
      %1596 = vmatmul.mubr.bf16.gmra.mxu0 %v1059
      %v1597 = vpop.f32.mrf.mxu0
      %v1598 = vadd.f32 %v945, %v1597
      %v1599 = vpop.f32.mrf.mxu0
      %v1600 = vpop.f32.mrf.mxu0
      %v1601 = vadd.f32 %v945, %v1600
      %v1602 = vpop.f32.mrf.mxu0
      %1603 = vmatprep.mubr.bf16.mxu0 %v1069
      %1604 = vmatmul.mubr.bf16.gmra.mxu0 %v1068
      %v1605 = vpop.f32.mrf.mxu0
      %v1606 = vadd.f32 %v945, %v1605
      %v1607 = vpop.f32.mrf.mxu0
      %v1608 = vpop.f32.mrf.mxu0
      %v1609 = vadd.f32 %v945, %v1608
      %v1610 = vpop.f32.mrf.mxu0
      %1611 = vmatprep.mubr.bf16.mxu0 %v1078
      %1612 = vmatmul.mubr.bf16.gmra.mxu0 %v1077
      %v1613 = vpop.f32.mrf.mxu0
      %v1614 = vadd.f32 %v945, %v1613
      %v1615 = vpop.f32.mrf.mxu0
      %v1616 = vpop.f32.mrf.mxu0
      %v1617 = vadd.f32 %v945, %v1616
      %v1618 = vpop.f32.mrf.mxu0
      %1619 = vmatprep.mubr.bf16.mxu0 %v1087
      %1620 = vmatmul.mubr.bf16.gmra.mxu0 %v1086
      %v1621 = vpop.f32.mrf.mxu0
      %v1622 = vadd.f32 %v945, %v1621
      %v1623 = vpop.f32.mrf.mxu0
      %v1624 = vpop.f32.mrf.mxu0
      %v1625 = vadd.f32 %v945, %v1624
      %v1626 = vpop.f32.mrf.mxu0
      %1627 = vdwg.mxu0
      %1628 = vmatprep.subr.bf16.mxu0 0
      %1629 = vmatpush1.bf16.msra.mxu0 %v1442
      %1630 = vmatprep.subr.bf16.mxu0 0
      %1631 = vmatpush1.bf16.msra.mxu0 %v1441
      %1632 = vmatprep.subr.bf16.mxu0 0
      %1633 = vmatpush1.bf16.msra.mxu0 %v1440
      %1634 = vmatprep.subr.bf16.mxu0 0
      %1635 = vmatpush1.bf16.msra.mxu0 %v1439
      %1636 = vmatprep.subr.bf16.mxu0 0
      %1637 = vmatpush1.bf16.msra.mxu0 %v1438
      %1638 = vmatprep.subr.bf16.mxu0 0
      %1639 = vmatpush1.bf16.msra.mxu0 %v1437
      %1640 = vmatprep.subr.bf16.mxu0 0
      %1641 = vmatpush1.bf16.msra.mxu0 %v1436
      %1642 = vmatprep.subr.bf16.mxu0 0
      %1643 = vmatpush1.bf16.msra.mxu0 %v1435
      %1644 = vmatprep.subr.bf16.mxu0 0
      %1645 = vmatpush2.bf16.msra.mxu0 %v1450
      %1646 = vmatprep.subr.bf16.mxu0 0
      %1647 = vmatpush2.bf16.msra.mxu0 %v1449
      %1648 = vmatprep.subr.bf16.mxu0 0
      %1649 = vmatpush2.bf16.msra.mxu0 %v1448
      %1650 = vmatprep.subr.bf16.mxu0 0
      %1651 = vmatpush2.bf16.msra.mxu0 %v1447
      %1652 = vmatprep.subr.bf16.mxu0 0
      %1653 = vmatpush2.bf16.msra.mxu0 %v1446
      %1654 = vmatprep.subr.bf16.mxu0 0
      %1655 = vmatpush2.bf16.msra.mxu0 %v1445
      %1656 = vmatprep.subr.bf16.mxu0 0
      %1657 = vmatpush2.bf16.msra.mxu0 %v1444
      %1658 = vmatprep.subr.bf16.mxu0 0
      %1659 = vmatpush2.bf16.msra.mxu0 %v1443
      %1660 = vmatprep.mubr.bf16.mxu0 %v1062
      %1661 = vmatmul.mubr.bf16.gmra.mxu0 %v1061
      %v1662 = vpop.f32.mrf.mxu0
      %v1663 = vadd.f32 %v1598, %v1662
      %v1664 = vpop.f32.mrf.mxu0
      %v1665 = vpop.f32.mrf.mxu0
      %v1666 = vadd.f32 %v1601, %v1665
      %v1667 = vpop.f32.mrf.mxu0
      %1668 = vmatprep.mubr.bf16.mxu0 %v1071
      %1669 = vmatmul.mubr.bf16.gmra.mxu0 %v1070
      %v1670 = vpop.f32.mrf.mxu0
      %v1671 = vadd.f32 %v1606, %v1670
      %v1672 = vpop.f32.mrf.mxu0
      %v1673 = vpop.f32.mrf.mxu0
      %v1674 = vadd.f32 %v1609, %v1673
      %v1675 = vpop.f32.mrf.mxu0
      %1676 = vmatprep.mubr.bf16.mxu0 %v1080
      %1677 = vmatmul.mubr.bf16.gmra.mxu0 %v1079
      %v1678 = vpop.f32.mrf.mxu0
      %v1679 = vadd.f32 %v1614, %v1678
      %v1680 = vpop.f32.mrf.mxu0
      %v1681 = vpop.f32.mrf.mxu0
      %v1682 = vadd.f32 %v1617, %v1681
      %v1683 = vpop.f32.mrf.mxu0
      %1684 = vmatprep.mubr.bf16.mxu0 %v1089
      %1685 = vmatmul.mubr.bf16.gmra.mxu0 %v1088
      %v1686 = vpop.f32.mrf.mxu0
      %v1687 = vadd.f32 %v1622, %v1686
      %v1688 = vpop.f32.mrf.mxu0
      %v1689 = vpop.f32.mrf.mxu0
      %v1690 = vadd.f32 %v1625, %v1689
      %v1691 = vpop.f32.mrf.mxu0
      %1692 = vdwg.mxu0
      %1693 = vmatprep.subr.bf16.mxu0 0
      %1694 = vmatpush1.bf16.msra.mxu0 %v1458
      %1695 = vmatprep.subr.bf16.mxu0 0
      %1696 = vmatpush1.bf16.msra.mxu0 %v1457
      %1697 = vmatprep.subr.bf16.mxu0 0
      %1698 = vmatpush1.bf16.msra.mxu0 %v1456
      %1699 = vmatprep.subr.bf16.mxu0 0
      %1700 = vmatpush1.bf16.msra.mxu0 %v1455
      %1701 = vmatprep.subr.bf16.mxu0 0
      %1702 = vmatpush1.bf16.msra.mxu0 %v1454
      %1703 = vmatprep.subr.bf16.mxu0 0
      %1704 = vmatpush1.bf16.msra.mxu0 %v1453
      %1705 = vmatprep.subr.bf16.mxu0 0
      %1706 = vmatpush1.bf16.msra.mxu0 %v1452
      %1707 = vmatprep.subr.bf16.mxu0 0
      %1708 = vmatpush1.bf16.msra.mxu0 %v1451
      %1709 = vmatprep.subr.bf16.mxu0 0
      %1710 = vmatpush2.bf16.msra.mxu0 %v1466
      %1711 = vmatprep.subr.bf16.mxu0 0
      %1712 = vmatpush2.bf16.msra.mxu0 %v1465
      %1713 = vmatprep.subr.bf16.mxu0 0
      %1714 = vmatpush2.bf16.msra.mxu0 %v1464
      %1715 = vmatprep.subr.bf16.mxu0 0
      %1716 = vmatpush2.bf16.msra.mxu0 %v1463
      %1717 = vmatprep.subr.bf16.mxu0 0
      %1718 = vmatpush2.bf16.msra.mxu0 %v1462
      %1719 = vmatprep.subr.bf16.mxu0 0
      %1720 = vmatpush2.bf16.msra.mxu0 %v1461
      %1721 = vmatprep.subr.bf16.mxu0 0
      %1722 = vmatpush2.bf16.msra.mxu0 %v1460
      %1723 = vmatprep.subr.bf16.mxu0 0
      %1724 = vmatpush2.bf16.msra.mxu0 %v1459
      %1725 = vmatprep.mubr.bf16.mxu0 %v1064
      %1726 = vmatmul.mubr.bf16.gmra.mxu0 %v1063
      %v1727 = vpop.f32.mrf.mxu0
      %v1728 = vadd.f32 %v1663, %v1727
      %v1729 = vpop.f32.mrf.mxu0
      %v1730 = vpop.f32.mrf.mxu0
      %v1731 = vadd.f32 %v1666, %v1730
      %v1732 = vpop.f32.mrf.mxu0
      %1733 = vmatprep.mubr.bf16.mxu0 %v1073
      %1734 = vmatmul.mubr.bf16.gmra.mxu0 %v1072
      %v1735 = vpop.f32.mrf.mxu0
      %v1736 = vadd.f32 %v1671, %v1735
      %v1737 = vpop.f32.mrf.mxu0
      %v1738 = vpop.f32.mrf.mxu0
      %v1739 = vadd.f32 %v1674, %v1738
      %v1740 = vpop.f32.mrf.mxu0
      %1741 = vmatprep.mubr.bf16.mxu0 %v1082
      %1742 = vmatmul.mubr.bf16.gmra.mxu0 %v1081
      %v1743 = vpop.f32.mrf.mxu0
      %v1744 = vadd.f32 %v1679, %v1743
      %v1745 = vpop.f32.mrf.mxu0
      %v1746 = vpop.f32.mrf.mxu0
      %v1747 = vadd.f32 %v1682, %v1746
      %v1748 = vpop.f32.mrf.mxu0
      %1749 = vmatprep.mubr.bf16.mxu0 %v1091
      %1750 = vmatmul.mubr.bf16.gmra.mxu0 %v1090
      %v1751 = vpop.f32.mrf.mxu0
      %v1752 = vadd.f32 %v1687, %v1751
      %v1753 = vpop.f32.mrf.mxu0
      %v1754 = vpop.f32.mrf.mxu0
      %v1755 = vadd.f32 %v1690, %v1754
      %v1756 = vpop.f32.mrf.mxu0
      %1757 = vdwg.mxu0
      %1758 = vmatprep.subr.bf16.mxu0 0
      %1759 = vmatpush1.bf16.msra.mxu0 %v1474
      %1760 = vmatprep.subr.bf16.mxu0 0
      %1761 = vmatpush1.bf16.msra.mxu0 %v1473
      %1762 = vmatprep.subr.bf16.mxu0 0
      %1763 = vmatpush1.bf16.msra.mxu0 %v1472
      %1764 = vmatprep.subr.bf16.mxu0 0
      %1765 = vmatpush1.bf16.msra.mxu0 %v1471
      %1766 = vmatprep.subr.bf16.mxu0 0
      %1767 = vmatpush1.bf16.msra.mxu0 %v1470
      %1768 = vmatprep.subr.bf16.mxu0 0
      %1769 = vmatpush1.bf16.msra.mxu0 %v1469
      %1770 = vmatprep.subr.bf16.mxu0 0
      %1771 = vmatpush1.bf16.msra.mxu0 %v1468
      %1772 = vmatprep.subr.bf16.mxu0 0
      %1773 = vmatpush1.bf16.msra.mxu0 %v1467
      %1774 = vmatprep.subr.bf16.mxu0 0
      %1775 = vmatpush2.bf16.msra.mxu0 %v1482
      %1776 = vmatprep.subr.bf16.mxu0 0
      %1777 = vmatpush2.bf16.msra.mxu0 %v1481
      %1778 = vmatprep.subr.bf16.mxu0 0
      %1779 = vmatpush2.bf16.msra.mxu0 %v1480
      %1780 = vmatprep.subr.bf16.mxu0 0
      %1781 = vmatpush2.bf16.msra.mxu0 %v1479
      %1782 = vmatprep.subr.bf16.mxu0 0
      %1783 = vmatpush2.bf16.msra.mxu0 %v1478
      %1784 = vmatprep.subr.bf16.mxu0 0
      %1785 = vmatpush2.bf16.msra.mxu0 %v1477
      %1786 = vmatprep.subr.bf16.mxu0 0
      %1787 = vmatpush2.bf16.msra.mxu0 %v1476
      %1788 = vmatprep.subr.bf16.mxu0 0
      %1789 = vmatpush2.bf16.msra.mxu0 %v1475
      %1790 = vmatprep.mubr.bf16.mxu0 %v1066
      %1791 = vmatmul.mubr.bf16.gmra.mxu0 %v1065
      %v1792 = vpop.f32.mrf.mxu0
      %v1793 = vadd.f32 %v1728, %v1792
      %v1794 = vpop.f32.mrf.mxu0
      %v1795 = vpop.f32.mrf.mxu0
      %v1796 = vadd.f32 %v1731, %v1795
      %v1797 = vpop.f32.mrf.mxu0
      %1798 = vmatprep.mubr.bf16.mxu0 %v1075
      %1799 = vmatmul.mubr.bf16.gmra.mxu0 %v1074
      %v1800 = vpop.f32.mrf.mxu0
      %v1801 = vadd.f32 %v1736, %v1800
      %v1802 = vpop.f32.mrf.mxu0
      %v1803 = vpop.f32.mrf.mxu0
      %v1804 = vadd.f32 %v1739, %v1803
      %v1805 = vpop.f32.mrf.mxu0
      %1806 = vmatprep.mubr.bf16.mxu0 %v1084
      %1807 = vmatmul.mubr.bf16.gmra.mxu0 %v1083
      %v1808 = vpop.f32.mrf.mxu0
      %v1809 = vadd.f32 %v1744, %v1808
      %v1810 = vpop.f32.mrf.mxu0
      %v1811 = vpop.f32.mrf.mxu0
      %v1812 = vadd.f32 %v1747, %v1811
      %v1813 = vpop.f32.mrf.mxu0
      %1814 = vmatprep.mubr.bf16.mxu0 %v1093
      %1815 = vmatmul.mubr.bf16.gmra.mxu0 %v1092
      %v1816 = vpop.f32.mrf.mxu0
      %v1817 = vadd.f32 %v1752, %v1816
      %v1818 = vpop.f32.mrf.mxu0
      %v1819 = vpop.f32.mrf.mxu0
      %v1820 = vadd.f32 %v1755, %v1819
      %v1821 = vpop.f32.mrf.mxu0
      %1822 = vdwg.mxu0
      %1823 = vmatprep.subr.bf16.mxu0 0
      %1824 = vmatpush1.bf16.msra.mxu0 %v1490
      %1825 = vmatprep.subr.bf16.mxu0 0
      %1826 = vmatpush1.bf16.msra.mxu0 %v1489
      %1827 = vmatprep.subr.bf16.mxu0 0
      %1828 = vmatpush1.bf16.msra.mxu0 %v1488
      %1829 = vmatprep.subr.bf16.mxu0 0
      %1830 = vmatpush1.bf16.msra.mxu0 %v1487
      %1831 = vmatprep.subr.bf16.mxu0 0
      %1832 = vmatpush1.bf16.msra.mxu0 %v1486
      %1833 = vmatprep.subr.bf16.mxu0 0
      %1834 = vmatpush1.bf16.msra.mxu0 %v1485
      %1835 = vmatprep.subr.bf16.mxu0 0
      %1836 = vmatpush1.bf16.msra.mxu0 %v1484
      %1837 = vmatprep.subr.bf16.mxu0 0
      %1838 = vmatpush1.bf16.msra.mxu0 %v1483
      %1839 = vmatprep.subr.bf16.mxu0 0
      %1840 = vmatpush2.bf16.msra.mxu0 0
      %1841 = vmatprep.subr.bf16.mxu0 0
      %1842 = vmatpush2.bf16.msra.mxu0 0
      %1843 = vmatprep.subr.bf16.mxu0 0
      %1844 = vmatpush2.bf16.msra.mxu0 0
      %1845 = vmatprep.subr.bf16.mxu0 0
      %1846 = vmatpush2.bf16.msra.mxu0 0
      %1847 = vmatprep.subr.bf16.mxu0 0
      %1848 = vmatpush2.bf16.msra.mxu0 0
      %1849 = vmatprep.subr.bf16.mxu0 0
      %1850 = vmatpush2.bf16.msra.mxu0 0
      %1851 = vmatprep.subr.bf16.mxu0 0
      %1852 = vmatpush2.bf16.msra.mxu0 0
      %1853 = vmatprep.subr.bf16.mxu0 0
      %1854 = vmatpush2.bf16.msra.mxu0 0
      %1855 = vmatprep.mubr.bf16.mxu0 0
      %1856 = vmatmul.mubr.bf16.gmra.mxu0 %v1067
      %v1857 = vpop.f32.mrf.mxu0
      %v1858 = vadd.f32 %v1793, %v1857
      %v1859 = vpop.f32.mrf.mxu0
      %v1860 = vpop.f32.mrf.mxu0
      %v1861 = vadd.f32 %v1796, %v1860
      %v1862 = vpop.f32.mrf.mxu0
      %1863 = vmatprep.mubr.bf16.mxu0 0
      %1864 = vmatmul.mubr.bf16.gmra.mxu0 %v1076
      %v1865 = vpop.f32.mrf.mxu0
      %v1866 = vadd.f32 %v1801, %v1865
      %v1867 = vpop.f32.mrf.mxu0
      %v1868 = vpop.f32.mrf.mxu0
      %v1869 = vadd.f32 %v1804, %v1868
      %v1870 = vpop.f32.mrf.mxu0
      %1871 = vmatprep.mubr.bf16.mxu0 0
      %1872 = vmatmul.mubr.bf16.gmra.mxu0 %v1085
      %v1873 = vpop.f32.mrf.mxu0
      %v1874 = vadd.f32 %v1809, %v1873
      %v1875 = vpop.f32.mrf.mxu0
      %v1876 = vpop.f32.mrf.mxu0
      %v1877 = vadd.f32 %v1812, %v1876
      %v1878 = vpop.f32.mrf.mxu0
      %1879 = vmatprep.mubr.bf16.mxu0 0
      %1880 = vmatmul.mubr.bf16.gmra.mxu0 %v1094
      %v1881 = vpop.f32.mrf.mxu0
      %v1882 = vadd.f32 %v1817, %v1881
      %v1883 = vpop.f32.mrf.mxu0
      %v1884 = vpop.f32.mrf.mxu0
      %v1885 = vadd.f32 %v1820, %v1884
      %v1886 = vpop.f32.mrf.mxu0
      %1887 = vdwg.mxu0
      %v1888 = vadd.f32 %v1858, %v1861
      %v1889 = vadd.f32 %v1888, %v1866
      %v1890 = vadd.f32 %v1889, %v1869
      %v1891 = vadd.f32 %v1890, %v1874
      %v1892 = vadd.f32 %v1891, %v1877
      %v1893 = vadd.f32 %v1892, %v1882
      %v1894 = vadd.f32 %v1893, %v1885
      %v1895 = vrot.slane %v1894, 4
      %v1896 = vadd.f32 %v1894, %v1895
      %v1897 = vrot.slane %v1896, 2
      %v1898 = vadd.f32 %v1896, %v1897
      %v1899 = vrot.slane %v1898, 1
      %v1900 = vadd.f32 %v1898, %v1899
      %1901 = vst [vmem:[%s307] sm:$0x1] %v1900
      %v1902 = vmul.f32 %v1858, %v1858
      %v1903 = vmul.f32 %v1861, %v1861
      %v1904 = vmul.f32 %v1866, %v1866
      %v1905 = vmul.f32 %v1869, %v1869
      %v1906 = vmul.f32 %v1874, %v1874
      %v1907 = vmul.f32 %v1877, %v1877
      %v1908 = vmul.f32 %v1882, %v1882
      %v1909 = vmul.f32 %v1885, %v1885
      %v1910 = vadd.f32 %v1902, %v1903
      %v1911 = vadd.f32 %v1910, %v1904
      %v1912 = vadd.f32 %v1911, %v1905
      %v1913 = vadd.f32 %v1912, %v1906
      %v1914 = vadd.f32 %v1913, %v1907
      %v1915 = vadd.f32 %v1914, %v1908
      %v1916 = vadd.f32 %v1915, %v1909
      %v1917 = vrot.slane %v1916, 4
      %v1918 = vadd.f32 %v1916, %v1917
      %v1919 = vrot.slane %v1918, 2
      %v1920 = vadd.f32 %v1918, %v1919
      %v1921 = vrot.slane %v1920, 1
      %v1922 = vadd.f32 %v1920, %v1921
      %1923 = vst [vmem:[%s313] sm:$0x1] %v1922
      %v1924 = vpack.c.bf16 %v1861, %v1858
      %v1925 = vpack.c.bf16 %v1869, %v1866
      %v1926 = vpack.c.bf16 %v1877, %v1874
      %v1927 = vpack.c.bf16 %v1885, %v1882
      %v1932 = vunpack.c.l.b16 %v1924
      %v1933 = vunpack.c.h.b16 %v1924
      %v1934 = vunpack.c.l.b16 %v1925
      %v1935 = vunpack.c.h.b16 %v1925
      %v1936 = vunpack.c.l.b16 %v1926
      %v1937 = vunpack.c.h.b16 %v1926
      %v1938 = vunpack.c.l.b16 %v1927
      %v1939 = vunpack.c.h.b16 %v1927
      %v1940 = vpack.c.b16 %v1932, %v1932
      %v1941 = vpack.c.b16 %v1933, %v1933
      %v1942 = vpack.c.b16 %v1934, %v1934
      %v1943 = vpack.c.b16 %v1935, %v1935
      %v1944 = vpack.c.b16 %v1936, %v1936
      %v1945 = vpack.c.b16 %v1937, %v1937
      %v1946 = vpack.c.b16 %v1938, %v1938
      %v1947 = vpack.c.b16 %v1939, %v1939
      %1956 = vst [vmem:[%s301] sm:$0xf] %v1940
      %1957 = vst [vmem:[%s301 + $0x4] sm:$0xf] %v1941
      %1958 = vst [vmem:[%s301 + $0x8] sm:$0xf] %v1942
      %1959 = vst [vmem:[%s301 + $0xc] sm:$0xf] %v1943
      %1960 = vst [vmem:[%s301 + $0x10] sm:$0xf] %v1944
      %1961 = vst [vmem:[%s301 + $0x14] sm:$0xf] %v1945
      %1962 = vst [vmem:[%s301 + $0x18] sm:$0xf] %v1946
      %1963 = vst [vmem:[%s301 + $0x1c] sm:$0xf] %v1947
      %p1964 = scmp.lt.s32.totalorder %s21, 1
      %s1965 = scalar_select %p1964, %s21, 1
      %p1966 = scmp.lt.s32.totalorder %s22, 0
      %s1967 = scalar_select %p1966, %s22, 0
      %s1968 = smul.addr %s1965, 8
      %s1969 = sadd.s32 %s1967, %s1968
      %s1970 = smul.addr %s1969, 4
      %s1971 = scalar_lea.vmem %s3, %s1970
      %p1972 = scmp.lt.s32.totalorder %s21, 1
      %s1973 = scalar_select %p1972, %s21, 1
      %p1974 = scmp.lt.s32.totalorder %s22, 0
      %s1975 = scalar_select %p1974, %s22, 0
      %s1976 = sadd.s32 %s1975, %s1973
      %s1977 = scalar_lea.vmem %s4, %s1976
      %p1978 = scmp.lt.s32.totalorder %s21, 1
      %s1979 = scalar_select %p1978, %s21, 1
      %p1980 = scmp.lt.s32.totalorder %s22, 0
      %s1981 = scalar_select %p1980, %s22, 0
      %s1982 = sadd.s32 %s1981, %s1979
      %s1983 = scalar_lea.vmem %s5, %s1982
      // Predicated region
      $region37: #{base_residual_forward.3} parent=31 // pred_check
        %p1984 = pneg %p127
      $region38: #{base_residual_forward.3} parent=31 // pred_check_branch
        %1986 = sbr.rel (%p1984) target = $region40
      $region39: #{base_residual_forward.3} parent=31 // pred_region
        _
      $region40: #{base_residual_forward.3} parent=31 // pred_fallthru
        _
      // Predicated region
      $region41: #{base_residual_forward.3} parent=31 // pred_check
        %p1987 = pneg %p155
      $region42: #{base_residual_forward.3} parent=31 // pred_check_branch
        %1989 = sbr.rel (%p1987) target = $region44
      $region43: #{base_residual_forward.3} parent=31 // pred_region
        _
      $region44: #{base_residual_forward.3} parent=31 // pred_fallthru
        _
      // Predicated region
      $region45: #{base_residual_forward.3} parent=31 // pred_check
        %p1990 = pneg %p183
      $region46: #{base_residual_forward.3} parent=31 // pred_check_branch
        %1992 = sbr.rel (%p1990) target = $region48
      $region47: #{base_residual_forward.3} parent=31 // pred_region
        _
      $region48: #{base_residual_forward.3} parent=31 // pred_fallthru
        _
    $region32: #{base_residual_forward.3} parent=5 // pred_fallthru
      _
    %p1993 = scmp.le.s32.totalorder 2, %s12
    // Predicated region
    $region49: #{base_residual_forward.3} parent=5 // pred_check
      %p1994 = pneg %p1993
    $region50: #{base_residual_forward.3} parent=5 // pred_check_branch
      %1996 = sbr.rel (%p1994) target = $region52
    $region51: #{base_residual_forward.3} parent=5 // pred_region
      %s1997 = ssub.s32 %s12, 2
      // Predicated region
      $region53: #{base_residual_forward.3} parent=51 // pred_check
        %p1998 = pneg %p133
      $region54: #{base_residual_forward.3} parent=51 // pred_check_branch
        %2000 = sbr.rel (%p1998) target = $region56
      $region55: #{base_residual_forward.3} parent=51 // pred_region
        %p2001 = scmp.lt.s32.totalorder %s23, 1
        %s2002 = scalar_select %p2001, %s23, 1
        %p2003 = scmp.lt.s32.totalorder %s24, 0
        %s2004 = scalar_select %p2003, %s24, 0
        %s2005 = smul.addr %s2002, 8
        %s2006 = sadd.s32 %s2004, %s2005
        %s2007 = smul.addr %s2006, 4
        %s2008 = scalar_lea.vmem %s3, %s2007
      $region56: #{base_residual_forward.3} parent=51 // pred_fallthru
        _
      // Predicated region
      $region57: #{base_residual_forward.3} parent=51 // pred_check
        %p2009 = pneg %p161
      $region58: #{base_residual_forward.3} parent=51 // pred_check_branch
        %2011 = sbr.rel (%p2009) target = $region60
      $region59: #{base_residual_forward.3} parent=51 // pred_region
        %p2012 = scmp.lt.s32.totalorder %s23, 1
        %s2013 = scalar_select %p2012, %s23, 1
        %p2014 = scmp.lt.s32.totalorder %s24, 0
        %s2015 = scalar_select %p2014, %s24, 0
        %s2016 = sadd.s32 %s2015, %s2013
        %s2017 = scalar_lea.vmem %s4, %s2016
      $region60: #{base_residual_forward.3} parent=51 // pred_fallthru
        _
      // Predicated region
      $region61: #{base_residual_forward.3} parent=51 // pred_check
        %p2018 = pneg %p189
      $region62: #{base_residual_forward.3} parent=51 // pred_check_branch
        %2020 = sbr.rel (%p2018) target = $region64
      $region63: #{base_residual_forward.3} parent=51 // pred_region
        %p2021 = scmp.lt.s32.totalorder %s23, 1
        %s2022 = scalar_select %p2021, %s23, 1
        %p2023 = scmp.lt.s32.totalorder %s24, 0
        %s2024 = scalar_select %p2023, %s24, 0
        %s2025 = sadd.s32 %s2024, %s2022
        %s2026 = scalar_lea.vmem %s5, %s2025
      $region64: #{base_residual_forward.3} parent=51 // pred_fallthru
        _
    $region52: #{base_residual_forward.3} parent=5 // pred_fallthru
      _
  $region6: #{base_residual_forward.3} parent=0 // loop_footer
    %s16 = sadd.s32 1, %s12
  $region7: #{base_residual_forward.3} parent=0 // loop_footer_branch
    %11 = sbr.rel target = $region3
  $region8: #{base_residual_forward.3} parent=0 // loop_exit
    _

// kernel: base_residual_forward.4
$region0: #{base_residual_forward.4}
  #allocation0 [shape = 'u32[]', space=smem, size = 0x4, offset = 0x4, fixed_abs, tag = 'smem constant byte address 0x4 - core index']
  #allocation1 [shape = 'u32[144,128]{1,0:T(1,128)}', space=vmem, size = 0x12000, scoped, tag = 'internal scratch']
  #allocation2 [shape = 'f32[10,16,128]{2,1,0:T(8,128)}', space=vmem, size = 0x14000, scoped, tag = 'scratch operand']
  #allocation3 [shape = 'bf16[64,1152]{1,0:T(8,128)(2,1)}', space=vmem, size = 0x24000, scoped, tag = 'scratch operand']
  %s0 = inlined_call_operand.vmem [shape: bf16[2,8,8,128], index: 0, kind: input, shape index: {}]
  %s1 = inlined_call_operand.vmem [shape: f32[1,128], index: 1, kind: input, shape index: {}]
  %s2 = inlined_call_operand.vmem [shape: f32[1,128], index: 2, kind: input, shape index: {}]
  %s3 = inlined_call_operand.vmem [shape: bf16[1152,128], index: 3, kind: input, shape index: {}]
  %s4 = inlined_call_operand.vmem [shape: f32[1,128], index: 4, kind: input, shape index: {}]
  %s5 = inlined_call_operand.vmem [shape: bf16[2,64,128], index: 5, kind: output, shape index: {0}]
  %s6 = inlined_call_operand.vmem [shape: f32[2,1,128], index: 6, kind: output, shape index: {1}]
  %s7 = inlined_call_operand.vmem [shape: f32[2,1,128], index: 7, kind: output, shape index: {2}]
  %8 = xla_tuple %s5, %s6, %s7
  %s9 = sld [smem:[#allocation0]]
  $region73: #{base_residual_forward.4} parent=0
    _
  %s11 = ssub.s32 1, %s9
  %s12 = scalar_select 0, %s11, %s9
  loop: start=0, step=1, limit=4
  $region2: #{base_residual_forward.4} parent=0 // loop_pre_header
    _
  $region3: #{base_residual_forward.4} parent=0 // loop_header
    %s14 = sphi 0, %s18
    %p15 = scmp.ge.s32.totalorder %s14, 4
    %s21 = sphi 0, %s33
    %s22 = sphi 0, %s29
    %s23 = sphi 0, %s21
    %s24 = sphi 0, %s22
    %s25 = sphi 0, %s23
    %s26 = sphi 0, %s24
    %s36 = sphi 0, %s38
    %s39 = sphi 0, %s36
    %s40 = sphi 0, %s39
    %s56 = sphi 0, %s40
    %s60 = sphi 0, %s60
    %s62 = sphi 0, %s60
    %s63 = sphi 0, %s62
    %s77 = sphi 0, %s63
    %s81 = sphi 0, %s81
    %s83 = sphi 0, %s81
    %s84 = sphi 0, %s83
    %s98 = sphi 0, %s84
    %s104 = sphi 0, %s106
    %s107 = sphi 0, %s104
    %s108 = sphi 0, %s107
    %s124 = sphi 0, %s108
    %s130 = sphi 0, %s132
    %s133 = sphi 0, %s130
    %s134 = sphi 0, %s133
    %s150 = sphi 0, %s134
    %s158 = sphi 0, %s160
    %s161 = sphi 0, %s158
    %s162 = sphi 0, %s161
    %s178 = sphi 0, %s162
    %s186 = sphi 0, %s188
    %s189 = sphi 0, %s186
    %s190 = sphi 0, %s189
    %s206 = sphi 0, %s190
    %s214 = sphi 0, %s216
    %s217 = sphi 0, %s214
    %s218 = sphi 0, %s217
    %s234 = sphi 0, %s218
  $region4: #{base_residual_forward.4} parent=0 // loop_header_branch
    %17 = sbr.rel (%p15) target = $region8
  $region5: #{base_residual_forward.4} parent=0 // loop_body
    %s19 = ssub.s32 %s14, 1
    %s20 = ssub.s32 %s14, 2
    %s27 = sadd.s32 1, %s22
    %p28 = scmp.ge.s32.totalorder %s27, 1
    %s29 = scalar_select %p28, 0, %s27
    %s30 = sadd.s32 1, %s21
    %s31 = scalar_select %p28, %s30, %s21
    %p32 = scmp.ge.s32.totalorder %s31, 2
    %s33 = scalar_select %p32, 0, %s31
    %s34 = ssub.s32 %s21, %s33
    %p35 = scmp.eq.s32.totalorder %s34, 0
    %s37 = sadd.s32 %s36, 1
    %s38 = scalar_select %p35, %s36, %s37
    %p41 = pneg %p35
    %p42 = scmp.eq.s32.totalorder %s14, 1
    %p43 = por %p41, %p42
    %p44 = scmp.ne.s32.totalorder %s36, %s39
    %p45 = scmp.eq.s32.totalorder %s14, 0
    %p46 = por %p44, %p45
    %p47 = scmp.ne.s32.totalorder %s36, %s39
    %p48 = scmp.eq.s32.totalorder %s19, 1
    %p49 = por %p47, %p48
    %p50 = scmp.ne.s32.totalorder %s39, %s40
    %p51 = scmp.eq.s32.totalorder %s19, 0
    %p52 = por %p50, %p51
    %p53 = scmp.ne.s32.totalorder %s39, %s40
    %p54 = scmp.eq.s32.totalorder %s20, 1
    %p55 = por %p53, %p54
    %p57 = scmp.ne.s32.totalorder %s40, %s56
    %p58 = scmp.eq.s32.totalorder %s20, 0
    %p59 = por %p57, %p58
    %s61 = sadd.s32 %s60, 1
    %p64 = scmp.eq.s32.totalorder %s14, 1
    %p65 = scmp.ne.s32.totalorder %s60, %s62
    %p66 = scmp.eq.s32.totalorder %s14, 0
    %p67 = por %p65, %p66
    %p68 = scmp.ne.s32.totalorder %s60, %s62
    %p69 = scmp.eq.s32.totalorder %s19, 1
    %p70 = por %p68, %p69
    %p71 = scmp.ne.s32.totalorder %s62, %s63
    %p72 = scmp.eq.s32.totalorder %s19, 0
    %p73 = por %p71, %p72
    %p74 = scmp.ne.s32.totalorder %s62, %s63
    %p75 = scmp.eq.s32.totalorder %s20, 1
    %p76 = por %p74, %p75
    %p78 = scmp.ne.s32.totalorder %s63, %s77
    %p79 = scmp.eq.s32.totalorder %s20, 0
    %p80 = por %p78, %p79
    %s82 = sadd.s32 %s81, 1
    %p85 = scmp.eq.s32.totalorder %s14, 1
    %p86 = scmp.ne.s32.totalorder %s81, %s83
    %p87 = scmp.eq.s32.totalorder %s14, 0
    %p88 = por %p86, %p87
    %p89 = scmp.ne.s32.totalorder %s81, %s83
    %p90 = scmp.eq.s32.totalorder %s19, 1
    %p91 = por %p89, %p90
    %p92 = scmp.ne.s32.totalorder %s83, %s84
    %p93 = scmp.eq.s32.totalorder %s19, 0
    %p94 = por %p92, %p93
    %p95 = scmp.ne.s32.totalorder %s83, %s84
    %p96 = scmp.eq.s32.totalorder %s20, 1
    %p97 = por %p95, %p96
    %p99 = scmp.ne.s32.totalorder %s84, %s98
    %p100 = scmp.eq.s32.totalorder %s20, 0
    %p101 = por %p99, %p100
    %s102 = ssub.s32 %s22, %s29
    %p103 = scmp.eq.s32.totalorder %s102, 0
    %s105 = sadd.s32 %s104, 1
    %s106 = scalar_select %p103, %s104, %s105
    %p109 = pneg %p103
    %p110 = scmp.eq.s32.totalorder %s14, 1
    %p111 = por %p109, %p110
    %p112 = scmp.ne.s32.totalorder %s104, %s107
    %p113 = scmp.eq.s32.totalorder %s14, 0
    %p114 = por %p112, %p113
    %p115 = scmp.ne.s32.totalorder %s104, %s107
    %p116 = scmp.eq.s32.totalorder %s19, 1
    %p117 = por %p115, %p116
    %p118 = scmp.ne.s32.totalorder %s107, %s108
    %p119 = scmp.eq.s32.totalorder %s19, 0
    %p120 = por %p118, %p119
    %p121 = scmp.ne.s32.totalorder %s107, %s108
    %p122 = scmp.eq.s32.totalorder %s20, 1
    %p123 = por %p121, %p122
    %p125 = scmp.ne.s32.totalorder %s108, %s124
    %p126 = scmp.eq.s32.totalorder %s20, 0
    %p127 = por %p125, %p126
    %s128 = ssub.s32 %s22, %s29
    %p129 = scmp.eq.s32.totalorder %s128, 0
    %s131 = sadd.s32 %s130, 1
    %s132 = scalar_select %p129, %s130, %s131
    %p135 = pneg %p129
    %p136 = scmp.eq.s32.totalorder %s14, 1
    %p137 = por %p135, %p136
    %p138 = scmp.ne.s32.totalorder %s130, %s133
    %p139 = scmp.eq.s32.totalorder %s14, 0
    %p140 = por %p138, %p139
    %p141 = scmp.ne.s32.totalorder %s130, %s133
    %p142 = scmp.eq.s32.totalorder %s19, 1
    %p143 = por %p141, %p142
    %p144 = scmp.ne.s32.totalorder %s133, %s134
    %p145 = scmp.eq.s32.totalorder %s19, 0
    %p146 = por %p144, %p145
    %p147 = scmp.ne.s32.totalorder %s133, %s134
    %p148 = scmp.eq.s32.totalorder %s20, 1
    %p149 = por %p147, %p148
    %p151 = scmp.ne.s32.totalorder %s134, %s150
    %p152 = scmp.eq.s32.totalorder %s20, 0
    %p153 = por %p151, %p152
    %s154 = ssub.s32 %s21, %s33
    %s155 = ssub.s32 %s22, %s29
    %s156 = sor.u32 %s154, %s155
    %p157 = scmp.eq.s32.totalorder %s156, 0
    %s159 = sadd.s32 %s158, 1
    %s160 = scalar_select %p157, %s158, %s159
    %p163 = pneg %p157
    %p164 = scmp.eq.s32.totalorder %s14, 1
    %p165 = por %p163, %p164
    %p166 = scmp.ne.s32.totalorder %s158, %s161
    %p167 = scmp.eq.s32.totalorder %s14, 0
    %p168 = por %p166, %p167
    %p169 = scmp.ne.s32.totalorder %s158, %s161
    %p170 = scmp.eq.s32.totalorder %s19, 1
    %p171 = por %p169, %p170
    %p172 = scmp.ne.s32.totalorder %s161, %s162
    %p173 = scmp.eq.s32.totalorder %s19, 0
    %p174 = por %p172, %p173
    %p175 = scmp.ne.s32.totalorder %s161, %s162
    %p176 = scmp.eq.s32.totalorder %s20, 1
    %p177 = por %p175, %p176
    %p179 = scmp.ne.s32.totalorder %s162, %s178
    %p180 = scmp.eq.s32.totalorder %s20, 0
    %p181 = por %p179, %p180
    %s182 = ssub.s32 %s21, %s33
    %s183 = ssub.s32 %s22, %s29
    %s184 = sor.u32 %s182, %s183
    %p185 = scmp.eq.s32.totalorder %s184, 0
    %s187 = sadd.s32 %s186, 1
    %s188 = scalar_select %p185, %s186, %s187
    %p191 = pneg %p185
    %p192 = scmp.eq.s32.totalorder %s14, 1
    %p193 = por %p191, %p192
    %p194 = scmp.ne.s32.totalorder %s186, %s189
    %p195 = scmp.eq.s32.totalorder %s14, 0
    %p196 = por %p194, %p195
    %p197 = scmp.ne.s32.totalorder %s186, %s189
    %p198 = scmp.eq.s32.totalorder %s19, 1
    %p199 = por %p197, %p198
    %p200 = scmp.ne.s32.totalorder %s189, %s190
    %p201 = scmp.eq.s32.totalorder %s19, 0
    %p202 = por %p200, %p201
    %p203 = scmp.ne.s32.totalorder %s189, %s190
    %p204 = scmp.eq.s32.totalorder %s20, 1
    %p205 = por %p203, %p204
    %p207 = scmp.ne.s32.totalorder %s190, %s206
    %p208 = scmp.eq.s32.totalorder %s20, 0
    %p209 = por %p207, %p208
    %s210 = ssub.s32 %s21, %s33
    %s211 = ssub.s32 %s22, %s29
    %s212 = sor.u32 %s210, %s211
    %p213 = scmp.eq.s32.totalorder %s212, 0
    %s215 = sadd.s32 %s214, 1
    %s216 = scalar_select %p213, %s214, %s215
    %p219 = pneg %p213
    %p220 = scmp.eq.s32.totalorder %s14, 1
    %p221 = por %p219, %p220
    %p222 = scmp.ne.s32.totalorder %s214, %s217
    %p223 = scmp.eq.s32.totalorder %s14, 0
    %p224 = por %p222, %p223
    %p225 = scmp.ne.s32.totalorder %s214, %s217
    %p226 = scmp.eq.s32.totalorder %s19, 1
    %p227 = por %p225, %p226
    %p228 = scmp.ne.s32.totalorder %s217, %s218
    %p229 = scmp.eq.s32.totalorder %s19, 0
    %p230 = por %p228, %p229
    %p231 = scmp.ne.s32.totalorder %s217, %s218
    %p232 = scmp.eq.s32.totalorder %s20, 1
    %p233 = por %p231, %p232
    %p235 = scmp.ne.s32.totalorder %s218, %s234
    %p236 = scmp.eq.s32.totalorder %s20, 0
    %p237 = por %p235, %p236
    %p238 = scmp.le.s32.totalorder 1, %s14
    %p239 = scmp.lt.s32.totalorder %s14, 3
    %p240 = pnand %p238, %p239
    %p241 = pneg %p240
    // Predicated region
    $region9: #{base_residual_forward.4} parent=5 // pred_check
      _
    $region10: #{base_residual_forward.4} parent=5 // pred_check_branch
      %243 = sbr.rel (%p240) target = $region12
    $region11: #{base_residual_forward.4} parent=5 // pred_region
      %s244 = ssub.s32 %s14, 1
      // Predicated region
      $region13: #{base_residual_forward.4} parent=11 // pred_check
        %p245 = pneg %p73
      $region14: #{base_residual_forward.4} parent=11 // pred_check_branch
        %247 = sbr.rel (%p245) target = $region16
      $region15: #{base_residual_forward.4} parent=11 // pred_region
        _
      $region16: #{base_residual_forward.4} parent=11 // pred_fallthru
        _
      // Predicated region
      $region17: #{base_residual_forward.4} parent=11 // pred_check
        %p248 = pneg %p94
      $region18: #{base_residual_forward.4} parent=11 // pred_check_branch
        %250 = sbr.rel (%p248) target = $region20
      $region19: #{base_residual_forward.4} parent=11 // pred_region
        _
      $region20: #{base_residual_forward.4} parent=11 // pred_fallthru
        _
      // Predicated region
      $region21: #{base_residual_forward.4} parent=11 // pred_check
        %p251 = pneg %p120
      $region22: #{base_residual_forward.4} parent=11 // pred_check_branch
        %253 = sbr.rel (%p251) target = $region24
      $region23: #{base_residual_forward.4} parent=11 // pred_region
        %p254 = scmp.lt.s32.totalorder %s24, 0
        %s255 = scalar_select %p254, %s24, 0
        %s256 = smul.addr %s255, 4
        %s257 = scalar_lea.vmem %s3, %s256
      $region24: #{base_residual_forward.4} parent=11 // pred_fallthru
        _
      // Predicated region
      $region25: #{base_residual_forward.4} parent=11 // pred_check
        %p258 = pneg %p146
      $region26: #{base_residual_forward.4} parent=11 // pred_check_branch
        %260 = sbr.rel (%p258) target = $region28
      $region27: #{base_residual_forward.4} parent=11 // pred_region
        %p261 = scmp.lt.s32.totalorder %s24, 0
        %s262 = scalar_select %p261, %s24, 0
        %s263 = scalar_lea.vmem %s4, %s262
      $region28: #{base_residual_forward.4} parent=11 // pred_fallthru
        _
    $region12: #{base_residual_forward.4} parent=5 // pred_fallthru
      _
    %p264 = scmp.lt.s32.totalorder %s14, 2
    // Predicated region
    $region29: #{base_residual_forward.4} parent=5 // pred_check
      %p265 = pneg %p264
    $region30: #{base_residual_forward.4} parent=5 // pred_check_branch
      %267 = sbr.rel (%p265) target = $region32
    $region31: #{base_residual_forward.4} parent=5 // pred_region
      // Predicated region
      $region33: #{base_residual_forward.4} parent=31 // pred_check
        %p268 = pneg %p46
      $region34: #{base_residual_forward.4} parent=31 // pred_check_branch
        %270 = sbr.rel (%p268) target = $region36
      $region35: #{base_residual_forward.4} parent=31 // pred_region
        %p271 = scmp.lt.s32.totalorder %s21, 1
        %s272 = scalar_select %p271, %s21, 1
        %s273 = smul.addr %s272, 8
        %s274 = smul.addr %s273, 4
        %s275 = scalar_lea.vmem %s0, %s274
      $region36: #{base_residual_forward.4} parent=31 // pred_fallthru
        _
    $region32: #{base_residual_forward.4} parent=5 // pred_fallthru
      _
    %p276 = scmp.le.s32.totalorder 1, %s14
    %p277 = scmp.lt.s32.totalorder %s14, 3
    %p278 = pnand %p276, %p277
    %p279 = pneg %p278
    // Predicated region
    $region37: #{base_residual_forward.4} parent=5 // pred_check
      _
    $region38: #{base_residual_forward.4} parent=5 // pred_check_branch
      %281 = sbr.rel (%p278) target = $region40
    $region39: #{base_residual_forward.4} parent=5 // pred_region
      %s282 = ssub.s32 %s14, 1
      %p283 = scmp.lt.s32.totalorder %s23, 1
      %s284 = scalar_select %p283, %s23, 1
      %s285 = smul.addr %s284, 8
      %s286 = smul.addr %s285, 4
      %s287 = scalar_lea.vmem %s0, %s286
      %p288 = pneg %p52
      %p289 = pneg %p49
      %p290 = pneg %p73
      %p291 = pneg %p70
      %p292 = pneg %p94
      %p293 = pneg %p91
      %p294 = scmp.lt.s32.totalorder %s24, 0
      %s295 = scalar_select %p294, %s24, 0
      %s296 = smul.addr %s295, 4
      %s297 = scalar_lea.vmem %s3, %s296
      %p298 = pneg %p120
      %p299 = pneg %p117
      %p300 = scmp.lt.s32.totalorder %s24, 0
      %s301 = scalar_select %p300, %s24, 0
      %s302 = scalar_lea.vmem %s4, %s301
      %p303 = pneg %p146
      %p304 = pneg %p143
      %p305 = pneg %p174
      %p306 = pneg %p171
      %p307 = scmp.lt.s32.totalorder %s23, 1
      %s308 = scalar_select %p307, %s23, 1
      %p309 = scmp.lt.s32.totalorder %s24, 0
      %s310 = scalar_select %p309, %s24, 0
      %s311 = smul.addr %s308, 8
      %s312 = sadd.s32 %s310, %s311
      %s313 = smul.addr %s312, 4
      %s314 = scalar_lea.vmem %s5, %s313
      %p315 = pneg %p202
      %p316 = pneg %p199
      %p317 = scmp.lt.s32.totalorder %s23, 1
      %s318 = scalar_select %p317, %s23, 1
      %p319 = scmp.lt.s32.totalorder %s24, 0
      %s320 = scalar_select %p319, %s24, 0
      %s321 = sadd.s32 %s320, %s318
      %s322 = scalar_lea.vmem %s6, %s321
      %p323 = pneg %p230
      %p324 = pneg %p227
      %p325 = scmp.lt.s32.totalorder %s23, 1
      %s326 = scalar_select %p325, %s23, 1
      %p327 = scmp.lt.s32.totalorder %s24, 0
      %s328 = scalar_select %p327, %s24, 0
      %s329 = sadd.s32 %s328, %s326
      %s330 = scalar_lea.vmem %s7, %s329
      %p331 = scmp.lt.s32.totalorder %s23, 1
      %s332 = scalar_select %p331, %s23, 1
      %s333 = smul.addr %s332, 8
      %s334 = smul.addr %s333, 4
      %s335 = scalar_lea.vmem %s0, %s334
      %p336 = scmp.lt.s32.totalorder %s24, 0
      %s337 = scalar_select %p336, %s24, 0
      %s338 = smul.addr %s337, 4
      %s339 = scalar_lea.vmem %s3, %s338
      %p340 = scmp.lt.s32.totalorder %s24, 0
      %s341 = scalar_select %p340, %s24, 0
      %s342 = scalar_lea.vmem %s4, %s341
      %p343 = scmp.lt.s32.totalorder %s23, 1
      %s344 = scalar_select %p343, %s23, 1
      %p345 = scmp.lt.s32.totalorder %s24, 0
      %s346 = scalar_select %p345, %s24, 0
      %s347 = smul.addr %s344, 8
      %s348 = sadd.s32 %s346, %s347
      %s349 = smul.addr %s348, 4
      %s350 = scalar_lea.vmem %s5, %s349
      %p351 = scmp.lt.s32.totalorder %s23, 1
      %s352 = scalar_select %p351, %s23, 1
      %p353 = scmp.lt.s32.totalorder %s24, 0
      %s354 = scalar_select %p353, %s24, 0
      %s355 = sadd.s32 %s354, %s352
      %s356 = scalar_lea.vmem %s6, %s355
      %p357 = scmp.lt.s32.totalorder %s23, 1
      %s358 = scalar_select %p357, %s23, 1
      %p359 = scmp.lt.s32.totalorder %s24, 0
      %s360 = scalar_select %p359, %s24, 0
      %s361 = sadd.s32 %s360, %s358
      %s362 = scalar_lea.vmem %s7, %s361
      %p364 = scmp.eq.s32.totalorder %s24, 0
      // Predicated region
      $region41: #{base_residual_forward.4} parent=39 // pred_check
        %p365 = pneg %p364
      $region42: #{base_residual_forward.4} parent=39 // pred_check_branch
        %367 = sbr.rel (%p365) target = $region44
      $region43: #{base_residual_forward.4} parent=39 // pred_region
        %v368 = vld [vmem:[%s1] sm:$0x1]
        %v369 = vld [vmem:[%s2] sm:$0x1]
        %v370 = vld [vmem:[%s335] sm:$0xf]
        %v371 = vld [vmem:[%s335 + $0x4] sm:$0xf]
        %v372 = vld [vmem:[%s335 + $0x8] sm:$0xf]
        %v373 = vld [vmem:[%s335 + $0xc] sm:$0xf]
        %v374 = vld [vmem:[%s335 + $0x10] sm:$0xf]
        %v375 = vld [vmem:[%s335 + $0x14] sm:$0xf]
        %v376 = vld [vmem:[%s335 + $0x18] sm:$0xf]
        %v377 = vld [vmem:[%s335 + $0x1c] sm:$0xf]
        %v378 = vunpack.c.l.bf16 %v370
        %v379 = vunpack.c.l.bf16 %v371
        %v380 = vunpack.c.l.bf16 %v372
        %v381 = vunpack.c.l.bf16 %v373
        %v382 = vunpack.c.l.bf16 %v374
        %v383 = vunpack.c.l.bf16 %v375
        %v384 = vunpack.c.l.bf16 %v376
        %v385 = vunpack.c.l.bf16 %v377
        %v387 = vlaneseq
        %v388 = vshrl.u32 %v387, 7
        %v389 = vsub.s32 0, %v388
        %v390 = vrot.slane %v368, %v389
        %v392 = vmul.f32 %v378, %v390
        %v393 = vmul.f32 %v379, %v390
        %v394 = vmul.f32 %v380, %v390
        %v395 = vmul.f32 %v381, %v390
        %v396 = vmul.f32 %v382, %v390
        %v397 = vmul.f32 %v383, %v390
        %v398 = vmul.f32 %v384, %v390
        %v399 = vmul.f32 %v385, %v390
        %v401 = vlaneseq
        %v402 = vshrl.u32 %v401, 7
        %v403 = vsub.s32 0, %v402
        %v404 = vrot.slane %v369, %v403
        %v406 = vadd.f32 %v392, %v404
        %v407 = vadd.f32 %v393, %v404
        %v408 = vadd.f32 %v394, %v404
        %v409 = vadd.f32 %v395, %v404
        %v410 = vadd.f32 %v396, %v404
        %v411 = vadd.f32 %v397, %v404
        %v412 = vadd.f32 %v398, %v404
        %v413 = vadd.f32 %v399, %v404
        %v414 = vmax.f32 %v406, 0.0
        %v415 = vmax.f32 %v407, 0.0
        %v416 = vmax.f32 %v408, 0.0
        %v417 = vmax.f32 %v409, 0.0
        %v418 = vmax.f32 %v410, 0.0
        %v419 = vmax.f32 %v411, 0.0
        %v420 = vmax.f32 %v412, 0.0
        %v421 = vmax.f32 %v413, 0.0
        %422 = vst [vmem:[#allocation2] sm:$0xff] 0.0
        %423 = vst [vmem:[#allocation2 + $0x8] sm:$0xff] 0.0
        %424 = vst [vmem:[#allocation2 + $0x10] sm:$0xff] 0.0
        %425 = vst [vmem:[#allocation2 + $0x18] sm:$0xff] 0.0
        %426 = vst [vmem:[#allocation2 + $0x20] sm:$0xff] 0.0
        %427 = vst [vmem:[#allocation2 + $0x28] sm:$0xff] 0.0
        %428 = vst [vmem:[#allocation2 + $0x30] sm:$0xff] 0.0
        %429 = vst [vmem:[#allocation2 + $0x38] sm:$0xff] 0.0
        %430 = vst [vmem:[#allocation2 + $0x40] sm:$0xff] 0.0
        %431 = vst [vmem:[#allocation2 + $0x48] sm:$0xff] 0.0
        %432 = vst [vmem:[#allocation2 + $0x50] sm:$0xff] 0.0
        %433 = vst [vmem:[#allocation2 + $0x58] sm:$0xff] 0.0
        %434 = vst [vmem:[#allocation2 + $0x60] sm:$0xff] 0.0
        %435 = vst [vmem:[#allocation2 + $0x68] sm:$0xff] 0.0
        %436 = vst [vmem:[#allocation2 + $0x70] sm:$0xff] 0.0
        %437 = vst [vmem:[#allocation2 + $0x78] sm:$0xff] 0.0
        %438 = vst [vmem:[#allocation2 + $0x80] sm:$0xff] 0.0
        %439 = vst [vmem:[#allocation2 + $0x88] sm:$0xff] 0.0
        %440 = vst [vmem:[#allocation2 + $0x90] sm:$0xff] 0.0
        %441 = vst [vmem:[#allocation2 + $0x98] sm:$0xff] 0.0
        %s442 = scalar_lea.vmem [#allocation2], 16
        %443 = vst [vmem:[%s442 + $0x1] sm:$0xff] %v414
        %444 = vst [vmem:[%s442 + $0x11] sm:$0xff] %v415
        %445 = vst [vmem:[%s442 + $0x21] sm:$0xff] %v416
        %446 = vst [vmem:[%s442 + $0x31] sm:$0xff] %v417
        %447 = vst [vmem:[%s442 + $0x41] sm:$0xff] %v418
        %448 = vst [vmem:[%s442 + $0x51] sm:$0xff] %v419
        %449 = vst [vmem:[%s442 + $0x61] sm:$0xff] %v420
        %450 = vst [vmem:[%s442 + $0x71] sm:$0xff] %v421
        %v451 = vld [vmem:[#allocation2] sm:$0xff]
        %v452 = vld [vmem:[#allocation2 + $0x10] sm:$0xff]
        %v453 = vld [vmem:[#allocation2 + $0x20] sm:$0xff]
        %v454 = vld [vmem:[#allocation2 + $0x30] sm:$0xff]
        %v455 = vld [vmem:[#allocation2 + $0x40] sm:$0xff]
        %v456 = vld [vmem:[#allocation2 + $0x50] sm:$0xff]
        %v457 = vld [vmem:[#allocation2 + $0x60] sm:$0xff]
        %v458 = vld [vmem:[#allocation2 + $0x70] sm:$0xff]
        %v459 = vpack.c.bf16 %v452, %v451
        %v460 = vpack.c.bf16 %v454, %v453
        %v461 = vpack.c.bf16 %v456, %v455
        %v462 = vpack.c.bf16 %v458, %v457
        %v467 = vunpack.c.l.b16 %v459
        %v468 = vunpack.c.h.b16 %v459
        %v469 = vunpack.c.l.b16 %v460
        %v470 = vunpack.c.h.b16 %v460
        %v471 = vunpack.c.l.b16 %v461
        %v472 = vunpack.c.h.b16 %v461
        %v473 = vunpack.c.l.b16 %v462
        %v474 = vunpack.c.h.b16 %v462
        %v475 = vpack.c.b16 %v467, %v467
        %v476 = vpack.c.b16 %v468, %v468
        %v477 = vpack.c.b16 %v469, %v469
        %v478 = vpack.c.b16 %v470, %v470
        %v479 = vpack.c.b16 %v471, %v471
        %v480 = vpack.c.b16 %v472, %v472
        %v481 = vpack.c.b16 %v473, %v473
        %v482 = vpack.c.b16 %v474, %v474
        %491 = vst [vmem:[#allocation3] sm:$0xf] %v475
        %492 = vst [vmem:[#allocation3 + $0x24] sm:$0xf] %v476
        %493 = vst [vmem:[#allocation3 + $0x48] sm:$0xf] %v477
        %494 = vst [vmem:[#allocation3 + $0x6c] sm:$0xf] %v478
        %495 = vst [vmem:[#allocation3 + $0x90] sm:$0xf] %v479
        %496 = vst [vmem:[#allocation3 + $0xb4] sm:$0xf] %v480
        %497 = vst [vmem:[#allocation3 + $0xd8] sm:$0xf] %v481
        %498 = vst [vmem:[#allocation3 + $0xfc] sm:$0xf] %v482
        %v499 = vld [vmem:[#allocation2 + $0x1] sm:$0xff]
        %v500 = vld [vmem:[#allocation2 + $0x11] sm:$0xff]
        %v501 = vld [vmem:[#allocation2 + $0x21] sm:$0xff]
        %v502 = vld [vmem:[#allocation2 + $0x31] sm:$0xff]
        %v503 = vld [vmem:[#allocation2 + $0x41] sm:$0xff]
        %v504 = vld [vmem:[#allocation2 + $0x51] sm:$0xff]
        %v505 = vld [vmem:[#allocation2 + $0x61] sm:$0xff]
        %v506 = vld [vmem:[#allocation2 + $0x71] sm:$0xff]
        %v507 = vpack.c.bf16 %v500, %v499
        %v508 = vpack.c.bf16 %v502, %v501
        %v509 = vpack.c.bf16 %v504, %v503
        %v510 = vpack.c.bf16 %v506, %v505
        %v515 = vunpack.c.l.b16 %v507
        %v516 = vunpack.c.h.b16 %v507
        %v517 = vunpack.c.l.b16 %v508
        %v518 = vunpack.c.h.b16 %v508
        %v519 = vunpack.c.l.b16 %v509
        %v520 = vunpack.c.h.b16 %v509
        %v521 = vunpack.c.l.b16 %v510
        %v522 = vunpack.c.h.b16 %v510
        %v523 = vpack.c.b16 %v515, %v515
        %v524 = vpack.c.b16 %v516, %v516
        %v525 = vpack.c.b16 %v517, %v517
        %v526 = vpack.c.b16 %v518, %v518
        %v527 = vpack.c.b16 %v519, %v519
        %v528 = vpack.c.b16 %v520, %v520
        %v529 = vpack.c.b16 %v521, %v521
        %v530 = vpack.c.b16 %v522, %v522
        %539 = vst [vmem:[#allocation3 + $0x4] sm:$0xf] %v523
        %540 = vst [vmem:[#allocation3 + $0x28] sm:$0xf] %v524
        %541 = vst [vmem:[#allocation3 + $0x4c] sm:$0xf] %v525
        %542 = vst [vmem:[#allocation3 + $0x70] sm:$0xf] %v526
        %543 = vst [vmem:[#allocation3 + $0x94] sm:$0xf] %v527
        %544 = vst [vmem:[#allocation3 + $0xb8] sm:$0xf] %v528
        %545 = vst [vmem:[#allocation3 + $0xdc] sm:$0xf] %v529
        %546 = vst [vmem:[#allocation3 + $0x100] sm:$0xf] %v530
        %v547 = vld [vmem:[#allocation2 + $0x2] sm:$0xff]
        %v548 = vld [vmem:[#allocation2 + $0x12] sm:$0xff]
        %v549 = vld [vmem:[#allocation2 + $0x22] sm:$0xff]
        %v550 = vld [vmem:[#allocation2 + $0x32] sm:$0xff]
        %v551 = vld [vmem:[#allocation2 + $0x42] sm:$0xff]
        %v552 = vld [vmem:[#allocation2 + $0x52] sm:$0xff]
        %v553 = vld [vmem:[#allocation2 + $0x62] sm:$0xff]
        %v554 = vld [vmem:[#allocation2 + $0x72] sm:$0xff]
        %v555 = vpack.c.bf16 %v548, %v547
        %v556 = vpack.c.bf16 %v550, %v549
        %v557 = vpack.c.bf16 %v552, %v551
        %v558 = vpack.c.bf16 %v554, %v553
        %v563 = vunpack.c.l.b16 %v555
        %v564 = vunpack.c.h.b16 %v555
        %v565 = vunpack.c.l.b16 %v556
        %v566 = vunpack.c.h.b16 %v556
        %v567 = vunpack.c.l.b16 %v557
        %v568 = vunpack.c.h.b16 %v557
        %v569 = vunpack.c.l.b16 %v558
        %v570 = vunpack.c.h.b16 %v558
        %v571 = vpack.c.b16 %v563, %v563
        %v572 = vpack.c.b16 %v564, %v564
        %v573 = vpack.c.b16 %v565, %v565
        %v574 = vpack.c.b16 %v566, %v566
        %v575 = vpack.c.b16 %v567, %v567
        %v576 = vpack.c.b16 %v568, %v568
        %v577 = vpack.c.b16 %v569, %v569
        %v578 = vpack.c.b16 %v570, %v570
        %587 = vst [vmem:[#allocation3 + $0x8] sm:$0xf] %v571
        %588 = vst [vmem:[#allocation3 + $0x2c] sm:$0xf] %v572
        %589 = vst [vmem:[#allocation3 + $0x50] sm:$0xf] %v573
        %590 = vst [vmem:[#allocation3 + $0x74] sm:$0xf] %v574
        %591 = vst [vmem:[#allocation3 + $0x98] sm:$0xf] %v575
        %592 = vst [vmem:[#allocation3 + $0xbc] sm:$0xf] %v576
        %593 = vst [vmem:[#allocation3 + $0xe0] sm:$0xf] %v577
        %594 = vst [vmem:[#allocation3 + $0x104] sm:$0xf] %v578
        %v595 = vld [vmem:[%s442] sm:$0xff]
        %v596 = vld [vmem:[%s442 + $0x10] sm:$0xff]
        %v597 = vld [vmem:[%s442 + $0x20] sm:$0xff]
        %v598 = vld [vmem:[%s442 + $0x30] sm:$0xff]
        %v599 = vld [vmem:[%s442 + $0x40] sm:$0xff]
        %v600 = vld [vmem:[%s442 + $0x50] sm:$0xff]
        %v601 = vld [vmem:[%s442 + $0x60] sm:$0xff]
        %v602 = vld [vmem:[%s442 + $0x70] sm:$0xff]
        %v603 = vpack.c.bf16 %v596, %v595
        %v604 = vpack.c.bf16 %v598, %v597
        %v605 = vpack.c.bf16 %v600, %v599
        %v606 = vpack.c.bf16 %v602, %v601
        %v611 = vunpack.c.l.b16 %v603
        %v612 = vunpack.c.h.b16 %v603
        %v613 = vunpack.c.l.b16 %v604
        %v614 = vunpack.c.h.b16 %v604
        %v615 = vunpack.c.l.b16 %v605
        %v616 = vunpack.c.h.b16 %v605
        %v617 = vunpack.c.l.b16 %v606
        %v618 = vunpack.c.h.b16 %v606
        %v619 = vpack.c.b16 %v611, %v611
        %v620 = vpack.c.b16 %v612, %v612
        %v621 = vpack.c.b16 %v613, %v613
        %v622 = vpack.c.b16 %v614, %v614
        %v623 = vpack.c.b16 %v615, %v615
        %v624 = vpack.c.b16 %v616, %v616
        %v625 = vpack.c.b16 %v617, %v617
        %v626 = vpack.c.b16 %v618, %v618
        %635 = vst [vmem:[#allocation3 + $0xc] sm:$0xf] %v619
        %636 = vst [vmem:[#allocation3 + $0x30] sm:$0xf] %v620
        %637 = vst [vmem:[#allocation3 + $0x54] sm:$0xf] %v621
        %638 = vst [vmem:[#allocation3 + $0x78] sm:$0xf] %v622
        %639 = vst [vmem:[#allocation3 + $0x9c] sm:$0xf] %v623
        %640 = vst [vmem:[#allocation3 + $0xc0] sm:$0xf] %v624
        %641 = vst [vmem:[#allocation3 + $0xe4] sm:$0xf] %v625
        %642 = vst [vmem:[#allocation3 + $0x108] sm:$0xf] %v626
        %v643 = vld [vmem:[%s442 + $0x1] sm:$0xff]
        %v644 = vld [vmem:[%s442 + $0x11] sm:$0xff]
        %v645 = vld [vmem:[%s442 + $0x21] sm:$0xff]
        %v646 = vld [vmem:[%s442 + $0x31] sm:$0xff]
        %v647 = vld [vmem:[%s442 + $0x41] sm:$0xff]
        %v648 = vld [vmem:[%s442 + $0x51] sm:$0xff]
        %v649 = vld [vmem:[%s442 + $0x61] sm:$0xff]
        %v650 = vld [vmem:[%s442 + $0x71] sm:$0xff]
        %v651 = vpack.c.bf16 %v644, %v643
        %v652 = vpack.c.bf16 %v646, %v645
        %v653 = vpack.c.bf16 %v648, %v647
        %v654 = vpack.c.bf16 %v650, %v649
        %v659 = vunpack.c.l.b16 %v651
        %v660 = vunpack.c.h.b16 %v651
        %v661 = vunpack.c.l.b16 %v652
        %v662 = vunpack.c.h.b16 %v652
        %v663 = vunpack.c.l.b16 %v653
        %v664 = vunpack.c.h.b16 %v653
        %v665 = vunpack.c.l.b16 %v654
        %v666 = vunpack.c.h.b16 %v654
        %v667 = vpack.c.b16 %v659, %v659
        %v668 = vpack.c.b16 %v660, %v660
        %v669 = vpack.c.b16 %v661, %v661
        %v670 = vpack.c.b16 %v662, %v662
        %v671 = vpack.c.b16 %v663, %v663
        %v672 = vpack.c.b16 %v664, %v664
        %v673 = vpack.c.b16 %v665, %v665
        %v674 = vpack.c.b16 %v666, %v666
        %683 = vst [vmem:[#allocation3 + $0x10] sm:$0xf] %v667
        %684 = vst [vmem:[#allocation3 + $0x34] sm:$0xf] %v668
        %685 = vst [vmem:[#allocation3 + $0x58] sm:$0xf] %v669
        %686 = vst [vmem:[#allocation3 + $0x7c] sm:$0xf] %v670
        %687 = vst [vmem:[#allocation3 + $0xa0] sm:$0xf] %v671
        %688 = vst [vmem:[#allocation3 + $0xc4] sm:$0xf] %v672
        %689 = vst [vmem:[#allocation3 + $0xe8] sm:$0xf] %v673
        %690 = vst [vmem:[#allocation3 + $0x10c] sm:$0xf] %v674
        %v691 = vld [vmem:[%s442 + $0x2] sm:$0xff]
        %v692 = vld [vmem:[%s442 + $0x12] sm:$0xff]
        %v693 = vld [vmem:[%s442 + $0x22] sm:$0xff]
        %v694 = vld [vmem:[%s442 + $0x32] sm:$0xff]
        %v695 = vld [vmem:[%s442 + $0x42] sm:$0xff]
        %v696 = vld [vmem:[%s442 + $0x52] sm:$0xff]
        %v697 = vld [vmem:[%s442 + $0x62] sm:$0xff]
        %v698 = vld [vmem:[%s442 + $0x72] sm:$0xff]
        %v699 = vpack.c.bf16 %v692, %v691
        %v700 = vpack.c.bf16 %v694, %v693
        %v701 = vpack.c.bf16 %v696, %v695
        %v702 = vpack.c.bf16 %v698, %v697
        %v707 = vunpack.c.l.b16 %v699
        %v708 = vunpack.c.h.b16 %v699
        %v709 = vunpack.c.l.b16 %v700
        %v710 = vunpack.c.h.b16 %v700
        %v711 = vunpack.c.l.b16 %v701
        %v712 = vunpack.c.h.b16 %v701
        %v713 = vunpack.c.l.b16 %v702
        %v714 = vunpack.c.h.b16 %v702
        %v715 = vpack.c.b16 %v707, %v707
        %v716 = vpack.c.b16 %v708, %v708
        %v717 = vpack.c.b16 %v709, %v709
        %v718 = vpack.c.b16 %v710, %v710
        %v719 = vpack.c.b16 %v711, %v711
        %v720 = vpack.c.b16 %v712, %v712
        %v721 = vpack.c.b16 %v713, %v713
        %v722 = vpack.c.b16 %v714, %v714
        %731 = vst [vmem:[#allocation3 + $0x14] sm:$0xf] %v715
        %732 = vst [vmem:[#allocation3 + $0x38] sm:$0xf] %v716
        %733 = vst [vmem:[#allocation3 + $0x5c] sm:$0xf] %v717
        %734 = vst [vmem:[#allocation3 + $0x80] sm:$0xf] %v718
        %735 = vst [vmem:[#allocation3 + $0xa4] sm:$0xf] %v719
        %736 = vst [vmem:[#allocation3 + $0xc8] sm:$0xf] %v720
        %737 = vst [vmem:[#allocation3 + $0xec] sm:$0xf] %v721
        %738 = vst [vmem:[#allocation3 + $0x110] sm:$0xf] %v722
        %s739 = scalar_lea.vmem [#allocation2], 32
        %v740 = vld [vmem:[%s739] sm:$0xff]
        %v741 = vld [vmem:[%s739 + $0x10] sm:$0xff]
        %v742 = vld [vmem:[%s739 + $0x20] sm:$0xff]
        %v743 = vld [vmem:[%s739 + $0x30] sm:$0xff]
        %v744 = vld [vmem:[%s739 + $0x40] sm:$0xff]
        %v745 = vld [vmem:[%s739 + $0x50] sm:$0xff]
        %v746 = vld [vmem:[%s739 + $0x60] sm:$0xff]
        %v747 = vld [vmem:[%s739 + $0x70] sm:$0xff]
        %v748 = vpack.c.bf16 %v741, %v740
        %v749 = vpack.c.bf16 %v743, %v742
        %v750 = vpack.c.bf16 %v745, %v744
        %v751 = vpack.c.bf16 %v747, %v746
        %v756 = vunpack.c.l.b16 %v748
        %v757 = vunpack.c.h.b16 %v748
        %v758 = vunpack.c.l.b16 %v749
        %v759 = vunpack.c.h.b16 %v749
        %v760 = vunpack.c.l.b16 %v750
        %v761 = vunpack.c.h.b16 %v750
        %v762 = vunpack.c.l.b16 %v751
        %v763 = vunpack.c.h.b16 %v751
        %v764 = vpack.c.b16 %v756, %v756
        %v765 = vpack.c.b16 %v757, %v757
        %v766 = vpack.c.b16 %v758, %v758
        %v767 = vpack.c.b16 %v759, %v759
        %v768 = vpack.c.b16 %v760, %v760
        %v769 = vpack.c.b16 %v761, %v761
        %v770 = vpack.c.b16 %v762, %v762
        %v771 = vpack.c.b16 %v763, %v763
        %780 = vst [vmem:[#allocation3 + $0x18] sm:$0xf] %v764
        %781 = vst [vmem:[#allocation3 + $0x3c] sm:$0xf] %v765
        %782 = vst [vmem:[#allocation3 + $0x60] sm:$0xf] %v766
        %783 = vst [vmem:[#allocation3 + $0x84] sm:$0xf] %v767
        %784 = vst [vmem:[#allocation3 + $0xa8] sm:$0xf] %v768
        %785 = vst [vmem:[#allocation3 + $0xcc] sm:$0xf] %v769
        %786 = vst [vmem:[#allocation3 + $0xf0] sm:$0xf] %v770
        %787 = vst [vmem:[#allocation3 + $0x114] sm:$0xf] %v771
        %v788 = vld [vmem:[%s739 + $0x1] sm:$0xff]
        %v789 = vld [vmem:[%s739 + $0x11] sm:$0xff]
        %v790 = vld [vmem:[%s739 + $0x21] sm:$0xff]
        %v791 = vld [vmem:[%s739 + $0x31] sm:$0xff]
        %v792 = vld [vmem:[%s739 + $0x41] sm:$0xff]
        %v793 = vld [vmem:[%s739 + $0x51] sm:$0xff]
        %v794 = vld [vmem:[%s739 + $0x61] sm:$0xff]
        %v795 = vld [vmem:[%s739 + $0x71] sm:$0xff]
        %v796 = vpack.c.bf16 %v789, %v788
        %v797 = vpack.c.bf16 %v791, %v790
        %v798 = vpack.c.bf16 %v793, %v792
        %v799 = vpack.c.bf16 %v795, %v794
        %v804 = vunpack.c.l.b16 %v796
        %v805 = vunpack.c.h.b16 %v796
        %v806 = vunpack.c.l.b16 %v797
        %v807 = vunpack.c.h.b16 %v797
        %v808 = vunpack.c.l.b16 %v798
        %v809 = vunpack.c.h.b16 %v798
        %v810 = vunpack.c.l.b16 %v799
        %v811 = vunpack.c.h.b16 %v799
        %v812 = vpack.c.b16 %v804, %v804
        %v813 = vpack.c.b16 %v805, %v805
        %v814 = vpack.c.b16 %v806, %v806
        %v815 = vpack.c.b16 %v807, %v807
        %v816 = vpack.c.b16 %v808, %v808
        %v817 = vpack.c.b16 %v809, %v809
        %v818 = vpack.c.b16 %v810, %v810
        %v819 = vpack.c.b16 %v811, %v811
        %828 = vst [vmem:[#allocation3 + $0x1c] sm:$0xf] %v812
        %829 = vst [vmem:[#allocation3 + $0x40] sm:$0xf] %v813
        %830 = vst [vmem:[#allocation3 + $0x64] sm:$0xf] %v814
        %831 = vst [vmem:[#allocation3 + $0x88] sm:$0xf] %v815
        %832 = vst [vmem:[#allocation3 + $0xac] sm:$0xf] %v816
        %833 = vst [vmem:[#allocation3 + $0xd0] sm:$0xf] %v817
        %834 = vst [vmem:[#allocation3 + $0xf4] sm:$0xf] %v818
        %835 = vst [vmem:[#allocation3 + $0x118] sm:$0xf] %v819
        %v836 = vld [vmem:[%s739 + $0x2] sm:$0xff]
        %v837 = vld [vmem:[%s739 + $0x12] sm:$0xff]
        %v838 = vld [vmem:[%s739 + $0x22] sm:$0xff]
        %v839 = vld [vmem:[%s739 + $0x32] sm:$0xff]
        %v840 = vld [vmem:[%s739 + $0x42] sm:$0xff]
        %v841 = vld [vmem:[%s739 + $0x52] sm:$0xff]
        %v842 = vld [vmem:[%s739 + $0x62] sm:$0xff]
        %v843 = vld [vmem:[%s739 + $0x72] sm:$0xff]
        %v844 = vpack.c.bf16 %v837, %v836
        %v845 = vpack.c.bf16 %v839, %v838
        %v846 = vpack.c.bf16 %v841, %v840
        %v847 = vpack.c.bf16 %v843, %v842
        %v852 = vunpack.c.l.b16 %v844
        %v853 = vunpack.c.h.b16 %v844
        %v854 = vunpack.c.l.b16 %v845
        %v855 = vunpack.c.h.b16 %v845
        %v856 = vunpack.c.l.b16 %v846
        %v857 = vunpack.c.h.b16 %v846
        %v858 = vunpack.c.l.b16 %v847
        %v859 = vunpack.c.h.b16 %v847
        %v860 = vpack.c.b16 %v852, %v852
        %v861 = vpack.c.b16 %v853, %v853
        %v862 = vpack.c.b16 %v854, %v854
        %v863 = vpack.c.b16 %v855, %v855
        %v864 = vpack.c.b16 %v856, %v856
        %v865 = vpack.c.b16 %v857, %v857
        %v866 = vpack.c.b16 %v858, %v858
        %v867 = vpack.c.b16 %v859, %v859
        %876 = vst [vmem:[#allocation3 + $0x20] sm:$0xf] %v860
        %877 = vst [vmem:[#allocation3 + $0x44] sm:$0xf] %v861
        %878 = vst [vmem:[#allocation3 + $0x68] sm:$0xf] %v862
        %879 = vst [vmem:[#allocation3 + $0x8c] sm:$0xf] %v863
        %880 = vst [vmem:[#allocation3 + $0xb0] sm:$0xf] %v864
        %881 = vst [vmem:[#allocation3 + $0xd4] sm:$0xf] %v865
        %882 = vst [vmem:[#allocation3 + $0xf8] sm:$0xf] %v866
        %883 = vst [vmem:[#allocation3 + $0x11c] sm:$0xf] %v867
      $region44: #{base_residual_forward.4} parent=39 // pred_fallthru
        _
      %v884 = vld [vmem:[#allocation3] sm:$0xff]
      %v885 = vld [vmem:[#allocation3 + $0x8] sm:$0xff]
      %v886 = vld [vmem:[#allocation3 + $0x10] sm:$0xff]
      %v887 = vld [vmem:[#allocation3 + $0x18] sm:$0xff]
      %v888 = vld [vmem:[#allocation3 + $0x20] sm:$0xf]
      %v889 = vld [vmem:[#allocation3 + $0x24] sm:$0xff]
      %v890 = vld [vmem:[#allocation3 + $0x2c] sm:$0xff]
      %v891 = vld [vmem:[#allocation3 + $0x34] sm:$0xff]
      %v892 = vld [vmem:[#allocation3 + $0x3c] sm:$0xff]
      %v893 = vld [vmem:[#allocation3 + $0x44] sm:$0xf]
      %v894 = vld [vmem:[#allocation3 + $0x48] sm:$0xff]
      %v895 = vld [vmem:[#allocation3 + $0x50] sm:$0xff]
      %v896 = vld [vmem:[#allocation3 + $0x58] sm:$0xff]
      %v897 = vld [vmem:[#allocation3 + $0x60] sm:$0xff]
      %v898 = vld [vmem:[#allocation3 + $0x68] sm:$0xf]
      %v899 = vld [vmem:[#allocation3 + $0x6c] sm:$0xff]
      %v900 = vld [vmem:[#allocation3 + $0x74] sm:$0xff]
      %v901 = vld [vmem:[#allocation3 + $0x7c] sm:$0xff]
      %v902 = vld [vmem:[#allocation3 + $0x84] sm:$0xff]
      %v903 = vld [vmem:[#allocation3 + $0x8c] sm:$0xf]
      %v904 = vld [vmem:[#allocation3 + $0x90] sm:$0xff]
      %v905 = vld [vmem:[#allocation3 + $0x98] sm:$0xff]
      %v906 = vld [vmem:[#allocation3 + $0xa0] sm:$0xff]
      %v907 = vld [vmem:[#allocation3 + $0xa8] sm:$0xff]
      %v908 = vld [vmem:[#allocation3 + $0xb0] sm:$0xf]
      %v909 = vld [vmem:[#allocation3 + $0xb4] sm:$0xff]
      %v910 = vld [vmem:[#allocation3 + $0xbc] sm:$0xff]
      %v911 = vld [vmem:[#allocation3 + $0xc4] sm:$0xff]
      %v912 = vld [vmem:[#allocation3 + $0xcc] sm:$0xff]
      %v913 = vld [vmem:[#allocation3 + $0xd4] sm:$0xf]
      %v914 = vld [vmem:[#allocation3 + $0xd8] sm:$0xff]
      %v915 = vld [vmem:[#allocation3 + $0xe0] sm:$0xff]
      %v916 = vld [vmem:[#allocation3 + $0xe8] sm:$0xff]
      %v917 = vld [vmem:[#allocation3 + $0xf0] sm:$0xff]
      %v918 = vld [vmem:[#allocation3 + $0xf8] sm:$0xf]
      %v919 = vld [vmem:[#allocation3 + $0xfc] sm:$0xff]
      %v920 = vld [vmem:[#allocation3 + $0x104] sm:$0xff]
      %v921 = vld [vmem:[#allocation3 + $0x10c] sm:$0xff]
      %v922 = vld [vmem:[#allocation3 + $0x114] sm:$0xff]
      %v923 = vld [vmem:[#allocation3 + $0x11c] sm:$0xf]
      %v924 = vld [vmem:[%s339] sm:$0xf]
      %v925 = vld [vmem:[%s339 + $0x4] sm:$0xf]
      %v926 = vld [vmem:[%s339 + $0x8] sm:$0xf]
      %v927 = vld [vmem:[%s339 + $0xc] sm:$0xf]
      %v928 = vld [vmem:[%s339 + $0x10] sm:$0xf]
      %v929 = vld [vmem:[%s339 + $0x14] sm:$0xf]
      %v930 = vld [vmem:[%s339 + $0x18] sm:$0xf]
      %v931 = vld [vmem:[%s339 + $0x1c] sm:$0xf]
      %v932 = vld [vmem:[%s339 + $0x20] sm:$0xf]
      %v933 = vld [vmem:[%s339 + $0x24] sm:$0xf]
      %v934 = vld [vmem:[%s339 + $0x28] sm:$0xf]
      %v935 = vld [vmem:[%s339 + $0x2c] sm:$0xf]
      %v936 = vld [vmem:[%s339 + $0x30] sm:$0xf]
      %v937 = vld [vmem:[%s339 + $0x34] sm:$0xf]
      %v938 = vld [vmem:[%s339 + $0x38] sm:$0xf]
      %v939 = vld [vmem:[%s339 + $0x3c] sm:$0xf]
      %v940 = vld [vmem:[%s339 + $0x40] sm:$0xf]
      %v941 = vld [vmem:[%s339 + $0x44] sm:$0xf]
      %v942 = vld [vmem:[%s339 + $0x48] sm:$0xf]
      %v943 = vld [vmem:[%s339 + $0x4c] sm:$0xf]
      %v944 = vld [vmem:[%s339 + $0x50] sm:$0xf]
      %v945 = vld [vmem:[%s339 + $0x54] sm:$0xf]
      %v946 = vld [vmem:[%s339 + $0x58] sm:$0xf]
      %v947 = vld [vmem:[%s339 + $0x5c] sm:$0xf]
      %v948 = vld [vmem:[%s339 + $0x60] sm:$0xf]
      %v949 = vld [vmem:[%s339 + $0x64] sm:$0xf]
      %v950 = vld [vmem:[%s339 + $0x68] sm:$0xf]
      %v951 = vld [vmem:[%s339 + $0x6c] sm:$0xf]
      %v952 = vld [vmem:[%s339 + $0x70] sm:$0xf]
      %v953 = vld [vmem:[%s339 + $0x74] sm:$0xf]
      %v954 = vld [vmem:[%s339 + $0x78] sm:$0xf]
      %v955 = vld [vmem:[%s339 + $0x7c] sm:$0xf]
      %v956 = vld [vmem:[%s339 + $0x80] sm:$0xf]
      %v957 = vld [vmem:[%s339 + $0x84] sm:$0xf]
      %v958 = vld [vmem:[%s339 + $0x88] sm:$0xf]
      %v959 = vld [vmem:[%s339 + $0x8c] sm:$0xf]
      %v960 = vld [vmem:[%s339 + $0x90] sm:$0xf]
      %v961 = vld [vmem:[%s339 + $0x94] sm:$0xf]
      %v962 = vld [vmem:[%s339 + $0x98] sm:$0xf]
      %v963 = vld [vmem:[%s339 + $0x9c] sm:$0xf]
      %v964 = vld [vmem:[%s339 + $0xa0] sm:$0xf]
      %v965 = vld [vmem:[%s339 + $0xa4] sm:$0xf]
      %v966 = vld [vmem:[%s339 + $0xa8] sm:$0xf]
      %v967 = vld [vmem:[%s339 + $0xac] sm:$0xf]
      %v968 = vld [vmem:[%s339 + $0xb0] sm:$0xf]
      %v969 = vld [vmem:[%s339 + $0xb4] sm:$0xf]
      %v970 = vld [vmem:[%s339 + $0xb8] sm:$0xf]
      %v971 = vld [vmem:[%s339 + $0xbc] sm:$0xf]
      %v972 = vld [vmem:[%s339 + $0xc0] sm:$0xf]
      %v973 = vld [vmem:[%s339 + $0xc4] sm:$0xf]
      %v974 = vld [vmem:[%s339 + $0xc8] sm:$0xf]
      %v975 = vld [vmem:[%s339 + $0xcc] sm:$0xf]
      %v976 = vld [vmem:[%s339 + $0xd0] sm:$0xf]
      %v977 = vld [vmem:[%s339 + $0xd4] sm:$0xf]
      %v978 = vld [vmem:[%s339 + $0xd8] sm:$0xf]
      %v979 = vld [vmem:[%s339 + $0xdc] sm:$0xf]
      %v980 = vld [vmem:[%s339 + $0xe0] sm:$0xf]
      %v981 = vld [vmem:[%s339 + $0xe4] sm:$0xf]
      %v982 = vld [vmem:[%s339 + $0xe8] sm:$0xf]
      %v983 = vld [vmem:[%s339 + $0xec] sm:$0xf]
      %v984 = vld [vmem:[%s339 + $0xf0] sm:$0xf]
      %v985 = vld [vmem:[%s339 + $0xf4] sm:$0xf]
      %v986 = vld [vmem:[%s339 + $0xf8] sm:$0xf]
      %v987 = vld [vmem:[%s339 + $0xfc] sm:$0xf]
      %v988 = vld [vmem:[%s339 + $0x100] sm:$0xf]
      %v989 = vld [vmem:[%s339 + $0x104] sm:$0xf]
      %v990 = vld [vmem:[%s339 + $0x108] sm:$0xf]
      %v991 = vld [vmem:[%s339 + $0x10c] sm:$0xf]
      %v992 = vld [vmem:[%s339 + $0x110] sm:$0xf]
      %v993 = vld [vmem:[%s339 + $0x114] sm:$0xf]
      %v994 = vld [vmem:[%s339 + $0x118] sm:$0xf]
      %v995 = vld [vmem:[%s339 + $0x11c] sm:$0xf]
      %v996 = vld [vmem:[%s339 + $0x120] sm:$0xf]
      %v997 = vld [vmem:[%s339 + $0x124] sm:$0xf]
      %v998 = vld [vmem:[%s339 + $0x128] sm:$0xf]
      %v999 = vld [vmem:[%s339 + $0x12c] sm:$0xf]
      %v1000 = vld [vmem:[%s339 + $0x130] sm:$0xf]
      %v1001 = vld [vmem:[%s339 + $0x134] sm:$0xf]
      %v1002 = vld [vmem:[%s339 + $0x138] sm:$0xf]
      %v1003 = vld [vmem:[%s339 + $0x13c] sm:$0xf]
      %v1004 = vld [vmem:[%s339 + $0x140] sm:$0xf]
      %v1005 = vld [vmem:[%s339 + $0x144] sm:$0xf]
      %v1006 = vld [vmem:[%s339 + $0x148] sm:$0xf]
      %v1007 = vld [vmem:[%s339 + $0x14c] sm:$0xf]
      %v1008 = vld [vmem:[%s339 + $0x150] sm:$0xf]
      %v1009 = vld [vmem:[%s339 + $0x154] sm:$0xf]
      %v1010 = vld [vmem:[%s339 + $0x158] sm:$0xf]
      %v1011 = vld [vmem:[%s339 + $0x15c] sm:$0xf]
      %v1012 = vld [vmem:[%s339 + $0x160] sm:$0xf]
      %v1013 = vld [vmem:[%s339 + $0x164] sm:$0xf]
      %v1014 = vld [vmem:[%s339 + $0x168] sm:$0xf]
      %v1015 = vld [vmem:[%s339 + $0x16c] sm:$0xf]
      %v1016 = vld [vmem:[%s339 + $0x170] sm:$0xf]
      %v1017 = vld [vmem:[%s339 + $0x174] sm:$0xf]
      %v1018 = vld [vmem:[%s339 + $0x178] sm:$0xf]
      %v1019 = vld [vmem:[%s339 + $0x17c] sm:$0xf]
      %v1020 = vld [vmem:[%s339 + $0x180] sm:$0xf]
      %v1021 = vld [vmem:[%s339 + $0x184] sm:$0xf]
      %v1022 = vld [vmem:[%s339 + $0x188] sm:$0xf]
      %v1023 = vld [vmem:[%s339 + $0x18c] sm:$0xf]
      %v1024 = vld [vmem:[%s339 + $0x190] sm:$0xf]
      %v1025 = vld [vmem:[%s339 + $0x194] sm:$0xf]
      %v1026 = vld [vmem:[%s339 + $0x198] sm:$0xf]
      %v1027 = vld [vmem:[%s339 + $0x19c] sm:$0xf]
      %v1028 = vld [vmem:[%s339 + $0x1a0] sm:$0xf]
      %v1029 = vld [vmem:[%s339 + $0x1a4] sm:$0xf]
      %v1030 = vld [vmem:[%s339 + $0x1a8] sm:$0xf]
      %v1031 = vld [vmem:[%s339 + $0x1ac] sm:$0xf]
      %v1032 = vld [vmem:[%s339 + $0x1b0] sm:$0xf]
      %v1033 = vld [vmem:[%s339 + $0x1b4] sm:$0xf]
      %v1034 = vld [vmem:[%s339 + $0x1b8] sm:$0xf]
      %v1035 = vld [vmem:[%s339 + $0x1bc] sm:$0xf]
      %v1036 = vld [vmem:[%s339 + $0x1c0] sm:$0xf]
      %v1037 = vld [vmem:[%s339 + $0x1c4] sm:$0xf]
      %v1038 = vld [vmem:[%s339 + $0x1c8] sm:$0xf]
      %v1039 = vld [vmem:[%s339 + $0x1cc] sm:$0xf]
      %v1040 = vld [vmem:[%s339 + $0x1d0] sm:$0xf]
      %v1041 = vld [vmem:[%s339 + $0x1d4] sm:$0xf]
      %v1042 = vld [vmem:[%s339 + $0x1d8] sm:$0xf]
      %v1043 = vld [vmem:[%s339 + $0x1dc] sm:$0xf]
      %v1044 = vld [vmem:[%s339 + $0x1e0] sm:$0xf]
      %v1045 = vld [vmem:[%s339 + $0x1e4] sm:$0xf]
      %v1046 = vld [vmem:[%s339 + $0x1e8] sm:$0xf]
      %v1047 = vld [vmem:[%s339 + $0x1ec] sm:$0xf]
      %v1048 = vld [vmem:[%s339 + $0x1f0] sm:$0xf]
      %v1049 = vld [vmem:[%s339 + $0x1f4] sm:$0xf]
      %v1050 = vld [vmem:[%s339 + $0x1f8] sm:$0xf]
      %v1051 = vld [vmem:[%s339 + $0x1fc] sm:$0xf]
      %v1052 = vld [vmem:[%s339 + $0x200] sm:$0xf]
      %v1053 = vld [vmem:[%s339 + $0x204] sm:$0xf]
      %v1054 = vld [vmem:[%s339 + $0x208] sm:$0xf]
      %v1055 = vld [vmem:[%s339 + $0x20c] sm:$0xf]
      %v1056 = vld [vmem:[%s339 + $0x210] sm:$0xf]
      %v1057 = vld [vmem:[%s339 + $0x214] sm:$0xf]
      %v1058 = vld [vmem:[%s339 + $0x218] sm:$0xf]
      %v1059 = vld [vmem:[%s339 + $0x21c] sm:$0xf]
      %v1060 = vld [vmem:[%s339 + $0x220] sm:$0xf]
      %v1061 = vld [vmem:[%s339 + $0x224] sm:$0xf]
      %v1062 = vld [vmem:[%s339 + $0x228] sm:$0xf]
      %v1063 = vld [vmem:[%s339 + $0x22c] sm:$0xf]
      %v1064 = vld [vmem:[%s339 + $0x230] sm:$0xf]
      %v1065 = vld [vmem:[%s339 + $0x234] sm:$0xf]
      %v1066 = vld [vmem:[%s339 + $0x238] sm:$0xf]
      %v1067 = vld [vmem:[%s339 + $0x23c] sm:$0xf]
      %v1068 = vld [vmem:[%s342] sm:$0x1]
      %v1070 = vlaneseq
      %v1071 = vshrl.u32 %v1070, 7
      %v1072 = vsub.s32 0, %v1071
      %v1073 = vrot.slane %v1068, %v1072
      %v1115 = vunpack.c.l.b16 %v884
      %v1116 = vunpack.c.h.b16 %v884
      %v1117 = vunpack.c.l.b16 %v885
      %v1118 = vunpack.c.h.b16 %v885
      %v1119 = vunpack.c.l.b16 %v886
      %v1120 = vunpack.c.h.b16 %v886
      %v1121 = vunpack.c.l.b16 %v887
      %v1122 = vunpack.c.h.b16 %v887
      %v1123 = vunpack.c.l.b16 %v888
      %v1124 = vunpack.c.l.b16 %v889
      %v1125 = vunpack.c.h.b16 %v889
      %v1126 = vunpack.c.l.b16 %v890
      %v1127 = vunpack.c.h.b16 %v890
      %v1128 = vunpack.c.l.b16 %v891
      %v1129 = vunpack.c.h.b16 %v891
      %v1130 = vunpack.c.l.b16 %v892
      %v1131 = vunpack.c.h.b16 %v892
      %v1132 = vunpack.c.l.b16 %v893
      %v1133 = vunpack.c.l.b16 %v894
      %v1134 = vunpack.c.h.b16 %v894
      %v1135 = vunpack.c.l.b16 %v895
      %v1136 = vunpack.c.h.b16 %v895
      %v1137 = vunpack.c.l.b16 %v896
      %v1138 = vunpack.c.h.b16 %v896
      %v1139 = vunpack.c.l.b16 %v897
      %v1140 = vunpack.c.h.b16 %v897
      %v1141 = vunpack.c.l.b16 %v898
      %v1142 = vunpack.c.l.b16 %v899
      %v1143 = vunpack.c.h.b16 %v899
      %v1144 = vunpack.c.l.b16 %v900
      %v1145 = vunpack.c.h.b16 %v900
      %v1146 = vunpack.c.l.b16 %v901
      %v1147 = vunpack.c.h.b16 %v901
      %v1148 = vunpack.c.l.b16 %v902
      %v1149 = vunpack.c.h.b16 %v902
      %v1150 = vunpack.c.l.b16 %v903
      %v1151 = vunpack.c.l.b16 %v904
      %v1152 = vunpack.c.h.b16 %v904
      %v1153 = vunpack.c.l.b16 %v905
      %v1154 = vunpack.c.h.b16 %v905
      %v1155 = vunpack.c.l.b16 %v906
      %v1156 = vunpack.c.h.b16 %v906
      %v1157 = vunpack.c.l.b16 %v907
      %v1158 = vunpack.c.h.b16 %v907
      %v1159 = vunpack.c.l.b16 %v908
      %v1160 = vunpack.c.l.b16 %v909
      %v1161 = vunpack.c.h.b16 %v909
      %v1162 = vunpack.c.l.b16 %v910
      %v1163 = vunpack.c.h.b16 %v910
      %v1164 = vunpack.c.l.b16 %v911
      %v1165 = vunpack.c.h.b16 %v911
      %v1166 = vunpack.c.l.b16 %v912
      %v1167 = vunpack.c.h.b16 %v912
      %v1168 = vunpack.c.l.b16 %v913
      %v1169 = vunpack.c.l.b16 %v914
      %v1170 = vunpack.c.h.b16 %v914
      %v1171 = vunpack.c.l.b16 %v915
      %v1172 = vunpack.c.h.b16 %v915
      %v1173 = vunpack.c.l.b16 %v916
      %v1174 = vunpack.c.h.b16 %v916
      %v1175 = vunpack.c.l.b16 %v917
      %v1176 = vunpack.c.h.b16 %v917
      %v1177 = vunpack.c.l.b16 %v918
      %v1178 = vunpack.c.l.b16 %v919
      %v1179 = vunpack.c.h.b16 %v919
      %v1180 = vunpack.c.l.b16 %v920
      %v1181 = vunpack.c.h.b16 %v920
      %v1182 = vunpack.c.l.b16 %v921
      %v1183 = vunpack.c.h.b16 %v921
      %v1184 = vunpack.c.l.b16 %v922
      %v1185 = vunpack.c.h.b16 %v922
      %v1186 = vunpack.c.l.b16 %v923
      %v1187 = vpack.c.b16 %v1124, %v1115
      %v1188 = vpack.c.b16 %v1125, %v1116
      %v1189 = vpack.c.b16 %v1126, %v1117
      %v1190 = vpack.c.b16 %v1127, %v1118
      %v1191 = vpack.c.b16 %v1128, %v1119
      %v1192 = vpack.c.b16 %v1129, %v1120
      %v1193 = vpack.c.b16 %v1130, %v1121
      %v1194 = vpack.c.b16 %v1131, %v1122
      %v1195 = vpack.c.b16 %v1132, %v1123
      %v1196 = vpack.c.b16 %v1142, %v1133
      %v1197 = vpack.c.b16 %v1143, %v1134
      %v1198 = vpack.c.b16 %v1144, %v1135
      %v1199 = vpack.c.b16 %v1145, %v1136
      %v1200 = vpack.c.b16 %v1146, %v1137
      %v1201 = vpack.c.b16 %v1147, %v1138
      %v1202 = vpack.c.b16 %v1148, %v1139
      %v1203 = vpack.c.b16 %v1149, %v1140
      %v1204 = vpack.c.b16 %v1150, %v1141
      %v1205 = vpack.c.b16 %v1160, %v1151
      %v1206 = vpack.c.b16 %v1161, %v1152
      %v1207 = vpack.c.b16 %v1162, %v1153
      %v1208 = vpack.c.b16 %v1163, %v1154
      %v1209 = vpack.c.b16 %v1164, %v1155
      %v1210 = vpack.c.b16 %v1165, %v1156
      %v1211 = vpack.c.b16 %v1166, %v1157
      %v1212 = vpack.c.b16 %v1167, %v1158
      %v1213 = vpack.c.b16 %v1168, %v1159
      %v1214 = vpack.c.b16 %v1178, %v1169
      %v1215 = vpack.c.b16 %v1179, %v1170
      %v1216 = vpack.c.b16 %v1180, %v1171
      %v1217 = vpack.c.b16 %v1181, %v1172
      %v1218 = vpack.c.b16 %v1182, %v1173
      %v1219 = vpack.c.b16 %v1183, %v1174
      %v1220 = vpack.c.b16 %v1184, %v1175
      %v1221 = vpack.c.b16 %v1185, %v1176
      %v1222 = vpack.c.b16 %v1186, %v1177
      %v1403 = vunpack.c.l.b16 %v924
      %v1404 = vunpack.c.l.b16 %v925
      %v1405 = vunpack.c.l.b16 %v926
      %v1406 = vunpack.c.l.b16 %v927
      %v1407 = vunpack.c.l.b16 %v928
      %v1408 = vunpack.c.l.b16 %v929
      %v1409 = vunpack.c.l.b16 %v930
      %v1410 = vunpack.c.l.b16 %v931
      %v1411 = vunpack.c.l.b16 %v932
      %v1412 = vunpack.c.l.b16 %v933
      %v1413 = vunpack.c.l.b16 %v934
      %v1414 = vunpack.c.l.b16 %v935
      %v1415 = vunpack.c.l.b16 %v936
      %v1416 = vunpack.c.l.b16 %v937
      %v1417 = vunpack.c.l.b16 %v938
      %v1418 = vunpack.c.l.b16 %v939
      %v1419 = vunpack.c.l.b16 %v940
      %v1420 = vunpack.c.l.b16 %v941
      %v1421 = vunpack.c.l.b16 %v942
      %v1422 = vunpack.c.l.b16 %v943
      %v1423 = vunpack.c.l.b16 %v944
      %v1424 = vunpack.c.l.b16 %v945
      %v1425 = vunpack.c.l.b16 %v946
      %v1426 = vunpack.c.l.b16 %v947
      %v1427 = vunpack.c.l.b16 %v948
      %v1428 = vunpack.c.l.b16 %v949
      %v1429 = vunpack.c.l.b16 %v950
      %v1430 = vunpack.c.l.b16 %v951
      %v1431 = vunpack.c.l.b16 %v952
      %v1432 = vunpack.c.l.b16 %v953
      %v1433 = vunpack.c.l.b16 %v954
      %v1434 = vunpack.c.l.b16 %v955
      %v1435 = vunpack.c.l.b16 %v956
      %v1436 = vunpack.c.l.b16 %v957
      %v1437 = vunpack.c.l.b16 %v958
      %v1438 = vunpack.c.l.b16 %v959
      %v1439 = vunpack.c.l.b16 %v960
      %v1440 = vunpack.c.l.b16 %v961
      %v1441 = vunpack.c.l.b16 %v962
      %v1442 = vunpack.c.l.b16 %v963
      %v1443 = vunpack.c.l.b16 %v964
      %v1444 = vunpack.c.l.b16 %v965
      %v1445 = vunpack.c.l.b16 %v966
      %v1446 = vunpack.c.l.b16 %v967
      %v1447 = vunpack.c.l.b16 %v968
      %v1448 = vunpack.c.l.b16 %v969
      %v1449 = vunpack.c.l.b16 %v970
      %v1450 = vunpack.c.l.b16 %v971
      %v1451 = vunpack.c.l.b16 %v972
      %v1452 = vunpack.c.l.b16 %v973
      %v1453 = vunpack.c.l.b16 %v974
      %v1454 = vunpack.c.l.b16 %v975
      %v1455 = vunpack.c.l.b16 %v976
      %v1456 = vunpack.c.l.b16 %v977
      %v1457 = vunpack.c.l.b16 %v978
      %v1458 = vunpack.c.l.b16 %v979
      %v1459 = vunpack.c.l.b16 %v980
      %v1460 = vunpack.c.l.b16 %v981
      %v1461 = vunpack.c.l.b16 %v982
      %v1462 = vunpack.c.l.b16 %v983
      %v1463 = vunpack.c.l.b16 %v984
      %v1464 = vunpack.c.l.b16 %v985
      %v1465 = vunpack.c.l.b16 %v986
      %v1466 = vunpack.c.l.b16 %v987
      %v1467 = vunpack.c.l.b16 %v988
      %v1468 = vunpack.c.l.b16 %v989
      %v1469 = vunpack.c.l.b16 %v990
      %v1470 = vunpack.c.l.b16 %v991
      %v1471 = vunpack.c.l.b16 %v992
      %v1472 = vunpack.c.l.b16 %v993
      %v1473 = vunpack.c.l.b16 %v994
      %v1474 = vunpack.c.l.b16 %v995
      %v1475 = vunpack.c.l.b16 %v996
      %v1476 = vunpack.c.l.b16 %v997
      %v1477 = vunpack.c.l.b16 %v998
      %v1478 = vunpack.c.l.b16 %v999
      %v1479 = vunpack.c.l.b16 %v1000
      %v1480 = vunpack.c.l.b16 %v1001
      %v1481 = vunpack.c.l.b16 %v1002
      %v1482 = vunpack.c.l.b16 %v1003
      %v1483 = vunpack.c.l.b16 %v1004
      %v1484 = vunpack.c.l.b16 %v1005
      %v1485 = vunpack.c.l.b16 %v1006
      %v1486 = vunpack.c.l.b16 %v1007
      %v1487 = vunpack.c.l.b16 %v1008
      %v1488 = vunpack.c.l.b16 %v1009
      %v1489 = vunpack.c.l.b16 %v1010
      %v1490 = vunpack.c.l.b16 %v1011
      %v1491 = vunpack.c.l.b16 %v1012
      %v1492 = vunpack.c.l.b16 %v1013
      %v1493 = vunpack.c.l.b16 %v1014
      %v1494 = vunpack.c.l.b16 %v1015
      %v1495 = vunpack.c.l.b16 %v1016
      %v1496 = vunpack.c.l.b16 %v1017
      %v1497 = vunpack.c.l.b16 %v1018
      %v1498 = vunpack.c.l.b16 %v1019
      %v1499 = vunpack.c.l.b16 %v1020
      %v1500 = vunpack.c.l.b16 %v1021
      %v1501 = vunpack.c.l.b16 %v1022
      %v1502 = vunpack.c.l.b16 %v1023
      %v1503 = vunpack.c.l.b16 %v1024
      %v1504 = vunpack.c.l.b16 %v1025
      %v1505 = vunpack.c.l.b16 %v1026
      %v1506 = vunpack.c.l.b16 %v1027
      %v1507 = vunpack.c.l.b16 %v1028
      %v1508 = vunpack.c.l.b16 %v1029
      %v1509 = vunpack.c.l.b16 %v1030
      %v1510 = vunpack.c.l.b16 %v1031
      %v1511 = vunpack.c.l.b16 %v1032
      %v1512 = vunpack.c.l.b16 %v1033
      %v1513 = vunpack.c.l.b16 %v1034
      %v1514 = vunpack.c.l.b16 %v1035
      %v1515 = vunpack.c.l.b16 %v1036
      %v1516 = vunpack.c.l.b16 %v1037
      %v1517 = vunpack.c.l.b16 %v1038
      %v1518 = vunpack.c.l.b16 %v1039
      %v1519 = vunpack.c.l.b16 %v1040
      %v1520 = vunpack.c.l.b16 %v1041
      %v1521 = vunpack.c.l.b16 %v1042
      %v1522 = vunpack.c.l.b16 %v1043
      %v1523 = vunpack.c.l.b16 %v1044
      %v1524 = vunpack.c.l.b16 %v1045
      %v1525 = vunpack.c.l.b16 %v1046
      %v1526 = vunpack.c.l.b16 %v1047
      %v1527 = vunpack.c.l.b16 %v1048
      %v1528 = vunpack.c.l.b16 %v1049
      %v1529 = vunpack.c.l.b16 %v1050
      %v1530 = vunpack.c.l.b16 %v1051
      %v1531 = vunpack.c.l.b16 %v1052
      %v1532 = vunpack.c.l.b16 %v1053
      %v1533 = vunpack.c.l.b16 %v1054
      %v1534 = vunpack.c.l.b16 %v1055
      %v1535 = vunpack.c.l.b16 %v1056
      %v1536 = vunpack.c.l.b16 %v1057
      %v1537 = vunpack.c.l.b16 %v1058
      %v1538 = vunpack.c.l.b16 %v1059
      %v1539 = vunpack.c.l.b16 %v1060
      %v1540 = vunpack.c.l.b16 %v1061
      %v1541 = vunpack.c.l.b16 %v1062
      %v1542 = vunpack.c.l.b16 %v1063
      %v1543 = vunpack.c.l.b16 %v1064
      %v1544 = vunpack.c.l.b16 %v1065
      %v1545 = vunpack.c.l.b16 %v1066
      %v1546 = vunpack.c.l.b16 %v1067
      %v1547 = vpack.c.b16 %v1404, %v1403
      %v1548 = vpack.c.b16 %v1406, %v1405
      %v1549 = vpack.c.b16 %v1408, %v1407
      %v1550 = vpack.c.b16 %v1410, %v1409
      %v1551 = vpack.c.b16 %v1412, %v1411
      %v1552 = vpack.c.b16 %v1414, %v1413
      %v1553 = vpack.c.b16 %v1416, %v1415
      %v1554 = vpack.c.b16 %v1418, %v1417
      %v1555 = vpack.c.b16 %v1420, %v1419
      %v1556 = vpack.c.b16 %v1422, %v1421
      %v1557 = vpack.c.b16 %v1424, %v1423
      %v1558 = vpack.c.b16 %v1426, %v1425
      %v1559 = vpack.c.b16 %v1428, %v1427
      %v1560 = vpack.c.b16 %v1430, %v1429
      %v1561 = vpack.c.b16 %v1432, %v1431
      %v1562 = vpack.c.b16 %v1434, %v1433
      %v1563 = vpack.c.b16 %v1436, %v1435
      %v1564 = vpack.c.b16 %v1438, %v1437
      %v1565 = vpack.c.b16 %v1440, %v1439
      %v1566 = vpack.c.b16 %v1442, %v1441
      %v1567 = vpack.c.b16 %v1444, %v1443
      %v1568 = vpack.c.b16 %v1446, %v1445
      %v1569 = vpack.c.b16 %v1448, %v1447
      %v1570 = vpack.c.b16 %v1450, %v1449
      %v1571 = vpack.c.b16 %v1452, %v1451
      %v1572 = vpack.c.b16 %v1454, %v1453
      %v1573 = vpack.c.b16 %v1456, %v1455
      %v1574 = vpack.c.b16 %v1458, %v1457
      %v1575 = vpack.c.b16 %v1460, %v1459
      %v1576 = vpack.c.b16 %v1462, %v1461
      %v1577 = vpack.c.b16 %v1464, %v1463
      %v1578 = vpack.c.b16 %v1466, %v1465
      %v1579 = vpack.c.b16 %v1468, %v1467
      %v1580 = vpack.c.b16 %v1470, %v1469
      %v1581 = vpack.c.b16 %v1472, %v1471
      %v1582 = vpack.c.b16 %v1474, %v1473
      %v1583 = vpack.c.b16 %v1476, %v1475
      %v1584 = vpack.c.b16 %v1478, %v1477
      %v1585 = vpack.c.b16 %v1480, %v1479
      %v1586 = vpack.c.b16 %v1482, %v1481
      %v1587 = vpack.c.b16 %v1484, %v1483
      %v1588 = vpack.c.b16 %v1486, %v1485
      %v1589 = vpack.c.b16 %v1488, %v1487
      %v1590 = vpack.c.b16 %v1490, %v1489
      %v1591 = vpack.c.b16 %v1492, %v1491
      %v1592 = vpack.c.b16 %v1494, %v1493
      %v1593 = vpack.c.b16 %v1496, %v1495
      %v1594 = vpack.c.b16 %v1498, %v1497
      %v1595 = vpack.c.b16 %v1500, %v1499
      %v1596 = vpack.c.b16 %v1502, %v1501
      %v1597 = vpack.c.b16 %v1504, %v1503
      %v1598 = vpack.c.b16 %v1506, %v1505
      %v1599 = vpack.c.b16 %v1508, %v1507
      %v1600 = vpack.c.b16 %v1510, %v1509
      %v1601 = vpack.c.b16 %v1512, %v1511
      %v1602 = vpack.c.b16 %v1514, %v1513
      %v1603 = vpack.c.b16 %v1516, %v1515
      %v1604 = vpack.c.b16 %v1518, %v1517
      %v1605 = vpack.c.b16 %v1520, %v1519
      %v1606 = vpack.c.b16 %v1522, %v1521
      %v1607 = vpack.c.b16 %v1524, %v1523
      %v1608 = vpack.c.b16 %v1526, %v1525
      %v1609 = vpack.c.b16 %v1528, %v1527
      %v1610 = vpack.c.b16 %v1530, %v1529
      %v1611 = vpack.c.b16 %v1532, %v1531
      %v1612 = vpack.c.b16 %v1534, %v1533
      %v1613 = vpack.c.b16 %v1536, %v1535
      %v1614 = vpack.c.b16 %v1538, %v1537
      %v1615 = vpack.c.b16 %v1540, %v1539
      %v1616 = vpack.c.b16 %v1542, %v1541
      %v1617 = vpack.c.b16 %v1544, %v1543
      %v1618 = vpack.c.b16 %v1546, %v1545
      %1691 = vmatprep.subr.bf16.mxu0 0
      %1692 = vmatpush1.bf16.msra.mxu0 %v1554
      %1693 = vmatprep.subr.bf16.mxu0 0
      %1694 = vmatpush1.bf16.msra.mxu0 %v1553
      %1695 = vmatprep.subr.bf16.mxu0 0
      %1696 = vmatpush1.bf16.msra.mxu0 %v1552
      %1697 = vmatprep.subr.bf16.mxu0 0
      %1698 = vmatpush1.bf16.msra.mxu0 %v1551
      %1699 = vmatprep.subr.bf16.mxu0 0
      %1700 = vmatpush1.bf16.msra.mxu0 %v1550
      %1701 = vmatprep.subr.bf16.mxu0 0
      %1702 = vmatpush1.bf16.msra.mxu0 %v1549
      %1703 = vmatprep.subr.bf16.mxu0 0
      %1704 = vmatpush1.bf16.msra.mxu0 %v1548
      %1705 = vmatprep.subr.bf16.mxu0 0
      %1706 = vmatpush1.bf16.msra.mxu0 %v1547
      %1707 = vmatprep.subr.bf16.mxu0 0
      %1708 = vmatpush2.bf16.msra.mxu0 %v1562
      %1709 = vmatprep.subr.bf16.mxu0 0
      %1710 = vmatpush2.bf16.msra.mxu0 %v1561
      %1711 = vmatprep.subr.bf16.mxu0 0
      %1712 = vmatpush2.bf16.msra.mxu0 %v1560
      %1713 = vmatprep.subr.bf16.mxu0 0
      %1714 = vmatpush2.bf16.msra.mxu0 %v1559
      %1715 = vmatprep.subr.bf16.mxu0 0
      %1716 = vmatpush2.bf16.msra.mxu0 %v1558
      %1717 = vmatprep.subr.bf16.mxu0 0
      %1718 = vmatpush2.bf16.msra.mxu0 %v1557
      %1719 = vmatprep.subr.bf16.mxu0 0
      %1720 = vmatpush2.bf16.msra.mxu0 %v1556
      %1721 = vmatprep.subr.bf16.mxu0 0
      %1722 = vmatpush2.bf16.msra.mxu0 %v1555
      %1723 = vmatprep.mubr.bf16.mxu0 %v1188
      %1724 = vmatmul.mubr.bf16.gmra.mxu0 %v1187
      %v1725 = vpop.f32.mrf.mxu0
      %v1726 = vadd.f32 %v1073, %v1725
      %v1727 = vpop.f32.mrf.mxu0
      %v1728 = vpop.f32.mrf.mxu0
      %v1729 = vadd.f32 %v1073, %v1728
      %v1730 = vpop.f32.mrf.mxu0
      %1731 = vmatprep.mubr.bf16.mxu0 %v1197
      %1732 = vmatmul.mubr.bf16.gmra.mxu0 %v1196
      %v1733 = vpop.f32.mrf.mxu0
      %v1734 = vadd.f32 %v1073, %v1733
      %v1735 = vpop.f32.mrf.mxu0
      %v1736 = vpop.f32.mrf.mxu0
      %v1737 = vadd.f32 %v1073, %v1736
      %v1738 = vpop.f32.mrf.mxu0
      %1739 = vmatprep.mubr.bf16.mxu0 %v1206
      %1740 = vmatmul.mubr.bf16.gmra.mxu0 %v1205
      %v1741 = vpop.f32.mrf.mxu0
      %v1742 = vadd.f32 %v1073, %v1741
      %v1743 = vpop.f32.mrf.mxu0
      %v1744 = vpop.f32.mrf.mxu0
      %v1745 = vadd.f32 %v1073, %v1744
      %v1746 = vpop.f32.mrf.mxu0
      %1747 = vmatprep.mubr.bf16.mxu0 %v1215
      %1748 = vmatmul.mubr.bf16.gmra.mxu0 %v1214
      %v1749 = vpop.f32.mrf.mxu0
      %v1750 = vadd.f32 %v1073, %v1749
      %v1751 = vpop.f32.mrf.mxu0
      %v1752 = vpop.f32.mrf.mxu0
      %v1753 = vadd.f32 %v1073, %v1752
      %v1754 = vpop.f32.mrf.mxu0
      %1755 = vdwg.mxu0
      %1756 = vmatprep.subr.bf16.mxu0 0
      %1757 = vmatpush1.bf16.msra.mxu0 %v1570
      %1758 = vmatprep.subr.bf16.mxu0 0
      %1759 = vmatpush1.bf16.msra.mxu0 %v1569
      %1760 = vmatprep.subr.bf16.mxu0 0
      %1761 = vmatpush1.bf16.msra.mxu0 %v1568
      %1762 = vmatprep.subr.bf16.mxu0 0
      %1763 = vmatpush1.bf16.msra.mxu0 %v1567
      %1764 = vmatprep.subr.bf16.mxu0 0
      %1765 = vmatpush1.bf16.msra.mxu0 %v1566
      %1766 = vmatprep.subr.bf16.mxu0 0
      %1767 = vmatpush1.bf16.msra.mxu0 %v1565
      %1768 = vmatprep.subr.bf16.mxu0 0
      %1769 = vmatpush1.bf16.msra.mxu0 %v1564
      %1770 = vmatprep.subr.bf16.mxu0 0
      %1771 = vmatpush1.bf16.msra.mxu0 %v1563
      %1772 = vmatprep.subr.bf16.mxu0 0
      %1773 = vmatpush2.bf16.msra.mxu0 %v1578
      %1774 = vmatprep.subr.bf16.mxu0 0
      %1775 = vmatpush2.bf16.msra.mxu0 %v1577
      %1776 = vmatprep.subr.bf16.mxu0 0
      %1777 = vmatpush2.bf16.msra.mxu0 %v1576
      %1778 = vmatprep.subr.bf16.mxu0 0
      %1779 = vmatpush2.bf16.msra.mxu0 %v1575
      %1780 = vmatprep.subr.bf16.mxu0 0
      %1781 = vmatpush2.bf16.msra.mxu0 %v1574
      %1782 = vmatprep.subr.bf16.mxu0 0
      %1783 = vmatpush2.bf16.msra.mxu0 %v1573
      %1784 = vmatprep.subr.bf16.mxu0 0
      %1785 = vmatpush2.bf16.msra.mxu0 %v1572
      %1786 = vmatprep.subr.bf16.mxu0 0
      %1787 = vmatpush2.bf16.msra.mxu0 %v1571
      %1788 = vmatprep.mubr.bf16.mxu0 %v1190
      %1789 = vmatmul.mubr.bf16.gmra.mxu0 %v1189
      %v1790 = vpop.f32.mrf.mxu0
      %v1791 = vadd.f32 %v1726, %v1790
      %v1792 = vpop.f32.mrf.mxu0
      %v1793 = vpop.f32.mrf.mxu0
      %v1794 = vadd.f32 %v1729, %v1793
      %v1795 = vpop.f32.mrf.mxu0
      %1796 = vmatprep.mubr.bf16.mxu0 %v1199
      %1797 = vmatmul.mubr.bf16.gmra.mxu0 %v1198
      %v1798 = vpop.f32.mrf.mxu0
      %v1799 = vadd.f32 %v1734, %v1798
      %v1800 = vpop.f32.mrf.mxu0
      %v1801 = vpop.f32.mrf.mxu0
      %v1802 = vadd.f32 %v1737, %v1801
      %v1803 = vpop.f32.mrf.mxu0
      %1804 = vmatprep.mubr.bf16.mxu0 %v1208
      %1805 = vmatmul.mubr.bf16.gmra.mxu0 %v1207
      %v1806 = vpop.f32.mrf.mxu0
      %v1807 = vadd.f32 %v1742, %v1806
      %v1808 = vpop.f32.mrf.mxu0
      %v1809 = vpop.f32.mrf.mxu0
      %v1810 = vadd.f32 %v1745, %v1809
      %v1811 = vpop.f32.mrf.mxu0
      %1812 = vmatprep.mubr.bf16.mxu0 %v1217
      %1813 = vmatmul.mubr.bf16.gmra.mxu0 %v1216
      %v1814 = vpop.f32.mrf.mxu0
      %v1815 = vadd.f32 %v1750, %v1814
      %v1816 = vpop.f32.mrf.mxu0
      %v1817 = vpop.f32.mrf.mxu0
      %v1818 = vadd.f32 %v1753, %v1817
      %v1819 = vpop.f32.mrf.mxu0
      %1820 = vdwg.mxu0
      %1821 = vmatprep.subr.bf16.mxu0 0
      %1822 = vmatpush1.bf16.msra.mxu0 %v1586
      %1823 = vmatprep.subr.bf16.mxu0 0
      %1824 = vmatpush1.bf16.msra.mxu0 %v1585
      %1825 = vmatprep.subr.bf16.mxu0 0
      %1826 = vmatpush1.bf16.msra.mxu0 %v1584
      %1827 = vmatprep.subr.bf16.mxu0 0
      %1828 = vmatpush1.bf16.msra.mxu0 %v1583
      %1829 = vmatprep.subr.bf16.mxu0 0
      %1830 = vmatpush1.bf16.msra.mxu0 %v1582
      %1831 = vmatprep.subr.bf16.mxu0 0
      %1832 = vmatpush1.bf16.msra.mxu0 %v1581
      %1833 = vmatprep.subr.bf16.mxu0 0
      %1834 = vmatpush1.bf16.msra.mxu0 %v1580
      %1835 = vmatprep.subr.bf16.mxu0 0
      %1836 = vmatpush1.bf16.msra.mxu0 %v1579
      %1837 = vmatprep.subr.bf16.mxu0 0
      %1838 = vmatpush2.bf16.msra.mxu0 %v1594
      %1839 = vmatprep.subr.bf16.mxu0 0
      %1840 = vmatpush2.bf16.msra.mxu0 %v1593
      %1841 = vmatprep.subr.bf16.mxu0 0
      %1842 = vmatpush2.bf16.msra.mxu0 %v1592
      %1843 = vmatprep.subr.bf16.mxu0 0
      %1844 = vmatpush2.bf16.msra.mxu0 %v1591
      %1845 = vmatprep.subr.bf16.mxu0 0
      %1846 = vmatpush2.bf16.msra.mxu0 %v1590
      %1847 = vmatprep.subr.bf16.mxu0 0
      %1848 = vmatpush2.bf16.msra.mxu0 %v1589
      %1849 = vmatprep.subr.bf16.mxu0 0
      %1850 = vmatpush2.bf16.msra.mxu0 %v1588
      %1851 = vmatprep.subr.bf16.mxu0 0
      %1852 = vmatpush2.bf16.msra.mxu0 %v1587
      %1853 = vmatprep.mubr.bf16.mxu0 %v1192
      %1854 = vmatmul.mubr.bf16.gmra.mxu0 %v1191
      %v1855 = vpop.f32.mrf.mxu0
      %v1856 = vadd.f32 %v1791, %v1855
      %v1857 = vpop.f32.mrf.mxu0
      %v1858 = vpop.f32.mrf.mxu0
      %v1859 = vadd.f32 %v1794, %v1858
      %v1860 = vpop.f32.mrf.mxu0
      %1861 = vmatprep.mubr.bf16.mxu0 %v1201
      %1862 = vmatmul.mubr.bf16.gmra.mxu0 %v1200
      %v1863 = vpop.f32.mrf.mxu0
      %v1864 = vadd.f32 %v1799, %v1863
      %v1865 = vpop.f32.mrf.mxu0
      %v1866 = vpop.f32.mrf.mxu0
      %v1867 = vadd.f32 %v1802, %v1866
      %v1868 = vpop.f32.mrf.mxu0
      %1869 = vmatprep.mubr.bf16.mxu0 %v1210
      %1870 = vmatmul.mubr.bf16.gmra.mxu0 %v1209
      %v1871 = vpop.f32.mrf.mxu0
      %v1872 = vadd.f32 %v1807, %v1871
      %v1873 = vpop.f32.mrf.mxu0
      %v1874 = vpop.f32.mrf.mxu0
      %v1875 = vadd.f32 %v1810, %v1874
      %v1876 = vpop.f32.mrf.mxu0
      %1877 = vmatprep.mubr.bf16.mxu0 %v1219
      %1878 = vmatmul.mubr.bf16.gmra.mxu0 %v1218
      %v1879 = vpop.f32.mrf.mxu0
      %v1880 = vadd.f32 %v1815, %v1879
      %v1881 = vpop.f32.mrf.mxu0
      %v1882 = vpop.f32.mrf.mxu0
      %v1883 = vadd.f32 %v1818, %v1882
      %v1884 = vpop.f32.mrf.mxu0
      %1885 = vdwg.mxu0
      %1886 = vmatprep.subr.bf16.mxu0 0
      %1887 = vmatpush1.bf16.msra.mxu0 %v1602
      %1888 = vmatprep.subr.bf16.mxu0 0
      %1889 = vmatpush1.bf16.msra.mxu0 %v1601
      %1890 = vmatprep.subr.bf16.mxu0 0
      %1891 = vmatpush1.bf16.msra.mxu0 %v1600
      %1892 = vmatprep.subr.bf16.mxu0 0
      %1893 = vmatpush1.bf16.msra.mxu0 %v1599
      %1894 = vmatprep.subr.bf16.mxu0 0
      %1895 = vmatpush1.bf16.msra.mxu0 %v1598
      %1896 = vmatprep.subr.bf16.mxu0 0
      %1897 = vmatpush1.bf16.msra.mxu0 %v1597
      %1898 = vmatprep.subr.bf16.mxu0 0
      %1899 = vmatpush1.bf16.msra.mxu0 %v1596
      %1900 = vmatprep.subr.bf16.mxu0 0
      %1901 = vmatpush1.bf16.msra.mxu0 %v1595
      %1902 = vmatprep.subr.bf16.mxu0 0
      %1903 = vmatpush2.bf16.msra.mxu0 %v1610
      %1904 = vmatprep.subr.bf16.mxu0 0
      %1905 = vmatpush2.bf16.msra.mxu0 %v1609
      %1906 = vmatprep.subr.bf16.mxu0 0
      %1907 = vmatpush2.bf16.msra.mxu0 %v1608
      %1908 = vmatprep.subr.bf16.mxu0 0
      %1909 = vmatpush2.bf16.msra.mxu0 %v1607
      %1910 = vmatprep.subr.bf16.mxu0 0
      %1911 = vmatpush2.bf16.msra.mxu0 %v1606
      %1912 = vmatprep.subr.bf16.mxu0 0
      %1913 = vmatpush2.bf16.msra.mxu0 %v1605
      %1914 = vmatprep.subr.bf16.mxu0 0
      %1915 = vmatpush2.bf16.msra.mxu0 %v1604
      %1916 = vmatprep.subr.bf16.mxu0 0
      %1917 = vmatpush2.bf16.msra.mxu0 %v1603
      %1918 = vmatprep.mubr.bf16.mxu0 %v1194
      %1919 = vmatmul.mubr.bf16.gmra.mxu0 %v1193
      %v1920 = vpop.f32.mrf.mxu0
      %v1921 = vadd.f32 %v1856, %v1920
      %v1922 = vpop.f32.mrf.mxu0
      %v1923 = vpop.f32.mrf.mxu0
      %v1924 = vadd.f32 %v1859, %v1923
      %v1925 = vpop.f32.mrf.mxu0
      %1926 = vmatprep.mubr.bf16.mxu0 %v1203
      %1927 = vmatmul.mubr.bf16.gmra.mxu0 %v1202
      %v1928 = vpop.f32.mrf.mxu0
      %v1929 = vadd.f32 %v1864, %v1928
      %v1930 = vpop.f32.mrf.mxu0
      %v1931 = vpop.f32.mrf.mxu0
      %v1932 = vadd.f32 %v1867, %v1931
      %v1933 = vpop.f32.mrf.mxu0
      %1934 = vmatprep.mubr.bf16.mxu0 %v1212
      %1935 = vmatmul.mubr.bf16.gmra.mxu0 %v1211
      %v1936 = vpop.f32.mrf.mxu0
      %v1937 = vadd.f32 %v1872, %v1936
      %v1938 = vpop.f32.mrf.mxu0
      %v1939 = vpop.f32.mrf.mxu0
      %v1940 = vadd.f32 %v1875, %v1939
      %v1941 = vpop.f32.mrf.mxu0
      %1942 = vmatprep.mubr.bf16.mxu0 %v1221
      %1943 = vmatmul.mubr.bf16.gmra.mxu0 %v1220
      %v1944 = vpop.f32.mrf.mxu0
      %v1945 = vadd.f32 %v1880, %v1944
      %v1946 = vpop.f32.mrf.mxu0
      %v1947 = vpop.f32.mrf.mxu0
      %v1948 = vadd.f32 %v1883, %v1947
      %v1949 = vpop.f32.mrf.mxu0
      %1950 = vdwg.mxu0
      %1951 = vmatprep.subr.bf16.mxu0 0
      %1952 = vmatpush1.bf16.msra.mxu0 %v1618
      %1953 = vmatprep.subr.bf16.mxu0 0
      %1954 = vmatpush1.bf16.msra.mxu0 %v1617
      %1955 = vmatprep.subr.bf16.mxu0 0
      %1956 = vmatpush1.bf16.msra.mxu0 %v1616
      %1957 = vmatprep.subr.bf16.mxu0 0
      %1958 = vmatpush1.bf16.msra.mxu0 %v1615
      %1959 = vmatprep.subr.bf16.mxu0 0
      %1960 = vmatpush1.bf16.msra.mxu0 %v1614
      %1961 = vmatprep.subr.bf16.mxu0 0
      %1962 = vmatpush1.bf16.msra.mxu0 %v1613
      %1963 = vmatprep.subr.bf16.mxu0 0
      %1964 = vmatpush1.bf16.msra.mxu0 %v1612
      %1965 = vmatprep.subr.bf16.mxu0 0
      %1966 = vmatpush1.bf16.msra.mxu0 %v1611
      %1967 = vmatprep.subr.bf16.mxu0 0
      %1968 = vmatpush2.bf16.msra.mxu0 0
      %1969 = vmatprep.subr.bf16.mxu0 0
      %1970 = vmatpush2.bf16.msra.mxu0 0
      %1971 = vmatprep.subr.bf16.mxu0 0
      %1972 = vmatpush2.bf16.msra.mxu0 0
      %1973 = vmatprep.subr.bf16.mxu0 0
      %1974 = vmatpush2.bf16.msra.mxu0 0
      %1975 = vmatprep.subr.bf16.mxu0 0
      %1976 = vmatpush2.bf16.msra.mxu0 0
      %1977 = vmatprep.subr.bf16.mxu0 0
      %1978 = vmatpush2.bf16.msra.mxu0 0
      %1979 = vmatprep.subr.bf16.mxu0 0
      %1980 = vmatpush2.bf16.msra.mxu0 0
      %1981 = vmatprep.subr.bf16.mxu0 0
      %1982 = vmatpush2.bf16.msra.mxu0 0
      %1983 = vmatprep.mubr.bf16.mxu0 0
      %1984 = vmatmul.mubr.bf16.gmra.mxu0 %v1195
      %v1985 = vpop.f32.mrf.mxu0
      %v1986 = vadd.f32 %v1921, %v1985
      %v1987 = vpop.f32.mrf.mxu0
      %v1988 = vpop.f32.mrf.mxu0
      %v1989 = vadd.f32 %v1924, %v1988
      %v1990 = vpop.f32.mrf.mxu0
      %1991 = vmatprep.mubr.bf16.mxu0 0
      %1992 = vmatmul.mubr.bf16.gmra.mxu0 %v1204
      %v1993 = vpop.f32.mrf.mxu0
      %v1994 = vadd.f32 %v1929, %v1993
      %v1995 = vpop.f32.mrf.mxu0
      %v1996 = vpop.f32.mrf.mxu0
      %v1997 = vadd.f32 %v1932, %v1996
      %v1998 = vpop.f32.mrf.mxu0
      %1999 = vmatprep.mubr.bf16.mxu0 0
      %2000 = vmatmul.mubr.bf16.gmra.mxu0 %v1213
      %v2001 = vpop.f32.mrf.mxu0
      %v2002 = vadd.f32 %v1937, %v2001
      %v2003 = vpop.f32.mrf.mxu0
      %v2004 = vpop.f32.mrf.mxu0
      %v2005 = vadd.f32 %v1940, %v2004
      %v2006 = vpop.f32.mrf.mxu0
      %2007 = vmatprep.mubr.bf16.mxu0 0
      %2008 = vmatmul.mubr.bf16.gmra.mxu0 %v1222
      %v2009 = vpop.f32.mrf.mxu0
      %v2010 = vadd.f32 %v1945, %v2009
      %v2011 = vpop.f32.mrf.mxu0
      %v2012 = vpop.f32.mrf.mxu0
      %v2013 = vadd.f32 %v1948, %v2012
      %v2014 = vpop.f32.mrf.mxu0
      %2015 = vdwg.mxu0
      %v2016 = vadd.f32 %v1986, %v1989
      %v2017 = vadd.f32 %v2016, %v1994
      %v2018 = vadd.f32 %v2017, %v1997
      %v2019 = vadd.f32 %v2018, %v2002
      %v2020 = vadd.f32 %v2019, %v2005
      %v2021 = vadd.f32 %v2020, %v2010
      %v2022 = vadd.f32 %v2021, %v2013
      %v2023 = vrot.slane %v2022, 4
      %v2024 = vadd.f32 %v2022, %v2023
      %v2025 = vrot.slane %v2024, 2
      %v2026 = vadd.f32 %v2024, %v2025
      %v2027 = vrot.slane %v2026, 1
      %v2028 = vadd.f32 %v2026, %v2027
      %2029 = vst [vmem:[%s356] sm:$0x1] %v2028
      %v2030 = vmul.f32 %v1986, %v1986
      %v2031 = vmul.f32 %v1989, %v1989
      %v2032 = vmul.f32 %v1994, %v1994
      %v2033 = vmul.f32 %v1997, %v1997
      %v2034 = vmul.f32 %v2002, %v2002
      %v2035 = vmul.f32 %v2005, %v2005
      %v2036 = vmul.f32 %v2010, %v2010
      %v2037 = vmul.f32 %v2013, %v2013
      %v2038 = vadd.f32 %v2030, %v2031
      %v2039 = vadd.f32 %v2038, %v2032
      %v2040 = vadd.f32 %v2039, %v2033
      %v2041 = vadd.f32 %v2040, %v2034
      %v2042 = vadd.f32 %v2041, %v2035
      %v2043 = vadd.f32 %v2042, %v2036
      %v2044 = vadd.f32 %v2043, %v2037
      %v2045 = vrot.slane %v2044, 4
      %v2046 = vadd.f32 %v2044, %v2045
      %v2047 = vrot.slane %v2046, 2
      %v2048 = vadd.f32 %v2046, %v2047
      %v2049 = vrot.slane %v2048, 1
      %v2050 = vadd.f32 %v2048, %v2049
      %2051 = vst [vmem:[%s362] sm:$0x1] %v2050
      %v2052 = vpack.c.bf16 %v1989, %v1986
      %v2053 = vpack.c.bf16 %v1997, %v1994
      %v2054 = vpack.c.bf16 %v2005, %v2002
      %v2055 = vpack.c.bf16 %v2013, %v2010
      %v2060 = vunpack.c.l.b16 %v2052
      %v2061 = vunpack.c.h.b16 %v2052
      %v2062 = vunpack.c.l.b16 %v2053
      %v2063 = vunpack.c.h.b16 %v2053
      %v2064 = vunpack.c.l.b16 %v2054
      %v2065 = vunpack.c.h.b16 %v2054
      %v2066 = vunpack.c.l.b16 %v2055
      %v2067 = vunpack.c.h.b16 %v2055
      %v2068 = vpack.c.b16 %v2060, %v2060
      %v2069 = vpack.c.b16 %v2061, %v2061
      %v2070 = vpack.c.b16 %v2062, %v2062
      %v2071 = vpack.c.b16 %v2063, %v2063
      %v2072 = vpack.c.b16 %v2064, %v2064
      %v2073 = vpack.c.b16 %v2065, %v2065
      %v2074 = vpack.c.b16 %v2066, %v2066
      %v2075 = vpack.c.b16 %v2067, %v2067
      %2084 = vst [vmem:[%s350] sm:$0xf] %v2068
      %2085 = vst [vmem:[%s350 + $0x4] sm:$0xf] %v2069
      %2086 = vst [vmem:[%s350 + $0x8] sm:$0xf] %v2070
      %2087 = vst [vmem:[%s350 + $0xc] sm:$0xf] %v2071
      %2088 = vst [vmem:[%s350 + $0x10] sm:$0xf] %v2072
      %2089 = vst [vmem:[%s350 + $0x14] sm:$0xf] %v2073
      %2090 = vst [vmem:[%s350 + $0x18] sm:$0xf] %v2074
      %2091 = vst [vmem:[%s350 + $0x1c] sm:$0xf] %v2075
      %p2092 = scmp.lt.s32.totalorder %s23, 1
      %s2093 = scalar_select %p2092, %s23, 1
      %p2094 = scmp.lt.s32.totalorder %s24, 0
      %s2095 = scalar_select %p2094, %s24, 0
      %s2096 = smul.addr %s2093, 8
      %s2097 = sadd.s32 %s2095, %s2096
      %s2098 = smul.addr %s2097, 4
      %s2099 = scalar_lea.vmem %s5, %s2098
      %p2100 = scmp.lt.s32.totalorder %s23, 1
      %s2101 = scalar_select %p2100, %s23, 1
      %p2102 = scmp.lt.s32.totalorder %s24, 0
      %s2103 = scalar_select %p2102, %s24, 0
      %s2104 = sadd.s32 %s2103, %s2101
      %s2105 = scalar_lea.vmem %s6, %s2104
      %p2106 = scmp.lt.s32.totalorder %s23, 1
      %s2107 = scalar_select %p2106, %s23, 1
      %p2108 = scmp.lt.s32.totalorder %s24, 0
      %s2109 = scalar_select %p2108, %s24, 0
      %s2110 = sadd.s32 %s2109, %s2107
      %s2111 = scalar_lea.vmem %s7, %s2110
      // Predicated region
      $region45: #{base_residual_forward.4} parent=39 // pred_check
        %p2112 = pneg %p171
      $region46: #{base_residual_forward.4} parent=39 // pred_check_branch
        %2114 = sbr.rel (%p2112) target = $region48
      $region47: #{base_residual_forward.4} parent=39 // pred_region
        _
      $region48: #{base_residual_forward.4} parent=39 // pred_fallthru
        _
      // Predicated region
      $region49: #{base_residual_forward.4} parent=39 // pred_check
        %p2115 = pneg %p199
      $region50: #{base_residual_forward.4} parent=39 // pred_check_branch
        %2117 = sbr.rel (%p2115) target = $region52
      $region51: #{base_residual_forward.4} parent=39 // pred_region
        _
      $region52: #{base_residual_forward.4} parent=39 // pred_fallthru
        _
      // Predicated region
      $region53: #{base_residual_forward.4} parent=39 // pred_check
        %p2118 = pneg %p227
      $region54: #{base_residual_forward.4} parent=39 // pred_check_branch
        %2120 = sbr.rel (%p2118) target = $region56
      $region55: #{base_residual_forward.4} parent=39 // pred_region
        _
      $region56: #{base_residual_forward.4} parent=39 // pred_fallthru
        _
    $region40: #{base_residual_forward.4} parent=5 // pred_fallthru
      _
    %p2121 = scmp.le.s32.totalorder 2, %s14
    // Predicated region
    $region57: #{base_residual_forward.4} parent=5 // pred_check
      %p2122 = pneg %p2121
    $region58: #{base_residual_forward.4} parent=5 // pred_check_branch
      %2124 = sbr.rel (%p2122) target = $region60
    $region59: #{base_residual_forward.4} parent=5 // pred_region
      %s2125 = ssub.s32 %s14, 2
      // Predicated region
      $region61: #{base_residual_forward.4} parent=59 // pred_check
        %p2126 = pneg %p177
      $region62: #{base_residual_forward.4} parent=59 // pred_check_branch
        %2128 = sbr.rel (%p2126) target = $region64
      $region63: #{base_residual_forward.4} parent=59 // pred_region
        %p2129 = scmp.lt.s32.totalorder %s25, 1
        %s2130 = scalar_select %p2129, %s25, 1
        %p2131 = scmp.lt.s32.totalorder %s26, 0
        %s2132 = scalar_select %p2131, %s26, 0
        %s2133 = smul.addr %s2130, 8
        %s2134 = sadd.s32 %s2132, %s2133
        %s2135 = smul.addr %s2134, 4
        %s2136 = scalar_lea.vmem %s5, %s2135
      $region64: #{base_residual_forward.4} parent=59 // pred_fallthru
        _
      // Predicated region
      $region65: #{base_residual_forward.4} parent=59 // pred_check
        %p2137 = pneg %p205
      $region66: #{base_residual_forward.4} parent=59 // pred_check_branch
        %2139 = sbr.rel (%p2137) target = $region68
      $region67: #{base_residual_forward.4} parent=59 // pred_region
        %p2140 = scmp.lt.s32.totalorder %s25, 1
        %s2141 = scalar_select %p2140, %s25, 1
        %p2142 = scmp.lt.s32.totalorder %s26, 0
        %s2143 = scalar_select %p2142, %s26, 0
        %s2144 = sadd.s32 %s2143, %s2141
        %s2145 = scalar_lea.vmem %s6, %s2144
      $region68: #{base_residual_forward.4} parent=59 // pred_fallthru
        _
      // Predicated region
      $region69: #{base_residual_forward.4} parent=59 // pred_check
        %p2146 = pneg %p233
      $region70: #{base_residual_forward.4} parent=59 // pred_check_branch
        %2148 = sbr.rel (%p2146) target = $region72
      $region71: #{base_residual_forward.4} parent=59 // pred_region
        %p2149 = scmp.lt.s32.totalorder %s25, 1
        %s2150 = scalar_select %p2149, %s25, 1
        %p2151 = scmp.lt.s32.totalorder %s26, 0
        %s2152 = scalar_select %p2151, %s26, 0
        %s2153 = sadd.s32 %s2152, %s2150
        %s2154 = scalar_lea.vmem %s7, %s2153
      $region72: #{base_residual_forward.4} parent=59 // pred_fallthru
        _
    $region60: #{base_residual_forward.4} parent=5 // pred_fallthru
      _
  $region6: #{base_residual_forward.4} parent=0 // loop_footer
    %s18 = sadd.s32 1, %s14
  $region7: #{base_residual_forward.4} parent=0 // loop_footer_branch
    %13 = sbr.rel target = $region3
  $region8: #{base_residual_forward.4} parent=0 // loop_exit
    _

// kernel: base_residual_forward.5
$region0: #{base_residual_forward.5}
  #allocation0 [shape = 'u32[]', space=smem, size = 0x4, offset = 0x4, fixed_abs, tag = 'smem constant byte address 0x4 - core index']
  #allocation1 [shape = 'u32[144,128]{1,0:T(1,128)}', space=vmem, size = 0x12000, scoped, tag = 'internal scratch']
  %s0 = inlined_call_operand.vmem [shape: bf16[2,64,128], index: 0, kind: input, shape index: {}]
  %s1 = inlined_call_operand.vmem [shape: bf16[2,64,128], index: 1, kind: input, shape index: {}]
  %s2 = inlined_call_operand.vmem [shape: bf16[128,128], index: 2, kind: input, shape index: {}]
  %s3 = inlined_call_operand.vmem [shape: f32[1,128], index: 3, kind: input, shape index: {}]
  %s4 = inlined_call_operand.vmem [shape: f32[1,128], index: 4, kind: input, shape index: {}]
  %s5 = inlined_call_operand.vmem [shape: f32[1,128], index: 5, kind: input, shape index: {}]
  %s6 = inlined_call_operand.vmem [shape: f32[2,64,128], index: 6, kind: output, shape index: {}]
  %s7 = sld [smem:[#allocation0]]
  $region57: #{base_residual_forward.5} parent=0
    _
  %s9 = ssub.s32 1, %s7
  %s10 = scalar_select 0, %s9, %s7
  loop: start=0, step=1, limit=4
  $region2: #{base_residual_forward.5} parent=0 // loop_pre_header
    _
  $region3: #{base_residual_forward.5} parent=0 // loop_header
    %s12 = sphi 0, %s16
    %p13 = scmp.ge.s32.totalorder %s12, 4
    %s19 = sphi 0, %s38
    %s20 = sphi 0, %s34
    %s21 = sphi 0, %s30
    %s22 = sphi 0, %s19
    %s23 = sphi 0, %s20
    %s24 = sphi 0, %s21
    %s25 = sphi 0, %s22
    %s26 = sphi 0, %s23
    %s27 = sphi 0, %s24
    %s45 = sphi 0, %s47
    %s48 = sphi 0, %s45
    %s49 = sphi 0, %s48
    %s65 = sphi 0, %s49
    %s73 = sphi 0, %s75
    %s76 = sphi 0, %s73
    %s77 = sphi 0, %s76
    %s93 = sphi 0, %s77
    %s99 = sphi 0, %s101
    %s102 = sphi 0, %s99
    %s103 = sphi 0, %s102
    %s119 = sphi 0, %s103
    %s125 = sphi 0, %s127
    %s128 = sphi 0, %s125
    %s129 = sphi 0, %s128
    %s145 = sphi 0, %s129
    %s151 = sphi 0, %s153
    %s154 = sphi 0, %s151
    %s155 = sphi 0, %s154
    %s171 = sphi 0, %s155
    %s177 = sphi 0, %s179
    %s180 = sphi 0, %s177
    %s181 = sphi 0, %s180
    %s197 = sphi 0, %s181
    %s207 = sphi 0, %s209
    %s210 = sphi 0, %s207
    %s211 = sphi 0, %s210
    %s227 = sphi 0, %s211
  $region4: #{base_residual_forward.5} parent=0 // loop_header_branch
    %15 = sbr.rel (%p13) target = $region8
  $region5: #{base_residual_forward.5} parent=0 // loop_body
    %s17 = ssub.s32 %s12, 1
    %s18 = ssub.s32 %s12, 2
    %s28 = sadd.s32 1, %s21
    %p29 = scmp.ge.s32.totalorder %s28, 1
    %s30 = scalar_select %p29, 0, %s28
    %s31 = sadd.s32 1, %s20
    %s32 = scalar_select %p29, %s31, %s20
    %p33 = scmp.ge.s32.totalorder %s32, 1
    %s34 = scalar_select %p33, 0, %s32
    %s35 = sadd.s32 1, %s19
    %s36 = scalar_select %p33, %s35, %s19
    %p37 = scmp.ge.s32.totalorder %s36, 2
    %s38 = scalar_select %p37, 0, %s36
    %s39 = ssub.s32 %s19, %s38
    %s40 = ssub.s32 %s20, %s34
    %s41 = sor.u32 %s39, %s40
    %s42 = ssub.s32 %s21, %s30
    %s43 = sor.u32 %s41, %s42
    %p44 = scmp.eq.s32.totalorder %s43, 0
    %s46 = sadd.s32 %s45, 1
    %s47 = scalar_select %p44, %s45, %s46
    %p50 = pneg %p44
    %p51 = scmp.eq.s32.totalorder %s12, 1
    %p52 = por %p50, %p51
    %p53 = scmp.ne.s32.totalorder %s45, %s48
    %p54 = scmp.eq.s32.totalorder %s12, 0
    %p55 = por %p53, %p54
    %p56 = scmp.ne.s32.totalorder %s45, %s48
    %p57 = scmp.eq.s32.totalorder %s17, 1
    %p58 = por %p56, %p57
    %p59 = scmp.ne.s32.totalorder %s48, %s49
    %p60 = scmp.eq.s32.totalorder %s17, 0
    %p61 = por %p59, %p60
    %p62 = scmp.ne.s32.totalorder %s48, %s49
    %p63 = scmp.eq.s32.totalorder %s18, 1
    %p64 = por %p62, %p63
    %p66 = scmp.ne.s32.totalorder %s49, %s65
    %p67 = scmp.eq.s32.totalorder %s18, 0
    %p68 = por %p66, %p67
    %s69 = ssub.s32 %s19, %s38
    %s70 = ssub.s32 %s20, %s34
    %s71 = sor.u32 %s69, %s70
    %p72 = scmp.eq.s32.totalorder %s71, 0
    %s74 = sadd.s32 %s73, 1
    %s75 = scalar_select %p72, %s73, %s74
    %p78 = pneg %p72
    %p79 = scmp.eq.s32.totalorder %s12, 1
    %p80 = por %p78, %p79
    %p81 = scmp.ne.s32.totalorder %s73, %s76
    %p82 = scmp.eq.s32.totalorder %s12, 0
    %p83 = por %p81, %p82
    %p84 = scmp.ne.s32.totalorder %s73, %s76
    %p85 = scmp.eq.s32.totalorder %s17, 1
    %p86 = por %p84, %p85
    %p87 = scmp.ne.s32.totalorder %s76, %s77
    %p88 = scmp.eq.s32.totalorder %s17, 0
    %p89 = por %p87, %p88
    %p90 = scmp.ne.s32.totalorder %s76, %s77
    %p91 = scmp.eq.s32.totalorder %s18, 1
    %p92 = por %p90, %p91
    %p94 = scmp.ne.s32.totalorder %s77, %s93
    %p95 = scmp.eq.s32.totalorder %s18, 0
    %p96 = por %p94, %p95
    %s97 = ssub.s32 %s21, %s30
    %p98 = scmp.eq.s32.totalorder %s97, 0
    %s100 = sadd.s32 %s99, 1
    %s101 = scalar_select %p98, %s99, %s100
    %p104 = pneg %p98
    %p105 = scmp.eq.s32.totalorder %s12, 1
    %p106 = por %p104, %p105
    %p107 = scmp.ne.s32.totalorder %s99, %s102
    %p108 = scmp.eq.s32.totalorder %s12, 0
    %p109 = por %p107, %p108
    %p110 = scmp.ne.s32.totalorder %s99, %s102
    %p111 = scmp.eq.s32.totalorder %s17, 1
    %p112 = por %p110, %p111
    %p113 = scmp.ne.s32.totalorder %s102, %s103
    %p114 = scmp.eq.s32.totalorder %s17, 0
    %p115 = por %p113, %p114
    %p116 = scmp.ne.s32.totalorder %s102, %s103
    %p117 = scmp.eq.s32.totalorder %s18, 1
    %p118 = por %p116, %p117
    %p120 = scmp.ne.s32.totalorder %s103, %s119
    %p121 = scmp.eq.s32.totalorder %s18, 0
    %p122 = por %p120, %p121
    %s123 = ssub.s32 %s21, %s30
    %p124 = scmp.eq.s32.totalorder %s123, 0
    %s126 = sadd.s32 %s125, 1
    %s127 = scalar_select %p124, %s125, %s126
    %p130 = pneg %p124
    %p131 = scmp.eq.s32.totalorder %s12, 1
    %p132 = por %p130, %p131
    %p133 = scmp.ne.s32.totalorder %s125, %s128
    %p134 = scmp.eq.s32.totalorder %s12, 0
    %p135 = por %p133, %p134
    %p136 = scmp.ne.s32.totalorder %s125, %s128
    %p137 = scmp.eq.s32.totalorder %s17, 1
    %p138 = por %p136, %p137
    %p139 = scmp.ne.s32.totalorder %s128, %s129
    %p140 = scmp.eq.s32.totalorder %s17, 0
    %p141 = por %p139, %p140
    %p142 = scmp.ne.s32.totalorder %s128, %s129
    %p143 = scmp.eq.s32.totalorder %s18, 1
    %p144 = por %p142, %p143
    %p146 = scmp.ne.s32.totalorder %s129, %s145
    %p147 = scmp.eq.s32.totalorder %s18, 0
    %p148 = por %p146, %p147
    %s149 = ssub.s32 %s21, %s30
    %p150 = scmp.eq.s32.totalorder %s149, 0
    %s152 = sadd.s32 %s151, 1
    %s153 = scalar_select %p150, %s151, %s152
    %p156 = pneg %p150
    %p157 = scmp.eq.s32.totalorder %s12, 1
    %p158 = por %p156, %p157
    %p159 = scmp.ne.s32.totalorder %s151, %s154
    %p160 = scmp.eq.s32.totalorder %s12, 0
    %p161 = por %p159, %p160
    %p162 = scmp.ne.s32.totalorder %s151, %s154
    %p163 = scmp.eq.s32.totalorder %s17, 1
    %p164 = por %p162, %p163
    %p165 = scmp.ne.s32.totalorder %s154, %s155
    %p166 = scmp.eq.s32.totalorder %s17, 0
    %p167 = por %p165, %p166
    %p168 = scmp.ne.s32.totalorder %s154, %s155
    %p169 = scmp.eq.s32.totalorder %s18, 1
    %p170 = por %p168, %p169
    %p172 = scmp.ne.s32.totalorder %s155, %s171
    %p173 = scmp.eq.s32.totalorder %s18, 0
    %p174 = por %p172, %p173
    %s175 = ssub.s32 %s21, %s30
    %p176 = scmp.eq.s32.totalorder %s175, 0
    %s178 = sadd.s32 %s177, 1
    %s179 = scalar_select %p176, %s177, %s178
    %p182 = pneg %p176
    %p183 = scmp.eq.s32.totalorder %s12, 1
    %p184 = por %p182, %p183
    %p185 = scmp.ne.s32.totalorder %s177, %s180
    %p186 = scmp.eq.s32.totalorder %s12, 0
    %p187 = por %p185, %p186
    %p188 = scmp.ne.s32.totalorder %s177, %s180
    %p189 = scmp.eq.s32.totalorder %s17, 1
    %p190 = por %p188, %p189
    %p191 = scmp.ne.s32.totalorder %s180, %s181
    %p192 = scmp.eq.s32.totalorder %s17, 0
    %p193 = por %p191, %p192
    %p194 = scmp.ne.s32.totalorder %s180, %s181
    %p195 = scmp.eq.s32.totalorder %s18, 1
    %p196 = por %p194, %p195
    %p198 = scmp.ne.s32.totalorder %s181, %s197
    %p199 = scmp.eq.s32.totalorder %s18, 0
    %p200 = por %p198, %p199
    %s201 = ssub.s32 %s19, %s38
    %s202 = ssub.s32 %s20, %s34
    %s203 = sor.u32 %s201, %s202
    %s204 = ssub.s32 %s21, %s30
    %s205 = sor.u32 %s203, %s204
    %p206 = scmp.eq.s32.totalorder %s205, 0
    %s208 = sadd.s32 %s207, 1
    %s209 = scalar_select %p206, %s207, %s208
    %p212 = pneg %p206
    %p213 = scmp.eq.s32.totalorder %s12, 1
    %p214 = por %p212, %p213
    %p215 = scmp.ne.s32.totalorder %s207, %s210
    %p216 = scmp.eq.s32.totalorder %s12, 0
    %p217 = por %p215, %p216
    %p218 = scmp.ne.s32.totalorder %s207, %s210
    %p219 = scmp.eq.s32.totalorder %s17, 1
    %p220 = por %p218, %p219
    %p221 = scmp.ne.s32.totalorder %s210, %s211
    %p222 = scmp.eq.s32.totalorder %s17, 0
    %p223 = por %p221, %p222
    %p224 = scmp.ne.s32.totalorder %s210, %s211
    %p225 = scmp.eq.s32.totalorder %s18, 1
    %p226 = por %p224, %p225
    %p228 = scmp.ne.s32.totalorder %s211, %s227
    %p229 = scmp.eq.s32.totalorder %s18, 0
    %p230 = por %p228, %p229
    %p231 = scmp.le.s32.totalorder 1, %s12
    %p232 = scmp.lt.s32.totalorder %s12, 3
    %p233 = pnand %p231, %p232
    %p234 = pneg %p233
    // Predicated region
    $region9: #{base_residual_forward.5} parent=5 // pred_check
      _
    $region10: #{base_residual_forward.5} parent=5 // pred_check_branch
      %236 = sbr.rel (%p233) target = $region12
    $region11: #{base_residual_forward.5} parent=5 // pred_region
      %s237 = ssub.s32 %s12, 1
      // Predicated region
      $region13: #{base_residual_forward.5} parent=11 // pred_check
        %p238 = pneg %p115
      $region14: #{base_residual_forward.5} parent=11 // pred_check_branch
        %240 = sbr.rel (%p238) target = $region16
      $region15: #{base_residual_forward.5} parent=11 // pred_region
        %p241 = scmp.lt.s32.totalorder %s24, 0
        %s242 = scalar_select %p241, %s24, 0
        %s243 = smul.addr %s242, 4
        %s244 = scalar_lea.vmem %s2, %s243
      $region16: #{base_residual_forward.5} parent=11 // pred_fallthru
        _
      // Predicated region
      $region17: #{base_residual_forward.5} parent=11 // pred_check
        %p245 = pneg %p141
      $region18: #{base_residual_forward.5} parent=11 // pred_check_branch
        %247 = sbr.rel (%p245) target = $region20
      $region19: #{base_residual_forward.5} parent=11 // pred_region
        %p248 = scmp.lt.s32.totalorder %s24, 0
        %s249 = scalar_select %p248, %s24, 0
        %s250 = scalar_lea.vmem %s3, %s249
      $region20: #{base_residual_forward.5} parent=11 // pred_fallthru
        _
      // Predicated region
      $region21: #{base_residual_forward.5} parent=11 // pred_check
        %p251 = pneg %p167
      $region22: #{base_residual_forward.5} parent=11 // pred_check_branch
        %253 = sbr.rel (%p251) target = $region24
      $region23: #{base_residual_forward.5} parent=11 // pred_region
        %p254 = scmp.lt.s32.totalorder %s24, 0
        %s255 = scalar_select %p254, %s24, 0
        %s256 = scalar_lea.vmem %s4, %s255
      $region24: #{base_residual_forward.5} parent=11 // pred_fallthru
        _
      // Predicated region
      $region25: #{base_residual_forward.5} parent=11 // pred_check
        %p257 = pneg %p193
      $region26: #{base_residual_forward.5} parent=11 // pred_check_branch
        %259 = sbr.rel (%p257) target = $region28
      $region27: #{base_residual_forward.5} parent=11 // pred_region
        %p260 = scmp.lt.s32.totalorder %s24, 0
        %s261 = scalar_select %p260, %s24, 0
        %s262 = scalar_lea.vmem %s5, %s261
      $region28: #{base_residual_forward.5} parent=11 // pred_fallthru
        _
    $region12: #{base_residual_forward.5} parent=5 // pred_fallthru
      _
    %p263 = scmp.lt.s32.totalorder %s12, 2
    // Predicated region
    $region29: #{base_residual_forward.5} parent=5 // pred_check
      %p264 = pneg %p263
    $region30: #{base_residual_forward.5} parent=5 // pred_check_branch
      %266 = sbr.rel (%p264) target = $region32
    $region31: #{base_residual_forward.5} parent=5 // pred_region
      // Predicated region
      $region33: #{base_residual_forward.5} parent=31 // pred_check
        %p267 = pneg %p55
      $region34: #{base_residual_forward.5} parent=31 // pred_check_branch
        %269 = sbr.rel (%p267) target = $region36
      $region35: #{base_residual_forward.5} parent=31 // pred_region
        %s270 = smul.u32 8, %s20
        %p271 = scmp.lt.s32.totalorder %s19, 1
        %s272 = scalar_select %p271, %s19, 1
        %p273 = scmp.lt.s32.totalorder %s270, 7
        %s274 = scalar_select %p273, %s270, 7
        %p275 = scmp.lt.s32.totalorder %s21, 0
        %s276 = scalar_select %p275, %s21, 0
        %s277 = sadd.s32 %s276, %s274
        %s278 = smul.addr %s272, 8
        %s279 = sadd.s32 %s277, %s278
        %s280 = smul.addr %s279, 4
        %s281 = scalar_lea.vmem %s0, %s280
        %s282 = smul.u32 8, %s20
      $region36: #{base_residual_forward.5} parent=31 // pred_fallthru
        _
      // Predicated region
      $region37: #{base_residual_forward.5} parent=31 // pred_check
        %p283 = pneg %p83
      $region38: #{base_residual_forward.5} parent=31 // pred_check_branch
        %285 = sbr.rel (%p283) target = $region40
      $region39: #{base_residual_forward.5} parent=31 // pred_region
        %s286 = smul.u32 8, %s20
        %p287 = scmp.lt.s32.totalorder %s19, 1
        %s288 = scalar_select %p287, %s19, 1
        %p289 = scmp.lt.s32.totalorder %s286, 7
        %s290 = scalar_select %p289, %s286, 7
        %s291 = smul.addr %s288, 8
        %s292 = sadd.s32 %s290, %s291
        %s293 = smul.addr %s292, 4
        %s294 = scalar_lea.vmem %s1, %s293
        %s295 = smul.u32 8, %s20
      $region40: #{base_residual_forward.5} parent=31 // pred_fallthru
        _
    $region32: #{base_residual_forward.5} parent=5 // pred_fallthru
      _
    %p296 = scmp.le.s32.totalorder 1, %s12
    %p297 = scmp.lt.s32.totalorder %s12, 3
    %p298 = pnand %p296, %p297
    %p299 = pneg %p298
    // Predicated region
    $region41: #{base_residual_forward.5} parent=5 // pred_check
      _
    $region42: #{base_residual_forward.5} parent=5 // pred_check_branch
      %301 = sbr.rel (%p298) target = $region44
    $region43: #{base_residual_forward.5} parent=5 // pred_region
      %s302 = ssub.s32 %s12, 1
      %s303 = smul.u32 8, %s23
      %p304 = scmp.lt.s32.totalorder %s22, 1
      %s305 = scalar_select %p304, %s22, 1
      %p306 = scmp.lt.s32.totalorder %s303, 7
      %s307 = scalar_select %p306, %s303, 7
      %p308 = scmp.lt.s32.totalorder %s24, 0
      %s309 = scalar_select %p308, %s24, 0
      %s310 = sadd.s32 %s309, %s307
      %s311 = smul.addr %s305, 8
      %s312 = sadd.s32 %s310, %s311
      %s313 = smul.addr %s312, 4
      %s314 = scalar_lea.vmem %s0, %s313
      %p315 = pneg %p61
      %p316 = pneg %p58
      %s317 = smul.u32 8, %s23
      %p318 = scmp.lt.s32.totalorder %s22, 1
      %s319 = scalar_select %p318, %s22, 1
      %p320 = scmp.lt.s32.totalorder %s317, 7
      %s321 = scalar_select %p320, %s317, 7
      %s322 = smul.addr %s319, 8
      %s323 = sadd.s32 %s321, %s322
      %s324 = smul.addr %s323, 4
      %s325 = scalar_lea.vmem %s1, %s324
      %p326 = pneg %p89
      %p327 = pneg %p86
      %p328 = scmp.lt.s32.totalorder %s24, 0
      %s329 = scalar_select %p328, %s24, 0
      %s330 = smul.addr %s329, 4
      %s331 = scalar_lea.vmem %s2, %s330
      %p332 = pneg %p115
      %p333 = pneg %p112
      %p334 = scmp.lt.s32.totalorder %s24, 0
      %s335 = scalar_select %p334, %s24, 0
      %s336 = scalar_lea.vmem %s3, %s335
      %p337 = pneg %p141
      %p338 = pneg %p138
      %p339 = scmp.lt.s32.totalorder %s24, 0
      %s340 = scalar_select %p339, %s24, 0
      %s341 = scalar_lea.vmem %s4, %s340
      %p342 = pneg %p167
      %p343 = pneg %p164
      %p344 = scmp.lt.s32.totalorder %s24, 0
      %s345 = scalar_select %p344, %s24, 0
      %s346 = scalar_lea.vmem %s5, %s345
      %p347 = pneg %p193
      %p348 = pneg %p190
      %p349 = pneg %p223
      %p350 = pneg %p220
      %s351 = smul.u32 8, %s23
      %p352 = scmp.lt.s32.totalorder %s22, 1
      %s353 = scalar_select %p352, %s22, 1
      %p354 = scmp.lt.s32.totalorder %s351, 7
      %s355 = scalar_select %p354, %s351, 7
      %p356 = scmp.lt.s32.totalorder %s24, 0
      %s357 = scalar_select %p356, %s24, 0
      %s358 = sadd.s32 %s357, %s355
      %s359 = smul.addr %s353, 8
      %s360 = sadd.s32 %s358, %s359
      %s361 = smul.addr %s360, 8
      %s362 = scalar_lea.vmem %s6, %s361
      %s363 = smul.u32 8, %s23
      %p364 = scmp.lt.s32.totalorder %s22, 1
      %s365 = scalar_select %p364, %s22, 1
      %p366 = scmp.lt.s32.totalorder %s363, 7
      %s367 = scalar_select %p366, %s363, 7
      %p368 = scmp.lt.s32.totalorder %s24, 0
      %s369 = scalar_select %p368, %s24, 0
      %s370 = sadd.s32 %s369, %s367
      %s371 = smul.addr %s365, 8
      %s372 = sadd.s32 %s370, %s371
      %s373 = smul.addr %s372, 4
      %s374 = scalar_lea.vmem %s0, %s373
      %s375 = smul.u32 8, %s23
      %s376 = smul.u32 8, %s23
      %p377 = scmp.lt.s32.totalorder %s22, 1
      %s378 = scalar_select %p377, %s22, 1
      %p379 = scmp.lt.s32.totalorder %s376, 7
      %s380 = scalar_select %p379, %s376, 7
      %s381 = smul.addr %s378, 8
      %s382 = sadd.s32 %s380, %s381
      %s383 = smul.addr %s382, 4
      %s384 = scalar_lea.vmem %s1, %s383
      %s385 = smul.u32 8, %s23
      %p386 = scmp.lt.s32.totalorder %s24, 0
      %s387 = scalar_select %p386, %s24, 0
      %s388 = smul.addr %s387, 4
      %s389 = scalar_lea.vmem %s2, %s388
      %p390 = scmp.lt.s32.totalorder %s24, 0
      %s391 = scalar_select %p390, %s24, 0
      %s392 = scalar_lea.vmem %s3, %s391
      %p393 = scmp.lt.s32.totalorder %s24, 0
      %s394 = scalar_select %p393, %s24, 0
      %s395 = scalar_lea.vmem %s4, %s394
      %p396 = scmp.lt.s32.totalorder %s24, 0
      %s397 = scalar_select %p396, %s24, 0
      %s398 = scalar_lea.vmem %s5, %s397
      %s399 = smul.u32 8, %s23
      %p400 = scmp.lt.s32.totalorder %s22, 1
      %s401 = scalar_select %p400, %s22, 1
      %p402 = scmp.lt.s32.totalorder %s399, 7
      %s403 = scalar_select %p402, %s399, 7
      %p404 = scmp.lt.s32.totalorder %s24, 0
      %s405 = scalar_select %p404, %s24, 0
      %s406 = sadd.s32 %s405, %s403
      %s407 = smul.addr %s401, 8
      %s408 = sadd.s32 %s406, %s407
      %s409 = smul.addr %s408, 8
      %s410 = scalar_lea.vmem %s6, %s409
      %s411 = smul.u32 8, %s23
      %v413 = vld [vmem:[%s384] sm:$0xf]
      %v414 = vld [vmem:[%s384 + $0x4] sm:$0xf]
      %v415 = vld [vmem:[%s384 + $0x8] sm:$0xf]
      %v416 = vld [vmem:[%s384 + $0xc] sm:$0xf]
      %v417 = vld [vmem:[%s384 + $0x10] sm:$0xf]
      %v418 = vld [vmem:[%s384 + $0x14] sm:$0xf]
      %v419 = vld [vmem:[%s384 + $0x18] sm:$0xf]
      %v420 = vld [vmem:[%s384 + $0x1c] sm:$0xf]
      %v421 = vld [vmem:[%s389] sm:$0xf]
      %v422 = vld [vmem:[%s389 + $0x4] sm:$0xf]
      %v423 = vld [vmem:[%s389 + $0x8] sm:$0xf]
      %v424 = vld [vmem:[%s389 + $0xc] sm:$0xf]
      %v425 = vld [vmem:[%s389 + $0x10] sm:$0xf]
      %v426 = vld [vmem:[%s389 + $0x14] sm:$0xf]
      %v427 = vld [vmem:[%s389 + $0x18] sm:$0xf]
      %v428 = vld [vmem:[%s389 + $0x1c] sm:$0xf]
      %v429 = vld [vmem:[%s389 + $0x20] sm:$0xf]
      %v430 = vld [vmem:[%s389 + $0x24] sm:$0xf]
      %v431 = vld [vmem:[%s389 + $0x28] sm:$0xf]
      %v432 = vld [vmem:[%s389 + $0x2c] sm:$0xf]
      %v433 = vld [vmem:[%s389 + $0x30] sm:$0xf]
      %v434 = vld [vmem:[%s389 + $0x34] sm:$0xf]
      %v435 = vld [vmem:[%s389 + $0x38] sm:$0xf]
      %v436 = vld [vmem:[%s389 + $0x3c] sm:$0xf]
      %v437 = vld [vmem:[%s392] sm:$0x1]
      %v439 = vlaneseq
      %v440 = vshrl.u32 %v439, 7
      %v441 = vsub.s32 0, %v440
      %v442 = vrot.slane %v437, %v441
      %v452 = vunpack.c.l.b16 %v413
      %v453 = vunpack.c.l.b16 %v414
      %v454 = vunpack.c.l.b16 %v415
      %v455 = vunpack.c.l.b16 %v416
      %v456 = vunpack.c.l.b16 %v417
      %v457 = vunpack.c.l.b16 %v418
      %v458 = vunpack.c.l.b16 %v419
      %v459 = vunpack.c.l.b16 %v420
      %v460 = vpack.c.b16 %v453, %v452
      %v461 = vpack.c.b16 %v455, %v454
      %v462 = vpack.c.b16 %v457, %v456
      %v463 = vpack.c.b16 %v459, %v458
      %v484 = vunpack.c.l.b16 %v421
      %v485 = vunpack.c.l.b16 %v422
      %v486 = vunpack.c.l.b16 %v423
      %v487 = vunpack.c.l.b16 %v424
      %v488 = vunpack.c.l.b16 %v425
      %v489 = vunpack.c.l.b16 %v426
      %v490 = vunpack.c.l.b16 %v427
      %v491 = vunpack.c.l.b16 %v428
      %v492 = vunpack.c.l.b16 %v429
      %v493 = vunpack.c.l.b16 %v430
      %v494 = vunpack.c.l.b16 %v431
      %v495 = vunpack.c.l.b16 %v432
      %v496 = vunpack.c.l.b16 %v433
      %v497 = vunpack.c.l.b16 %v434
      %v498 = vunpack.c.l.b16 %v435
      %v499 = vunpack.c.l.b16 %v436
      %v500 = vpack.c.b16 %v485, %v484
      %v501 = vpack.c.b16 %v487, %v486
      %v502 = vpack.c.b16 %v489, %v488
      %v503 = vpack.c.b16 %v491, %v490
      %v504 = vpack.c.b16 %v493, %v492
      %v505 = vpack.c.b16 %v495, %v494
      %v506 = vpack.c.b16 %v497, %v496
      %v507 = vpack.c.b16 %v499, %v498
      %516 = vmatprep.subr.bf16.mxu0 0
      %517 = vmatpush1.bf16.msra.mxu0 %v507
      %518 = vmatprep.subr.bf16.mxu0 0
      %519 = vmatpush1.bf16.msra.mxu0 %v506
      %520 = vmatprep.subr.bf16.mxu0 0
      %521 = vmatpush1.bf16.msra.mxu0 %v505
      %522 = vmatprep.subr.bf16.mxu0 0
      %523 = vmatpush1.bf16.msra.mxu0 %v504
      %524 = vmatprep.subr.bf16.mxu0 0
      %525 = vmatpush1.bf16.msra.mxu0 %v503
      %526 = vmatprep.subr.bf16.mxu0 0
      %527 = vmatpush1.bf16.msra.mxu0 %v502
      %528 = vmatprep.subr.bf16.mxu0 0
      %529 = vmatpush1.bf16.msra.mxu0 %v501
      %530 = vmatprep.subr.bf16.mxu0 0
      %531 = vmatpush1.bf16.msra.mxu0 %v500
      %532 = vmatprep.subr.bf16.mxu0 0
      %533 = vmatpush2.bf16.msra.mxu0 0
      %534 = vmatprep.subr.bf16.mxu0 0
      %535 = vmatpush2.bf16.msra.mxu0 0
      %536 = vmatprep.subr.bf16.mxu0 0
      %537 = vmatpush2.bf16.msra.mxu0 0
      %538 = vmatprep.subr.bf16.mxu0 0
      %539 = vmatpush2.bf16.msra.mxu0 0
      %540 = vmatprep.subr.bf16.mxu0 0
      %541 = vmatpush2.bf16.msra.mxu0 0
      %542 = vmatprep.subr.bf16.mxu0 0
      %543 = vmatpush2.bf16.msra.mxu0 0
      %544 = vmatprep.subr.bf16.mxu0 0
      %545 = vmatpush2.bf16.msra.mxu0 0
      %546 = vmatprep.subr.bf16.mxu0 0
      %547 = vmatpush2.bf16.msra.mxu0 0
      %548 = vmatprep.mubr.bf16.mxu0 0
      %549 = vmatmul.mubr.bf16.gmra.mxu0 %v460
      %v550 = vpop.f32.mrf.mxu0
      %v551 = vadd.f32 %v442, %v550
      %v552 = vpop.f32.mrf.mxu0
      %v553 = vpop.f32.mrf.mxu0
      %v554 = vadd.f32 %v442, %v553
      %v555 = vpop.f32.mrf.mxu0
      %556 = vmatprep.mubr.bf16.mxu0 0
      %557 = vmatmul.mubr.bf16.gmra.mxu0 %v461
      %v558 = vpop.f32.mrf.mxu0
      %v559 = vadd.f32 %v442, %v558
      %v560 = vpop.f32.mrf.mxu0
      %v561 = vpop.f32.mrf.mxu0
      %v562 = vadd.f32 %v442, %v561
      %v563 = vpop.f32.mrf.mxu0
      %564 = vmatprep.mubr.bf16.mxu0 0
      %565 = vmatmul.mubr.bf16.gmra.mxu0 %v462
      %v566 = vpop.f32.mrf.mxu0
      %v567 = vadd.f32 %v442, %v566
      %v568 = vpop.f32.mrf.mxu0
      %v569 = vpop.f32.mrf.mxu0
      %v570 = vadd.f32 %v442, %v569
      %v571 = vpop.f32.mrf.mxu0
      %572 = vmatprep.mubr.bf16.mxu0 0
      %573 = vmatmul.mubr.bf16.gmra.mxu0 %v463
      %v574 = vpop.f32.mrf.mxu0
      %v575 = vadd.f32 %v442, %v574
      %v576 = vpop.f32.mrf.mxu0
      %v577 = vpop.f32.mrf.mxu0
      %v578 = vadd.f32 %v442, %v577
      %v579 = vpop.f32.mrf.mxu0
      %580 = vdwg.mxu0
      %v581 = vld [vmem:[%s374] sm:$0xf]
      %v582 = vld [vmem:[%s374 + $0x4] sm:$0xf]
      %v583 = vld [vmem:[%s374 + $0x8] sm:$0xf]
      %v584 = vld [vmem:[%s374 + $0xc] sm:$0xf]
      %v585 = vld [vmem:[%s374 + $0x10] sm:$0xf]
      %v586 = vld [vmem:[%s374 + $0x14] sm:$0xf]
      %v587 = vld [vmem:[%s374 + $0x18] sm:$0xf]
      %v588 = vld [vmem:[%s374 + $0x1c] sm:$0xf]
      %v589 = vunpack.c.l.bf16 %v581
      %v590 = vunpack.c.l.bf16 %v582
      %v591 = vunpack.c.l.bf16 %v583
      %v592 = vunpack.c.l.bf16 %v584
      %v593 = vunpack.c.l.bf16 %v585
      %v594 = vunpack.c.l.bf16 %v586
      %v595 = vunpack.c.l.bf16 %v587
      %v596 = vunpack.c.l.bf16 %v588
      %v597 = vld [vmem:[%s395] sm:$0x1]
      %v599 = vlaneseq
      %v600 = vshrl.u32 %v599, 7
      %v601 = vsub.s32 0, %v600
      %v602 = vrot.slane %v597, %v601
      %v604 = vmul.f32 %v589, %v602
      %v605 = vmul.f32 %v590, %v602
      %v606 = vmul.f32 %v591, %v602
      %v607 = vmul.f32 %v592, %v602
      %v608 = vmul.f32 %v593, %v602
      %v609 = vmul.f32 %v594, %v602
      %v610 = vmul.f32 %v595, %v602
      %v611 = vmul.f32 %v596, %v602
      %v612 = vld [vmem:[%s398] sm:$0x1]
      %v614 = vlaneseq
      %v615 = vshrl.u32 %v614, 7
      %v616 = vsub.s32 0, %v615
      %v617 = vrot.slane %v612, %v616
      %v619 = vadd.f32 %v604, %v617
      %v620 = vadd.f32 %v605, %v617
      %v621 = vadd.f32 %v606, %v617
      %v622 = vadd.f32 %v607, %v617
      %v623 = vadd.f32 %v608, %v617
      %v624 = vadd.f32 %v609, %v617
      %v625 = vadd.f32 %v610, %v617
      %v626 = vadd.f32 %v611, %v617
      %v627 = vadd.f32 %v619, %v551
      %v628 = vadd.f32 %v620, %v554
      %v629 = vadd.f32 %v621, %v559
      %v630 = vadd.f32 %v622, %v562
      %v631 = vadd.f32 %v623, %v567
      %v632 = vadd.f32 %v624, %v570
      %v633 = vadd.f32 %v625, %v575
      %v634 = vadd.f32 %v626, %v578
      %v635 = vmax.f32 %v627, 0.0
      %v636 = vmax.f32 %v628, 0.0
      %v637 = vmax.f32 %v629, 0.0
      %v638 = vmax.f32 %v630, 0.0
      %v639 = vmax.f32 %v631, 0.0
      %v640 = vmax.f32 %v632, 0.0
      %v641 = vmax.f32 %v633, 0.0
      %v642 = vmax.f32 %v634, 0.0
      %643 = vst [vmem:[%s410] sm:$0xff] %v635
      %644 = vst [vmem:[%s410 + $0x8] sm:$0xff] %v636
      %645 = vst [vmem:[%s410 + $0x10] sm:$0xff] %v637
      %646 = vst [vmem:[%s410 + $0x18] sm:$0xff] %v638
      %647 = vst [vmem:[%s410 + $0x20] sm:$0xff] %v639
      %648 = vst [vmem:[%s410 + $0x28] sm:$0xff] %v640
      %649 = vst [vmem:[%s410 + $0x30] sm:$0xff] %v641
      %650 = vst [vmem:[%s410 + $0x38] sm:$0xff] %v642
      %s651 = smul.u32 8, %s23
      %p652 = scmp.lt.s32.totalorder %s22, 1
      %s653 = scalar_select %p652, %s22, 1
      %p654 = scmp.lt.s32.totalorder %s651, 7
      %s655 = scalar_select %p654, %s651, 7
      %p656 = scmp.lt.s32.totalorder %s24, 0
      %s657 = scalar_select %p656, %s24, 0
      %s658 = sadd.s32 %s657, %s655
      %s659 = smul.addr %s653, 8
      %s660 = sadd.s32 %s658, %s659
      %s661 = smul.addr %s660, 8
      %s662 = scalar_lea.vmem %s6, %s661
      // Predicated region
      $region45: #{base_residual_forward.5} parent=43 // pred_check
        %p663 = pneg %p220
      $region46: #{base_residual_forward.5} parent=43 // pred_check_branch
        %665 = sbr.rel (%p663) target = $region48
      $region47: #{base_residual_forward.5} parent=43 // pred_region
        %s666 = smul.u32 8, %s23
      $region48: #{base_residual_forward.5} parent=43 // pred_fallthru
        _
    $region44: #{base_residual_forward.5} parent=5 // pred_fallthru
      _
    %p667 = scmp.le.s32.totalorder 2, %s12
    // Predicated region
    $region49: #{base_residual_forward.5} parent=5 // pred_check
      %p668 = pneg %p667
    $region50: #{base_residual_forward.5} parent=5 // pred_check_branch
      %670 = sbr.rel (%p668) target = $region52
    $region51: #{base_residual_forward.5} parent=5 // pred_region
      %s671 = ssub.s32 %s12, 2
      // Predicated region
      $region53: #{base_residual_forward.5} parent=51 // pred_check
        %p672 = pneg %p226
      $region54: #{base_residual_forward.5} parent=51 // pred_check_branch
        %674 = sbr.rel (%p672) target = $region56
      $region55: #{base_residual_forward.5} parent=51 // pred_region
        %s675 = smul.u32 8, %s26
        %p676 = scmp.lt.s32.totalorder %s25, 1
        %s677 = scalar_select %p676, %s25, 1
        %p678 = scmp.lt.s32.totalorder %s675, 7
        %s679 = scalar_select %p678, %s675, 7
        %p680 = scmp.lt.s32.totalorder %s27, 0
        %s681 = scalar_select %p680, %s27, 0
        %s682 = sadd.s32 %s681, %s679
        %s683 = smul.addr %s677, 8
        %s684 = sadd.s32 %s682, %s683
        %s685 = smul.addr %s684, 8
        %s686 = scalar_lea.vmem %s6, %s685
      $region56: #{base_residual_forward.5} parent=51 // pred_fallthru
        _
    $region52: #{base_residual_forward.5} parent=5 // pred_fallthru
      _
  $region6: #{base_residual_forward.5} parent=0 // loop_footer
    %s16 = sadd.s32 1, %s12
  $region7: #{base_residual_forward.5} parent=0 // loop_footer_branch
    %11 = sbr.rel target = $region3
  $region8: #{base_residual_forward.5} parent=0 // loop_exit
    _

</llo_original>
